<compile_context>
chip_gen: v6e
topology: v6e:2x2x1
jax: 0.10.0
libtpu: 0.0.40
codegen_flags: <defaults>
</compile_context>

<pallas_src>
import jax
import jax.numpy as jnp
from jax import lax
from jax.experimental import pallas as pl
from jax.experimental.pallas import tpu as pltpu

EPS = 1e-5
VMEM_LIMIT = 48 * 1024 * 1024   # explicit scoped-VMEM budget (safe on v5e/v6e/v7x)


def _mish(h):
    # mish(h) = h * tanh(softplus(h)) = h * (1 - 2/(u*(u+2)+2)), u = exp(h)
    u = jnp.exp(h)
    den = u * (u + 2.0) + 2.0
    return h * (1.0 - 2.0 * pl.reciprocal(den, approx=True))


def _sum_sumsq(h):
    # one-pass BN statistics: per-channel [sum ; sum of squares] -> (2, C)
    return jnp.concatenate([jnp.sum(h, axis=0, keepdims=True),
                            jnp.sum(h * h, axis=0, keepdims=True)], axis=0)


# ---- stage 1: conv1 (k=3, pad=1) + 1x1 skip conv + their BN statistics --------
def _stage1_kernel(x_ref, w1_ref, ws_ref, h1_ref, sk_ref, st1_ref, sts_ref):
    L = x_ref.shape[1]
    cin = x_ref.shape[2]
    x = x_ref[0].astype(jnp.float32)                       # (L, Cin)
    z = jnp.zeros((1, cin), jnp.float32)
    cols = jnp.concatenate(
        [jnp.concatenate([z, x[:L - 1]], axis=0),          # tap k=0 : x[l-1]
         x,                                                # tap k=1 : x[l]
         jnp.concatenate([x[1:], z], axis=0)],             # tap k=2 : x[l+1]
        axis=1).astype(jnp.bfloat16)                       # (L, 3*Cin) im2col
    h1 = jnp.dot(cols, w1_ref[...], preferred_element_type=jnp.float32)
    sk = jnp.dot(x_ref[0], ws_ref[...], preferred_element_type=jnp.float32)
    h1_ref[0] = h1
    sk_ref[0] = sk
    st1_ref[0] = _sum_sumsq(h1)
    sts_ref[0] = _sum_sumsq(sk)


# ---- stage 2: BN1 + Mish + conv2 (k=3, pad=1) + BN2 statistics -----------------
def _stage2_kernel(h1_ref, sc1_ref, sh1_ref, w2_ref, h2_ref, st2_ref):
    L = h1_ref.shape[1]
    cout = h1_ref.shape[2]
    a = _mish(h1_ref[0] * sc1_ref[...] + sh1_ref[...])     # fused BN1 + Mish, f32
    z = jnp.zeros((1, cout), jnp.float32)
    cols = jnp.concatenate(
        [jnp.concatenate([z, a[:L - 1]], axis=0),
         a,
         jnp.concatenate([a[1:], z], axis=0)],
        axis=1).astype(jnp.bfloat16)                       # (L, 3*Cout)
    h2 = jnp.dot(cols, w2_ref[...], preferred_element_type=jnp.float32)
    h2_ref[0] = h2
    st2_ref[0] = _sum_sumsq(h2)


# ---- stage 3: BN2 + BN_skip + residual add + final Mish (token-tiled) ----------
def _finalize_kernel(h2_ref, sk_ref, sc2_ref, sh2_ref, scs_ref, shs_ref, o_ref):
    y = _mish((h2_ref[0] * sc2_ref[...] + sh2_ref[...]) +
              (sk_ref[0] * scs_ref[...] + shs_ref[...]))
    o_ref[0] = y.astype(o_ref.dtype)


def _bn_scale_shift(stats, gamma, beta, count):
    # stats: (N, 2, C) per-batch-tile [sum, sumsq]; biased variance (training BN)
    s1 = jnp.sum(stats[:, 0, :], axis=0)
    s2 = jnp.sum(stats[:, 1, :], axis=0)
    mean = s1 / count
    var = s2 / count - mean * mean
    scale = gamma * lax.rsqrt(var + EPS)
    shift = beta - mean * scale
    return (scale.reshape(1, -1).astype(jnp.float32),
            shift.reshape(1, -1).astype(jnp.float32))


def residual_block(x_ncl, p):
    """x_ncl: (N, C_in, L) f32 (PyTorch layout). Returns (N, C_out, L) f32."""
    N, Cin, L = x_ncl.shape
    Cout = p["w1"].shape[0]
    TL = 128 if L % 128 == 0 else L        # token tile for the elementwise stage

    # NCL -> NLC; bf16 halves HBM traffic of x and feeds the MXU natively.
    x = jnp.transpose(x_ncl, (0, 2, 1)).astype(jnp.bfloat16)

    # Conv weights -> single im2col matrices (tap-major rows), bf16 operands.
    # Conv biases b1/b2/bs are dropped: they cancel under training-mode BN.
    w1 = jnp.transpose(p["w1"], (2, 1, 0)).reshape(3 * Cin, Cout).astype(jnp.bfloat16)
    w2 = jnp.transpose(p["w2"], (2, 1, 0)).reshape(3 * Cout, Cout).astype(jnp.bfloat16)
    ws = jnp.transpose(p["ws"][:, :, 0], (1, 0)).astype(jnp.bfloat16)

    f32 = jnp.float32
    cp1 = pltpu.CompilerParams(dimension_semantics=("parallel",),
                               vmem_limit_bytes=VMEM_LIMIT)

    # ---- pass 1: conv1 + skip conv + their per-channel stats -------------------
    h1, sk, st1, sts = pl.pallas_call(
        _stage1_kernel,
        grid=(N,),
        in_specs=[
            pl.BlockSpec((1, L, Cin), lambda n: (n, 0, 0)),
            pl.BlockSpec((3 * Cin, Cout), lambda n: (0, 0)),
            pl.BlockSpec((Cin, Cout), lambda n: (0, 0)),
        ],
        out_specs=(
            pl.BlockSpec((1, L, Cout), lambda n: (n, 0, 0)),
            pl.BlockSpec((1, L, Cout), lambda n: (n, 0, 0)),
            pl.BlockSpec((1, 2, Cout), lambda n: (n, 0, 0)),
            pl.BlockSpec((1, 2, Cout), lambda n: (n, 0, 0)),
        ),
        out_shape=(
            jax.ShapeDtypeStruct((N, L, Cout), f32),
            jax.ShapeDtypeStruct((N, L, Cout), f32),
            jax.ShapeDtypeStruct((N, 2, Cout), f32),
            jax.ShapeDtypeStruct((N, 2, Cout), f32),
        ),
        compiler_params=cp1,
    )(x, w1, ws)

    count = N * L
    sc1, sh1 = _bn_scale_shift(st1, p["g1"], p["bt1"], count)
    scs, shs = _bn_scale_shift(sts, p["gs"], p["bts"], count)

    # ---- pass 2: BN1 + Mish + conv2 + BN2 stats --------------------------------
    h2, st2 = pl.pallas_call(
        _stage2_kernel,
        grid=(N,),
        in_specs=[
            pl.BlockSpec((1, L, Cout), lambda n: (n, 0, 0)),
            pl.BlockSpec((1, Cout), lambda n: (0, 0)),
            pl.BlockSpec((1, Cout), lambda n: (0, 0)),
            pl.BlockSpec((3 * Cout, Cout), lambda n: (0, 0)),
        ],
        out_specs=(
            pl.BlockSpec((1, L, Cout), lambda n: (n, 0, 0)),
            pl.BlockSpec((1, 2, Cout), lambda n: (n, 0, 0)),
        ),
        out_shape=(
            jax.ShapeDtypeStruct((N, L, Cout), f32),
            jax.ShapeDtypeStruct((N, 2, Cout), f32),
        ),
        compiler_params=cp1,
    )(h1, sc1, sh1, w2)

    sc2, sh2 = _bn_scale_shift(st2, p["g2"], p["bt2"], count)

    # ---- pass 3: BN2 + BN_skip + residual + Mish, tiled over (N, L) tokens -----
    out_nlc = pl.pallas_call(
        _finalize_kernel,
        grid=(N, L // TL),
        in_specs=[
            pl.BlockSpec((1, TL, Cout), lambda n, l: (n, l, 0)),
            pl.BlockSpec((1, TL, Cout), lambda n, l: (n, l, 0)),
            pl.BlockSpec((1, Cout), lambda n, l: (0, 0)),
            pl.BlockSpec((1, Cout), lambda n, l: (0, 0)),
            pl.BlockSpec((1, Cout), lambda n, l: (0, 0)),
            pl.BlockSpec((1, Cout), lambda n, l: (0, 0)),
        ],
        out_specs=pl.BlockSpec((1, TL, Cout), lambda n, l: (n, l, 0)),
        out_shape=jax.ShapeDtypeStruct((N, L, Cout), f32),
        compiler_params=pltpu.CompilerParams(
            dimension_semantics=("parallel", "parallel"),
            vmem_limit_bytes=VMEM_LIMIT),
    )(h2, sk, sc2, sh2, scs, shs)

    return jnp.transpose(out_nlc, (0, 2, 1))


# ------------------------- pure-JAX f32 reference (spec) ------------------------
def reference_forward(x, p):
    dn = ("NCH", "OIH", "NCH")

    def conv(h, w, b, pad):
        y = lax.conv_general_dilated(h, w, (1,), ((pad, pad),),
                                     dimension_numbers=dn,
                                     precision=lax.Precision.HIGHEST)
        return y + b[None, :, None]

    def bn(h, g, bt):
        mean = jnp.mean(h, axis=(0, 2), keepdims=True)
        var = jnp.mean((h - mean) ** 2, axis=(0, 2), keepdims=True)
        return (h - mean) / jnp.sqrt(var + EPS) * g[None, :, None] + bt[None, :, None]

    def mish(h):
        return h * jnp.tanh(jnp.log1p(jnp.exp(h)))

    identity = bn(conv(x, p["ws"], p["bs"], 0), p["gs"], p["bts"])
    out = mish(bn(conv(x, p["w1"], p["b1"], 1), p["g1"], p["bt1"]))
    out = bn(conv(out, p["w2"], p["b2"], 1), p["g2"], p["bt2"])
    return mish(out + identity)


def make_params(key, cin, cout):
    ks = jax.random.split(key, 6)
    return {
        "w1": 0.3 * jax.random.normal(ks[0], (cout, cin, 3), jnp.float32),
        "b1": 0.1 * jax.random.normal(ks[1], (cout,), jnp.float32),
        "g1": jnp.ones((cout,), jnp.float32),
        "bt1": jnp.zeros((cout,), jnp.float32),
        "w2": 0.3 * jax.random.normal(ks[2], (cout, cout, 3), jnp.float32),
        "b2": 0.1 * jax.random.normal(ks[3], (cout,), jnp.float32),
        "g2": jnp.ones((cout,), jnp.float32),
        "bt2": jnp.zeros((cout,), jnp.float32),
        "ws": 0.3 * jax.random.normal(ks[4], (cout, cin, 1), jnp.float32),
        "bs": 0.1 * jax.random.normal(ks[5], (cout,), jnp.float32),
        "gs": jnp.ones((cout,), jnp.float32),
        "bts": jnp.zeros((cout,), jnp.float32),
    }


if __name__ == "__main__":
    # downsample=False, in_channels != out_channels (conv+BN skip path).
    N, Cin, Cout, L = 4, 8, 16, 256
    key = jax.random.PRNGKey(0)
    kx, kp = jax.random.split(key)
    x = jax.random.normal(kx, (N, Cin, L), jnp.float32)
    params = make_params(kp, Cin, Cout)

    run = jax.jit(residual_block)
    out = jax.block_until_ready(run(x, params))
    ref = jax.block_until_ready(reference_forward(x, params))

    assert out.shape == (N, Cout, L)
    # Tolerance covers bf16 MXU operands + EUP approx reciprocal in the kernel
    # vs the all-f32 reference.
    err = jnp.max(jnp.abs(out - ref))
    assert jnp.allclose(out, ref, atol=5e-2, rtol=5e-2), f"max abs err {err}"
    print("KERNEL_OK")
</pallas_src>

<mosaic_0001>
module attributes {stable_mosaic.version = 11 : i64} {
  func.func @_stage1_kernel(%arg0: i32, %arg1: memref<1x256x8xbf16, #tpu.memory_space<vmem>>, %arg2: memref<24x16xbf16, #tpu.memory_space<vmem>>, %arg3: memref<8x16xbf16, #tpu.memory_space<vmem>>, %arg4: memref<1x256x16xf32, #tpu.memory_space<vmem>>, %arg5: memref<1x256x16xf32, #tpu.memory_space<vmem>>, %arg6: memref<1x2x16xf32, #tpu.memory_space<vmem>>, %arg7: memref<1x2x16xf32, #tpu.memory_space<vmem>>) attributes {dimension_semantics = [#tpu.dimension_semantics<parallel>], iteration_bounds = array<i64: 4>, scalar_prefetch = 0 : i64, scratch_operands = 0 : i64, tpu.core_type = #tpu.core_type<tc>, window_params = [{transform_indices = @transform_0, window_bounds = array<i64: 1, 256, 8>}, {pipeline_mode = #tpu.pipeline_mode<synchronous>, transform_indices = @transform_1, window_bounds = array<i64: 24, 16>}, {pipeline_mode = #tpu.pipeline_mode<synchronous>, transform_indices = @transform_2, window_bounds = array<i64: 8, 16>}, {transform_indices = @transform_3, window_bounds = array<i64: 1, 256, 16>}, {transform_indices = @transform_4, window_bounds = array<i64: 1, 256, 16>}, {transform_indices = @transform_5, window_bounds = array<i64: 1, 2, 16>}, {transform_indices = @transform_6, window_bounds = array<i64: 1, 2, 16>}]} {
    %c0 = arith.constant 0 : index
    %c0_0 = arith.constant 0 : index
    %c0_1 = arith.constant 0 : index
    %0 = vector.load %arg1[%c0, %c0_0, %c0_1] : memref<1x256x8xbf16, #tpu.memory_space<vmem>>, vector<1x256x8xbf16>
    %1 = vector.shape_cast %0 : vector<1x256x8xbf16> to vector<256x8xbf16>
    %2 = arith.extf %1 : vector<256x8xbf16> to vector<256x8xf32>
    %cst = arith.constant 0.000000e+00 : f32
    %3 = vector.broadcast %cst : f32 to vector<1x8xf32>
    %4 = vector.extract_strided_slice %2 {offsets = [0, 0], sizes = [255, 8], strides = [1, 1]} : vector<256x8xf32> to vector<255x8xf32>
    %5 = tpu.concatenate %3, %4 in 0 : vector<1x8xf32>, vector<255x8xf32> -> vector<256x8xf32>
    %6 = vector.extract_strided_slice %2 {offsets = [1, 0], sizes = [255, 8], strides = [1, 1]} : vector<256x8xf32> to vector<255x8xf32>
    %7 = tpu.concatenate %6, %3 in 0 : vector<255x8xf32>, vector<1x8xf32> -> vector<256x8xf32>
    %8 = tpu.concatenate %5, %2, %7 in 1 : vector<256x8xf32>, vector<256x8xf32>, vector<256x8xf32> -> vector<256x24xf32>
    %9 = arith.truncf %8 : vector<256x24xf32> to vector<256x24xbf16>
    %c0_2 = arith.constant 0 : index
    %c0_3 = arith.constant 0 : index
    %10 = vector.load %arg2[%c0_2, %c0_3] : memref<24x16xbf16, #tpu.memory_space<vmem>>, vector<24x16xbf16>
    %cst_4 = arith.constant dense<0.000000e+00> : vector<256x16xf32>
    %11 = tpu.matmul %9, %10, %cst_4 {dimension_numbers = #tpu.dot_dimension_numbers<[1], [0], [0], [1], [0, 0, 1, 1], [], []>} : vector<256x24xbf16>, vector<24x16xbf16>, vector<256x16xf32> -> vector<256x16xf32>
    %c0_5 = arith.constant 0 : index
    %c0_6 = arith.constant 0 : index
    %c0_7 = arith.constant 0 : index
    %12 = vector.load %arg1[%c0_5, %c0_6, %c0_7] : memref<1x256x8xbf16, #tpu.memory_space<vmem>>, vector<1x256x8xbf16>
    %13 = vector.shape_cast %12 : vector<1x256x8xbf16> to vector<256x8xbf16>
    %c0_8 = arith.constant 0 : index
    %c0_9 = arith.constant 0 : index
    %14 = vector.load %arg3[%c0_8, %c0_9] : memref<8x16xbf16, #tpu.memory_space<vmem>>, vector<8x16xbf16>
    %cst_10 = arith.constant dense<0.000000e+00> : vector<256x16xf32>
    %15 = tpu.matmul %13, %14, %cst_10 {dimension_numbers = #tpu.dot_dimension_numbers<[1], [0], [0], [1], [0, 0, 1, 1], [], []>} : vector<256x8xbf16>, vector<8x16xbf16>, vector<256x16xf32> -> vector<256x16xf32>
    %c0_11 = arith.constant 0 : index
    %c0_12 = arith.constant 0 : index
    %c0_13 = arith.constant 0 : index
    %16 = vector.load %arg4[%c0_11, %c0_12, %c0_13] : memref<1x256x16xf32, #tpu.memory_space<vmem>>, vector<1x256x16xf32>
    %17 = vector.shape_cast %16 : vector<1x256x16xf32> to vector<256x16xf32>
    %18 = vector.shape_cast %11 : vector<256x16xf32> to vector<1x256x16xf32>
    tpu.vector_store %arg4[%c0_11, %c0_12, %c0_13], %18 {strides = array<i32>} : memref<1x256x16xf32, #tpu.memory_space<vmem>>, vector<1x256x16xf32>,
    %c0_14 = arith.constant 0 : index
    %c0_15 = arith.constant 0 : index
    %c0_16 = arith.constant 0 : index
    %19 = vector.load %arg5[%c0_14, %c0_15, %c0_16] : memref<1x256x16xf32, #tpu.memory_space<vmem>>, vector<1x256x16xf32>
    %20 = vector.shape_cast %19 : vector<1x256x16xf32> to vector<256x16xf32>
    %21 = vector.shape_cast %15 : vector<256x16xf32> to vector<1x256x16xf32>
    tpu.vector_store %arg5[%c0_14, %c0_15, %c0_16], %21 {strides = array<i32>} : memref<1x256x16xf32, #tpu.memory_space<vmem>>, vector<1x256x16xf32>,
    %cst_17 = arith.constant dense<0.000000e+00> : vector<16xf32>
    %22 = vector.multi_reduction <add>, %11, %cst_17 [0] : vector<256x16xf32> to vector<16xf32>
    %23 = vector.shape_cast %22 : vector<16xf32> to vector<1x16xf32>
    %24 = arith.mulf %11, %11 : vector<256x16xf32>
    %cst_18 = arith.constant dense<0.000000e+00> : vector<16xf32>
    %25 = vector.multi_reduction <add>, %24, %cst_18 [0] : vector<256x16xf32> to vector<16xf32>
    %26 = vector.shape_cast %25 : vector<16xf32> to vector<1x16xf32>
    %27 = tpu.concatenate %23, %26 in 0 : vector<1x16xf32>, vector<1x16xf32> -> vector<2x16xf32>
    %c0_19 = arith.constant 0 : index
    %c0_20 = arith.constant 0 : index
    %c0_21 = arith.constant 0 : index
    %28 = vector.load %arg6[%c0_19, %c0_20, %c0_21] : memref<1x2x16xf32, #tpu.memory_space<vmem>>, vector<1x2x16xf32>
    %29 = vector.shape_cast %28 : vector<1x2x16xf32> to vector<2x16xf32>
    %30 = vector.shape_cast %27 : vector<2x16xf32> to vector<1x2x16xf32>
    tpu.vector_store %arg6[%c0_19, %c0_20, %c0_21], %30 {strides = array<i32>} : memref<1x2x16xf32, #tpu.memory_space<vmem>>, vector<1x2x16xf32>,
    %cst_22 = arith.constant dense<0.000000e+00> : vector<16xf32>
    %31 = vector.multi_reduction <add>, %15, %cst_22 [0] : vector<256x16xf32> to vector<16xf32>
    %32 = vector.shape_cast %31 : vector<16xf32> to vector<1x16xf32>
    %33 = arith.mulf %15, %15 : vector<256x16xf32>
    %cst_23 = arith.constant dense<0.000000e+00> : vector<16xf32>
    %34 = vector.multi_reduction <add>, %33, %cst_23 [0] : vector<256x16xf32> to vector<16xf32>
    %35 = vector.shape_cast %34 : vector<16xf32> to vector<1x16xf32>
    %36 = tpu.concatenate %32, %35 in 0 : vector<1x16xf32>, vector<1x16xf32> -> vector<2x16xf32>
    %c0_24 = arith.constant 0 : index
    %c0_25 = arith.constant 0 : index
    %c0_26 = arith.constant 0 : index
    %37 = vector.load %arg7[%c0_24, %c0_25, %c0_26] : memref<1x2x16xf32, #tpu.memory_space<vmem>>, vector<1x2x16xf32>
    %38 = vector.shape_cast %37 : vector<1x2x16xf32> to vector<2x16xf32>
    %39 = vector.shape_cast %36 : vector<2x16xf32> to vector<1x2x16xf32>
    tpu.vector_store %arg7[%c0_24, %c0_25, %c0_26], %39 {strides = array<i32>} : memref<1x2x16xf32, #tpu.memory_space<vmem>>, vector<1x2x16xf32>,
    return
  }
  func.func @transform_0(%arg0: i32) -> (i32, i32, i32) {
    %c0_i32 = arith.constant 0 : i32
    %c0_i32_0 = arith.constant 0 : i32
    %c0_i32_1 = arith.constant 0 : i32
    return %arg0, %c0_i32, %c0_i32_0 : i32, i32, i32
  }
  func.func @transform_1(%arg0: i32) -> (i32, i32) {
    %c0_i32 = arith.constant 0 : i32
    %c0_i32_0 = arith.constant 0 : i32
    %c0_i32_1 = arith.constant 0 : i32
    return %c0_i32, %c0_i32_0 : i32, i32
  }
  func.func @transform_2(%arg0: i32) -> (i32, i32) {
    %c0_i32 = arith.constant 0 : i32
    %c0_i32_0 = arith.constant 0 : i32
    %c0_i32_1 = arith.constant 0 : i32
    return %c0_i32, %c0_i32_0 : i32, i32
  }
  func.func @transform_3(%arg0: i32) -> (i32, i32, i32) {
    %c0_i32 = arith.constant 0 : i32
    %c0_i32_0 = arith.constant 0 : i32
    %c0_i32_1 = arith.constant 0 : i32
    return %arg0, %c0_i32, %c0_i32_0 : i32, i32, i32
  }
  func.func @transform_4(%arg0: i32) -> (i32, i32, i32) {
    %c0_i32 = arith.constant 0 : i32
    %c0_i32_0 = arith.constant 0 : i32
    %c0_i32_1 = arith.constant 0 : i32
    return %arg0, %c0_i32, %c0_i32_0 : i32, i32, i32
  }
  func.func @transform_5(%arg0: i32) -> (i32, i32, i32) {
    %c0_i32 = arith.constant 0 : i32
    %c0_i32_0 = arith.constant 0 : i32
    %c0_i32_1 = arith.constant 0 : i32
    return %arg0, %c0_i32, %c0_i32_0 : i32, i32, i32
  }
  func.func @transform_6(%arg0: i32) -> (i32, i32, i32) {
    %c0_i32 = arith.constant 0 : i32
    %c0_i32_0 = arith.constant 0 : i32
    %c0_i32_1 = arith.constant 0 : i32
    return %arg0, %c0_i32, %c0_i32_0 : i32, i32, i32
  }
}

module attributes {stable_mosaic.version = 11 : i64} {
  func.func @_finalize_kernel(%arg0: i32, %arg1: i32, %arg2: memref<1x128x16xf32, #tpu.memory_space<vmem>>, %arg3: memref<1x128x16xf32, #tpu.memory_space<vmem>>, %arg4: memref<1x16xf32, #tpu.memory_space<vmem>>, %arg5: memref<1x16xf32, #tpu.memory_space<vmem>>, %arg6: memref<1x16xf32, #tpu.memory_space<vmem>>, %arg7: memref<1x16xf32, #tpu.memory_space<vmem>>, %arg8: memref<1x128x16xf32, #tpu.memory_space<vmem>>) attributes {dimension_semantics = [#tpu.dimension_semantics<parallel>, #tpu.dimension_semantics<parallel>], iteration_bounds = array<i64: 4, 2>, scalar_prefetch = 0 : i64, scratch_operands = 0 : i64, tpu.core_type = #tpu.core_type<tc>, window_params = [{transform_indices = @transform_0, window_bounds = array<i64: 1, 128, 16>}, {transform_indices = @transform_1, window_bounds = array<i64: 1, 128, 16>}, {pipeline_mode = #tpu.pipeline_mode<synchronous>, transform_indices = @transform_2, window_bounds = array<i64: 1, 16>}, {pipeline_mode = #tpu.pipeline_mode<synchronous>, transform_indices = @transform_3, window_bounds = array<i64: 1, 16>}, {pipeline_mode = #tpu.pipeline_mode<synchronous>, transform_indices = @transform_4, window_bounds = array<i64: 1, 16>}, {pipeline_mode = #tpu.pipeline_mode<synchronous>, transform_indices = @transform_5, window_bounds = array<i64: 1, 16>}, {transform_indices = @transform_6, window_bounds = array<i64: 1, 128, 16>}]} {
    %c0 = arith.constant 0 : index
    %c0_0 = arith.constant 0 : index
    %c0_1 = arith.constant 0 : index
    %0 = vector.load %arg2[%c0, %c0_0, %c0_1] : memref<1x128x16xf32, #tpu.memory_space<vmem>>, vector<1x128x16xf32>
    %1 = vector.shape_cast %0 : vector<1x128x16xf32> to vector<128x16xf32>
    %c0_2 = arith.constant 0 : index
    %c0_3 = arith.constant 0 : index
    %2 = vector.load %arg4[%c0_2, %c0_3] : memref<1x16xf32, #tpu.memory_space<vmem>>, vector<1x16xf32>
    %3 = vector.broadcast %2 : vector<1x16xf32> to vector<128x16xf32>
    %4 = arith.mulf %1, %3 : vector<128x16xf32>
    %c0_4 = arith.constant 0 : index
    %c0_5 = arith.constant 0 : index
    %5 = vector.load %arg5[%c0_4, %c0_5] : memref<1x16xf32, #tpu.memory_space<vmem>>, vector<1x16xf32>
    %6 = vector.broadcast %5 : vector<1x16xf32> to vector<128x16xf32>
    %7 = arith.addf %4, %6 : vector<128x16xf32>
    %c0_6 = arith.constant 0 : index
    %c0_7 = arith.constant 0 : index
    %c0_8 = arith.constant 0 : index
    %8 = vector.load %arg3[%c0_6, %c0_7, %c0_8] : memref<1x128x16xf32, #tpu.memory_space<vmem>>, vector<1x128x16xf32>
    %9 = vector.shape_cast %8 : vector<1x128x16xf32> to vector<128x16xf32>
    %c0_9 = arith.constant 0 : index
    %c0_10 = arith.constant 0 : index
    %10 = vector.load %arg6[%c0_9, %c0_10] : memref<1x16xf32, #tpu.memory_space<vmem>>, vector<1x16xf32>
    %11 = vector.broadcast %10 : vector<1x16xf32> to vector<128x16xf32>
    %12 = arith.mulf %9, %11 : vector<128x16xf32>
    %c0_11 = arith.constant 0 : index
    %c0_12 = arith.constant 0 : index
    %13 = vector.load %arg7[%c0_11, %c0_12] : memref<1x16xf32, #tpu.memory_space<vmem>>, vector<1x16xf32>
    %14 = vector.broadcast %13 : vector<1x16xf32> to vector<128x16xf32>
    %15 = arith.addf %12, %14 : vector<128x16xf32>
    %16 = arith.addf %7, %15 : vector<128x16xf32>
    %17 = math.exp %16 : vector<128x16xf32>
    %cst = arith.constant 2.000000e+00 : f32
    %18 = vector.broadcast %cst : f32 to vector<128x16xf32>
    %19 = arith.addf %17, %18 : vector<128x16xf32>
    %20 = arith.mulf %17, %19 : vector<128x16xf32>
    %cst_13 = arith.constant 2.000000e+00 : f32
    %21 = vector.broadcast %cst_13 : f32 to vector<128x16xf32>
    %22 = arith.addf %20, %21 : vector<128x16xf32>
    %23 = tpu.reciprocal %22 {approx = true} : vector<128x16xf32> -> vector<128x16xf32>
    %cst_14 = arith.constant 2.000000e+00 : f32
    %24 = vector.broadcast %cst_14 : f32 to vector<128x16xf32>
    %25 = arith.mulf %24, %23 : vector<128x16xf32>
    %cst_15 = arith.constant 1.000000e+00 : f32
    %26 = vector.broadcast %cst_15 : f32 to vector<128x16xf32>
    %27 = arith.subf %26, %25 : vector<128x16xf32>
    %28 = arith.mulf %16, %27 : vector<128x16xf32>
    %c0_16 = arith.constant 0 : index
    %c0_17 = arith.constant 0 : index
    %c0_18 = arith.constant 0 : index
    %29 = vector.load %arg8[%c0_16, %c0_17, %c0_18] : memref<1x128x16xf32, #tpu.memory_space<vmem>>, vector<1x128x16xf32>
    %30 = vector.shape_cast %29 : vector<1x128x16xf32> to vector<128x16xf32>
    %31 = vector.shape_cast %28 : vector<128x16xf32> to vector<1x128x16xf32>
    tpu.vector_store %arg8[%c0_16, %c0_17, %c0_18], %31 {strides = array<i32>} : memref<1x128x16xf32, #tpu.memory_space<vmem>>, vector<1x128x16xf32>,
    return
  }
  func.func @transform_0(%arg0: i32, %arg1: i32) -> (i32, i32, i32) {
    %c0_i32 = arith.constant 0 : i32
    %c0_i32_0 = arith.constant 0 : i32
    return %arg0, %arg1, %c0_i32 : i32, i32, i32
  }
  func.func @transform_1(%arg0: i32, %arg1: i32) -> (i32, i32, i32) {
    %c0_i32 = arith.constant 0 : i32
    %c0_i32_0 = arith.constant 0 : i32
    return %arg0, %arg1, %c0_i32 : i32, i32, i32
  }
  func.func @transform_2(%arg0: i32, %arg1: i32) -> (i32, i32) {
    %c0_i32 = arith.constant 0 : i32
    %c0_i32_0 = arith.constant 0 : i32
    %c0_i32_1 = arith.constant 0 : i32
    return %c0_i32, %c0_i32_0 : i32, i32
  }
  func.func @transform_3(%arg0: i32, %arg1: i32) -> (i32, i32) {
    %c0_i32 = arith.constant 0 : i32
    %c0_i32_0 = arith.constant 0 : i32
    %c0_i32_1 = arith.constant 0 : i32
    return %c0_i32, %c0_i32_0 : i32, i32
  }
  func.func @transform_4(%arg0: i32, %arg1: i32) -> (i32, i32) {
    %c0_i32 = arith.constant 0 : i32
    %c0_i32_0 = arith.constant 0 : i32
    %c0_i32_1 = arith.constant 0 : i32
    return %c0_i32, %c0_i32_0 : i32, i32
  }
  func.func @transform_5(%arg0: i32, %arg1: i32) -> (i32, i32) {
    %c0_i32 = arith.constant 0 : i32
    %c0_i32_0 = arith.constant 0 : i32
    %c0_i32_1 = arith.constant 0 : i32
    return %c0_i32, %c0_i32_0 : i32, i32
  }
  func.func @transform_6(%arg0: i32, %arg1: i32) -> (i32, i32, i32) {
    %c0_i32 = arith.constant 0 : i32
    %c0_i32_0 = arith.constant 0 : i32
    return %arg0, %arg1, %c0_i32 : i32, i32, i32
  }
}

module attributes {stable_mosaic.version = 11 : i64} {
  func.func @_stage2_kernel(%arg0: i32, %arg1: memref<1x256x16xf32, #tpu.memory_space<vmem>>, %arg2: memref<1x16xf32, #tpu.memory_space<vmem>>, %arg3: memref<1x16xf32, #tpu.memory_space<vmem>>, %arg4: memref<48x16xbf16, #tpu.memory_space<vmem>>, %arg5: memref<1x256x16xf32, #tpu.memory_space<vmem>>, %arg6: memref<1x2x16xf32, #tpu.memory_space<vmem>>) attributes {dimension_semantics = [#tpu.dimension_semantics<parallel>], iteration_bounds = array<i64: 4>, scalar_prefetch = 0 : i64, scratch_operands = 0 : i64, tpu.core_type = #tpu.core_type<tc>, window_params = [{transform_indices = @transform_0, window_bounds = array<i64: 1, 256, 16>}, {pipeline_mode = #tpu.pipeline_mode<synchronous>, transform_indices = @transform_1, window_bounds = array<i64: 1, 16>}, {pipeline_mode = #tpu.pipeline_mode<synchronous>, transform_indices = @transform_2, window_bounds = array<i64: 1, 16>}, {pipeline_mode = #tpu.pipeline_mode<synchronous>, transform_indices = @transform_3, window_bounds = array<i64: 48, 16>}, {transform_indices = @transform_4, window_bounds = array<i64: 1, 256, 16>}, {transform_indices = @transform_5, window_bounds = array<i64: 1, 2, 16>}]} {
    %c0 = arith.constant 0 : index
    %c0_0 = arith.constant 0 : index
    %c0_1 = arith.constant 0 : index
    %0 = vector.load %arg1[%c0, %c0_0, %c0_1] : memref<1x256x16xf32, #tpu.memory_space<vmem>>, vector<1x256x16xf32>
    %1 = vector.shape_cast %0 : vector<1x256x16xf32> to vector<256x16xf32>
    %c0_2 = arith.constant 0 : index
    %c0_3 = arith.constant 0 : index
    %2 = vector.load %arg2[%c0_2, %c0_3] : memref<1x16xf32, #tpu.memory_space<vmem>>, vector<1x16xf32>
    %3 = vector.broadcast %2 : vector<1x16xf32> to vector<256x16xf32>
    %4 = arith.mulf %1, %3 : vector<256x16xf32>
    %c0_4 = arith.constant 0 : index
    %c0_5 = arith.constant 0 : index
    %5 = vector.load %arg3[%c0_4, %c0_5] : memref<1x16xf32, #tpu.memory_space<vmem>>, vector<1x16xf32>
    %6 = vector.broadcast %5 : vector<1x16xf32> to vector<256x16xf32>
    %7 = arith.addf %4, %6 : vector<256x16xf32>
    %8 = math.exp %7 : vector<256x16xf32>
    %cst = arith.constant 2.000000e+00 : f32
    %9 = vector.broadcast %cst : f32 to vector<256x16xf32>
    %10 = arith.addf %8, %9 : vector<256x16xf32>
    %11 = arith.mulf %8, %10 : vector<256x16xf32>
    %cst_6 = arith.constant 2.000000e+00 : f32
    %12 = vector.broadcast %cst_6 : f32 to vector<256x16xf32>
    %13 = arith.addf %11, %12 : vector<256x16xf32>
    %14 = tpu.reciprocal %13 {approx = true} : vector<256x16xf32> -> vector<256x16xf32>
    %cst_7 = arith.constant 2.000000e+00 : f32
    %15 = vector.broadcast %cst_7 : f32 to vector<256x16xf32>
    %16 = arith.mulf %15, %14 : vector<256x16xf32>
    %cst_8 = arith.constant 1.000000e+00 : f32
    %17 = vector.broadcast %cst_8 : f32 to vector<256x16xf32>
    %18 = arith.subf %17, %16 : vector<256x16xf32>
    %19 = arith.mulf %7, %18 : vector<256x16xf32>
    %cst_9 = arith.constant 0.000000e+00 : f32
    %20 = vector.broadcast %cst_9 : f32 to vector<1x16xf32>
    %21 = vector.extract_strided_slice %19 {offsets = [0, 0], sizes = [255, 16], strides = [1, 1]} : vector<256x16xf32> to vector<255x16xf32>
    %22 = tpu.concatenate %20, %21 in 0 : vector<1x16xf32>, vector<255x16xf32> -> vector<256x16xf32>
    %23 = vector.extract_strided_slice %19 {offsets = [1, 0], sizes = [255, 16], strides = [1, 1]} : vector<256x16xf32> to vector<255x16xf32>
    %24 = tpu.concatenate %23, %20 in 0 : vector<255x16xf32>, vector<1x16xf32> -> vector<256x16xf32>
    %25 = tpu.concatenate %22, %19, %24 in 1 : vector<256x16xf32>, vector<256x16xf32>, vector<256x16xf32> -> vector<256x48xf32>
    %26 = arith.truncf %25 : vector<256x48xf32> to vector<256x48xbf16>
    %c0_10 = arith.constant 0 : index
    %c0_11 = arith.constant 0 : index
    %27 = vector.load %arg4[%c0_10, %c0_11] : memref<48x16xbf16, #tpu.memory_space<vmem>>, vector<48x16xbf16>
    %cst_12 = arith.constant dense<0.000000e+00> : vector<256x16xf32>
    %28 = tpu.matmul %26, %27, %cst_12 {dimension_numbers = #tpu.dot_dimension_numbers<[1], [0], [0], [1], [0, 0, 1, 1], [], []>} : vector<256x48xbf16>, vector<48x16xbf16>, vector<256x16xf32> -> vector<256x16xf32>
    %c0_13 = arith.constant 0 : index
    %c0_14 = arith.constant 0 : index
    %c0_15 = arith.constant 0 : index
    %29 = vector.load %arg5[%c0_13, %c0_14, %c0_15] : memref<1x256x16xf32, #tpu.memory_space<vmem>>, vector<1x256x16xf32>
    %30 = vector.shape_cast %29 : vector<1x256x16xf32> to vector<256x16xf32>
    %31 = vector.shape_cast %28 : vector<256x16xf32> to vector<1x256x16xf32>
    tpu.vector_store %arg5[%c0_13, %c0_14, %c0_15], %31 {strides = array<i32>} : memref<1x256x16xf32, #tpu.memory_space<vmem>>, vector<1x256x16xf32>,
    %cst_16 = arith.constant dense<0.000000e+00> : vector<16xf32>
    %32 = vector.multi_reduction <add>, %28, %cst_16 [0] : vector<256x16xf32> to vector<16xf32>
    %33 = vector.shape_cast %32 : vector<16xf32> to vector<1x16xf32>
    %34 = arith.mulf %28, %28 : vector<256x16xf32>
    %cst_17 = arith.constant dense<0.000000e+00> : vector<16xf32>
    %35 = vector.multi_reduction <add>, %34, %cst_17 [0] : vector<256x16xf32> to vector<16xf32>
    %36 = vector.shape_cast %35 : vector<16xf32> to vector<1x16xf32>
    %37 = tpu.concatenate %33, %36 in 0 : vector<1x16xf32>, vector<1x16xf32> -> vector<2x16xf32>
    %c0_18 = arith.constant 0 : index
    %c0_19 = arith.constant 0 : index
    %c0_20 = arith.constant 0 : index
    %38 = vector.load %arg6[%c0_18, %c0_19, %c0_20] : memref<1x2x16xf32, #tpu.memory_space<vmem>>, vector<1x2x16xf32>
    %39 = vector.shape_cast %38 : vector<1x2x16xf32> to vector<2x16xf32>
    %40 = vector.shape_cast %37 : vector<2x16xf32> to vector<1x2x16xf32>
    tpu.vector_store %arg6[%c0_18, %c0_19, %c0_20], %40 {strides = array<i32>} : memref<1x2x16xf32, #tpu.memory_space<vmem>>, vector<1x2x16xf32>,
    return
  }
  func.func @transform_0(%arg0: i32) -> (i32, i32, i32) {
    %c0_i32 = arith.constant 0 : i32
    %c0_i32_0 = arith.constant 0 : i32
    %c0_i32_1 = arith.constant 0 : i32
    return %arg0, %c0_i32, %c0_i32_0 : i32, i32, i32
  }
  func.func @transform_1(%arg0: i32) -> (i32, i32) {
    %c0_i32 = arith.constant 0 : i32
    %c0_i32_0 = arith.constant 0 : i32
    %c0_i32_1 = arith.constant 0 : i32
    return %c0_i32, %c0_i32_0 : i32, i32
  }
  func.func @transform_2(%arg0: i32) -> (i32, i32) {
    %c0_i32 = arith.constant 0 : i32
    %c0_i32_0 = arith.constant 0 : i32
    %c0_i32_1 = arith.constant 0 : i32
    return %c0_i32, %c0_i32_0 : i32, i32
  }
  func.func @transform_3(%arg0: i32) -> (i32, i32) {
    %c0_i32 = arith.constant 0 : i32
    %c0_i32_0 = arith.constant 0 : i32
    %c0_i32_1 = arith.constant 0 : i32
    return %c0_i32, %c0_i32_0 : i32, i32
  }
  func.func @transform_4(%arg0: i32) -> (i32, i32, i32) {
    %c0_i32 = arith.constant 0 : i32
    %c0_i32_0 = arith.constant 0 : i32
    %c0_i32_1 = arith.constant 0 : i32
    return %arg0, %c0_i32, %c0_i32_0 : i32, i32, i32
  }
  func.func @transform_5(%arg0: i32) -> (i32, i32, i32) {
    %c0_i32 = arith.constant 0 : i32
    %c0_i32_0 = arith.constant 0 : i32
    %c0_i32_1 = arith.constant 0 : i32
    return %arg0, %c0_i32, %c0_i32_0 : i32, i32, i32
  }
}

</mosaic_0001>

<llo_original>
// kernel: residual_block.5
$region0: #{residual_block.5}
  #allocation0 [shape = 'u32[]', space=smem, size = 0x4, offset = 0x4, fixed_abs, tag = 'smem constant byte address 0x4 - core index']
  #allocation1 [shape = 'u32[144,128]{1,0:T(1,128)}', space=vmem, size = 0x12000, scoped, tag = 'internal scratch']
  %s0 = inlined_call_operand.vmem [shape: f32[4,256,16], index: 0, kind: input, shape index: {}]
  %s1 = inlined_call_operand.vmem [shape: f32[4,256,16], index: 1, kind: input, shape index: {}]
  %s2 = inlined_call_operand.vmem [shape: f32[1,16], index: 2, kind: input, shape index: {}]
  %s3 = inlined_call_operand.vmem [shape: f32[1,16], index: 3, kind: input, shape index: {}]
  %s4 = inlined_call_operand.vmem [shape: f32[1,16], index: 4, kind: input, shape index: {}]
  %s5 = inlined_call_operand.vmem [shape: f32[1,16], index: 5, kind: input, shape index: {}]
  %s6 = inlined_call_operand.vmem [shape: f32[4,256,16], index: 6, kind: output, shape index: {}]
  %s7 = sld [smem:[#allocation0]]
  $region57: #{residual_block.5} parent=0
    _
  %s9 = ssub.s32 1, %s7
  %s10 = scalar_select 0, %s9, %s7
  loop: start=0, step=1, limit=10
  $region2: #{residual_block.5} parent=0 // loop_pre_header
    _
  $region3: #{residual_block.5} parent=0 // loop_header
    %s12 = sphi 0, %s16
    %p13 = scmp.ge.s32.totalorder %s12, 10
    %s19 = sphi 0, %s31
    %s20 = sphi 0, %s27
    %s21 = sphi 0, %s19
    %s22 = sphi 0, %s20
    %s23 = sphi 0, %s21
    %s24 = sphi 0, %s22
    %s36 = sphi 0, %s38
    %s39 = sphi 0, %s36
    %s40 = sphi 0, %s39
    %s56 = sphi 0, %s40
    %s64 = sphi 0, %s66
    %s67 = sphi 0, %s64
    %s68 = sphi 0, %s67
    %s84 = sphi 0, %s68
    %s88 = sphi 0, %s88
    %s90 = sphi 0, %s88
    %s91 = sphi 0, %s90
    %s105 = sphi 0, %s91
    %s109 = sphi 0, %s109
    %s111 = sphi 0, %s109
    %s112 = sphi 0, %s111
    %s126 = sphi 0, %s112
    %s130 = sphi 0, %s130
    %s132 = sphi 0, %s130
    %s133 = sphi 0, %s132
    %s147 = sphi 0, %s133
    %s151 = sphi 0, %s151
    %s153 = sphi 0, %s151
    %s154 = sphi 0, %s153
    %s168 = sphi 0, %s154
    %s176 = sphi 0, %s178
    %s179 = sphi 0, %s176
    %s180 = sphi 0, %s179
    %s196 = sphi 0, %s180
  $region4: #{residual_block.5} parent=0 // loop_header_branch
    %15 = sbr.rel (%p13) target = $region8
  $region5: #{residual_block.5} parent=0 // loop_body
    %s17 = ssub.s32 %s12, 1
    %s18 = ssub.s32 %s12, 2
    %s25 = sadd.s32 1, %s20
    %p26 = scmp.ge.s32.totalorder %s25, 2
    %s27 = scalar_select %p26, 0, %s25
    %s28 = sadd.s32 1, %s19
    %s29 = scalar_select %p26, %s28, %s19
    %p30 = scmp.ge.s32.totalorder %s29, 4
    %s31 = scalar_select %p30, 0, %s29
    %s32 = ssub.s32 %s19, %s31
    %s33 = ssub.s32 %s20, %s27
    %s34 = sor.u32 %s32, %s33
    %p35 = scmp.eq.s32.totalorder %s34, 0
    %s37 = sadd.s32 %s36, 1
    %s38 = scalar_select %p35, %s36, %s37
    %p41 = pneg %p35
    %p42 = scmp.eq.s32.totalorder %s12, 7
    %p43 = por %p41, %p42
    %p44 = scmp.ne.s32.totalorder %s36, %s39
    %p45 = scmp.eq.s32.totalorder %s12, 0
    %p46 = por %p44, %p45
    %p47 = scmp.ne.s32.totalorder %s36, %s39
    %p48 = scmp.eq.s32.totalorder %s17, 7
    %p49 = por %p47, %p48
    %p50 = scmp.ne.s32.totalorder %s39, %s40
    %p51 = scmp.eq.s32.totalorder %s17, 0
    %p52 = por %p50, %p51
    %p53 = scmp.ne.s32.totalorder %s39, %s40
    %p54 = scmp.eq.s32.totalorder %s18, 7
    %p55 = por %p53, %p54
    %p57 = scmp.ne.s32.totalorder %s40, %s56
    %p58 = scmp.eq.s32.totalorder %s18, 0
    %p59 = por %p57, %p58
    %s60 = ssub.s32 %s19, %s31
    %s61 = ssub.s32 %s20, %s27
    %s62 = sor.u32 %s60, %s61
    %p63 = scmp.eq.s32.totalorder %s62, 0
    %s65 = sadd.s32 %s64, 1
    %s66 = scalar_select %p63, %s64, %s65
    %p69 = pneg %p63
    %p70 = scmp.eq.s32.totalorder %s12, 7
    %p71 = por %p69, %p70
    %p72 = scmp.ne.s32.totalorder %s64, %s67
    %p73 = scmp.eq.s32.totalorder %s12, 0
    %p74 = por %p72, %p73
    %p75 = scmp.ne.s32.totalorder %s64, %s67
    %p76 = scmp.eq.s32.totalorder %s17, 7
    %p77 = por %p75, %p76
    %p78 = scmp.ne.s32.totalorder %s67, %s68
    %p79 = scmp.eq.s32.totalorder %s17, 0
    %p80 = por %p78, %p79
    %p81 = scmp.ne.s32.totalorder %s67, %s68
    %p82 = scmp.eq.s32.totalorder %s18, 7
    %p83 = por %p81, %p82
    %p85 = scmp.ne.s32.totalorder %s68, %s84
    %p86 = scmp.eq.s32.totalorder %s18, 0
    %p87 = por %p85, %p86
    %s89 = sadd.s32 %s88, 1
    %p92 = scmp.eq.s32.totalorder %s12, 7
    %p93 = scmp.ne.s32.totalorder %s88, %s90
    %p94 = scmp.eq.s32.totalorder %s12, 0
    %p95 = por %p93, %p94
    %p96 = scmp.ne.s32.totalorder %s88, %s90
    %p97 = scmp.eq.s32.totalorder %s17, 7
    %p98 = por %p96, %p97
    %p99 = scmp.ne.s32.totalorder %s90, %s91
    %p100 = scmp.eq.s32.totalorder %s17, 0
    %p101 = por %p99, %p100
    %p102 = scmp.ne.s32.totalorder %s90, %s91
    %p103 = scmp.eq.s32.totalorder %s18, 7
    %p104 = por %p102, %p103
    %p106 = scmp.ne.s32.totalorder %s91, %s105
    %p107 = scmp.eq.s32.totalorder %s18, 0
    %p108 = por %p106, %p107
    %s110 = sadd.s32 %s109, 1
    %p113 = scmp.eq.s32.totalorder %s12, 7
    %p114 = scmp.ne.s32.totalorder %s109, %s111
    %p115 = scmp.eq.s32.totalorder %s12, 0
    %p116 = por %p114, %p115
    %p117 = scmp.ne.s32.totalorder %s109, %s111
    %p118 = scmp.eq.s32.totalorder %s17, 7
    %p119 = por %p117, %p118
    %p120 = scmp.ne.s32.totalorder %s111, %s112
    %p121 = scmp.eq.s32.totalorder %s17, 0
    %p122 = por %p120, %p121
    %p123 = scmp.ne.s32.totalorder %s111, %s112
    %p124 = scmp.eq.s32.totalorder %s18, 7
    %p125 = por %p123, %p124
    %p127 = scmp.ne.s32.totalorder %s112, %s126
    %p128 = scmp.eq.s32.totalorder %s18, 0
    %p129 = por %p127, %p128
    %s131 = sadd.s32 %s130, 1
    %p134 = scmp.eq.s32.totalorder %s12, 7
    %p135 = scmp.ne.s32.totalorder %s130, %s132
    %p136 = scmp.eq.s32.totalorder %s12, 0
    %p137 = por %p135, %p136
    %p138 = scmp.ne.s32.totalorder %s130, %s132
    %p139 = scmp.eq.s32.totalorder %s17, 7
    %p140 = por %p138, %p139
    %p141 = scmp.ne.s32.totalorder %s132, %s133
    %p142 = scmp.eq.s32.totalorder %s17, 0
    %p143 = por %p141, %p142
    %p144 = scmp.ne.s32.totalorder %s132, %s133
    %p145 = scmp.eq.s32.totalorder %s18, 7
    %p146 = por %p144, %p145
    %p148 = scmp.ne.s32.totalorder %s133, %s147
    %p149 = scmp.eq.s32.totalorder %s18, 0
    %p150 = por %p148, %p149
    %s152 = sadd.s32 %s151, 1
    %p155 = scmp.eq.s32.totalorder %s12, 7
    %p156 = scmp.ne.s32.totalorder %s151, %s153
    %p157 = scmp.eq.s32.totalorder %s12, 0
    %p158 = por %p156, %p157
    %p159 = scmp.ne.s32.totalorder %s151, %s153
    %p160 = scmp.eq.s32.totalorder %s17, 7
    %p161 = por %p159, %p160
    %p162 = scmp.ne.s32.totalorder %s153, %s154
    %p163 = scmp.eq.s32.totalorder %s17, 0
    %p164 = por %p162, %p163
    %p165 = scmp.ne.s32.totalorder %s153, %s154
    %p166 = scmp.eq.s32.totalorder %s18, 7
    %p167 = por %p165, %p166
    %p169 = scmp.ne.s32.totalorder %s154, %s168
    %p170 = scmp.eq.s32.totalorder %s18, 0
    %p171 = por %p169, %p170
    %s172 = ssub.s32 %s19, %s31
    %s173 = ssub.s32 %s20, %s27
    %s174 = sor.u32 %s172, %s173
    %p175 = scmp.eq.s32.totalorder %s174, 0
    %s177 = sadd.s32 %s176, 1
    %s178 = scalar_select %p175, %s176, %s177
    %p181 = pneg %p175
    %p182 = scmp.eq.s32.totalorder %s12, 7
    %p183 = por %p181, %p182
    %p184 = scmp.ne.s32.totalorder %s176, %s179
    %p185 = scmp.eq.s32.totalorder %s12, 0
    %p186 = por %p184, %p185
    %p187 = scmp.ne.s32.totalorder %s176, %s179
    %p188 = scmp.eq.s32.totalorder %s17, 7
    %p189 = por %p187, %p188
    %p190 = scmp.ne.s32.totalorder %s179, %s180
    %p191 = scmp.eq.s32.totalorder %s17, 0
    %p192 = por %p190, %p191
    %p193 = scmp.ne.s32.totalorder %s179, %s180
    %p194 = scmp.eq.s32.totalorder %s18, 7
    %p195 = por %p193, %p194
    %p197 = scmp.ne.s32.totalorder %s180, %s196
    %p198 = scmp.eq.s32.totalorder %s18, 0
    %p199 = por %p197, %p198
    %p200 = scmp.le.s32.totalorder 1, %s12
    %p201 = scmp.lt.s32.totalorder %s12, 9
    %p202 = pnand %p200, %p201
    %p203 = pneg %p202
    // Predicated region
    $region9: #{residual_block.5} parent=5 // pred_check
      _
    $region10: #{residual_block.5} parent=5 // pred_check_branch
      %205 = sbr.rel (%p202) target = $region12
    $region11: #{residual_block.5} parent=5 // pred_region
      %s206 = ssub.s32 %s12, 1
      // Predicated region
      $region13: #{residual_block.5} parent=11 // pred_check
        %p207 = pneg %p101
      $region14: #{residual_block.5} parent=11 // pred_check_branch
        %209 = sbr.rel (%p207) target = $region16
      $region15: #{residual_block.5} parent=11 // pred_region
        _
      $region16: #{residual_block.5} parent=11 // pred_fallthru
        _
      // Predicated region
      $region17: #{residual_block.5} parent=11 // pred_check
        %p210 = pneg %p122
      $region18: #{residual_block.5} parent=11 // pred_check_branch
        %212 = sbr.rel (%p210) target = $region20
      $region19: #{residual_block.5} parent=11 // pred_region
        _
      $region20: #{residual_block.5} parent=11 // pred_fallthru
        _
      // Predicated region
      $region21: #{residual_block.5} parent=11 // pred_check
        %p213 = pneg %p143
      $region22: #{residual_block.5} parent=11 // pred_check_branch
        %215 = sbr.rel (%p213) target = $region24
      $region23: #{residual_block.5} parent=11 // pred_region
        _
      $region24: #{residual_block.5} parent=11 // pred_fallthru
        _
      // Predicated region
      $region25: #{residual_block.5} parent=11 // pred_check
        %p216 = pneg %p164
      $region26: #{residual_block.5} parent=11 // pred_check_branch
        %218 = sbr.rel (%p216) target = $region28
      $region27: #{residual_block.5} parent=11 // pred_region
        _
      $region28: #{residual_block.5} parent=11 // pred_fallthru
        _
    $region12: #{residual_block.5} parent=5 // pred_fallthru
      _
    %p219 = scmp.lt.s32.totalorder %s12, 8
    // Predicated region
    $region29: #{residual_block.5} parent=5 // pred_check
      %p220 = pneg %p219
    $region30: #{residual_block.5} parent=5 // pred_check_branch
      %222 = sbr.rel (%p220) target = $region32
    $region31: #{residual_block.5} parent=5 // pred_region
      // Predicated region
      $region33: #{residual_block.5} parent=31 // pred_check
        %p223 = pneg %p46
      $region34: #{residual_block.5} parent=31 // pred_check_branch
        %225 = sbr.rel (%p223) target = $region36
      $region35: #{residual_block.5} parent=31 // pred_region
        %s226 = smul.u32 16, %s20
        %p227 = scmp.lt.s32.totalorder %s19, 3
        %s228 = scalar_select %p227, %s19, 3
        %p229 = scmp.lt.s32.totalorder %s226, 31
        %s230 = scalar_select %p229, %s226, 31
        %s231 = smul.addr %s228, 32
        %s232 = sadd.s32 %s230, %s231
        %s233 = smul.addr %s232, 8
        %s234 = scalar_lea.vmem %s0, %s233
        %s235 = smul.u32 16, %s20
      $region36: #{residual_block.5} parent=31 // pred_fallthru
        _
      // Predicated region
      $region37: #{residual_block.5} parent=31 // pred_check
        %p236 = pneg %p74
      $region38: #{residual_block.5} parent=31 // pred_check_branch
        %238 = sbr.rel (%p236) target = $region40
      $region39: #{residual_block.5} parent=31 // pred_region
        %s239 = smul.u32 16, %s20
        %p240 = scmp.lt.s32.totalorder %s19, 3
        %s241 = scalar_select %p240, %s19, 3
        %p242 = scmp.lt.s32.totalorder %s239, 31
        %s243 = scalar_select %p242, %s239, 31
        %s244 = smul.addr %s241, 32
        %s245 = sadd.s32 %s243, %s244
        %s246 = smul.addr %s245, 8
        %s247 = scalar_lea.vmem %s1, %s246
        %s248 = smul.u32 16, %s20
      $region40: #{residual_block.5} parent=31 // pred_fallthru
        _
    $region32: #{residual_block.5} parent=5 // pred_fallthru
      _
    %p249 = scmp.le.s32.totalorder 1, %s12
    %p250 = scmp.lt.s32.totalorder %s12, 9
    %p251 = pnand %p249, %p250
    %p252 = pneg %p251
    // Predicated region
    $region41: #{residual_block.5} parent=5 // pred_check
      _
    $region42: #{residual_block.5} parent=5 // pred_check_branch
      %254 = sbr.rel (%p251) target = $region44
    $region43: #{residual_block.5} parent=5 // pred_region
      %s255 = ssub.s32 %s12, 1
      %s256 = smul.u32 16, %s22
      %p257 = scmp.lt.s32.totalorder %s21, 3
      %s258 = scalar_select %p257, %s21, 3
      %p259 = scmp.lt.s32.totalorder %s256, 31
      %s260 = scalar_select %p259, %s256, 31
      %s261 = smul.addr %s258, 32
      %s262 = sadd.s32 %s260, %s261
      %s263 = smul.addr %s262, 8
      %s264 = scalar_lea.vmem %s0, %s263
      %p265 = pneg %p52
      %p266 = pneg %p49
      %s267 = smul.u32 16, %s22
      %p268 = scmp.lt.s32.totalorder %s21, 3
      %s269 = scalar_select %p268, %s21, 3
      %p270 = scmp.lt.s32.totalorder %s267, 31
      %s271 = scalar_select %p270, %s267, 31
      %s272 = smul.addr %s269, 32
      %s273 = sadd.s32 %s271, %s272
      %s274 = smul.addr %s273, 8
      %s275 = scalar_lea.vmem %s1, %s274
      %p276 = pneg %p80
      %p277 = pneg %p77
      %p278 = pneg %p101
      %p279 = pneg %p98
      %p280 = pneg %p122
      %p281 = pneg %p119
      %p282 = pneg %p143
      %p283 = pneg %p140
      %p284 = pneg %p164
      %p285 = pneg %p161
      %p286 = pneg %p192
      %p287 = pneg %p189
      %s288 = smul.u32 16, %s22
      %p289 = scmp.lt.s32.totalorder %s21, 3
      %s290 = scalar_select %p289, %s21, 3
      %p291 = scmp.lt.s32.totalorder %s288, 31
      %s292 = scalar_select %p291, %s288, 31
      %s293 = smul.addr %s290, 32
      %s294 = sadd.s32 %s292, %s293
      %s295 = smul.addr %s294, 8
      %s296 = scalar_lea.vmem %s6, %s295
      %s297 = smul.u32 16, %s22
      %p298 = scmp.lt.s32.totalorder %s21, 3
      %s299 = scalar_select %p298, %s21, 3
      %p300 = scmp.lt.s32.totalorder %s297, 31
      %s301 = scalar_select %p300, %s297, 31
      %s302 = smul.addr %s299, 32
      %s303 = sadd.s32 %s301, %s302
      %s304 = smul.addr %s303, 8
      %s305 = scalar_lea.vmem %s0, %s304
      %s306 = smul.u32 16, %s22
      %s307 = smul.u32 16, %s22
      %p308 = scmp.lt.s32.totalorder %s21, 3
      %s309 = scalar_select %p308, %s21, 3
      %p310 = scmp.lt.s32.totalorder %s307, 31
      %s311 = scalar_select %p310, %s307, 31
      %s312 = smul.addr %s309, 32
      %s313 = sadd.s32 %s311, %s312
      %s314 = smul.addr %s313, 8
      %s315 = scalar_lea.vmem %s1, %s314
      %s316 = smul.u32 16, %s22
      %s317 = smul.u32 16, %s22
      %p318 = scmp.lt.s32.totalorder %s21, 3
      %s319 = scalar_select %p318, %s21, 3
      %p320 = scmp.lt.s32.totalorder %s317, 31
      %s321 = scalar_select %p320, %s317, 31
      %s322 = smul.addr %s319, 32
      %s323 = sadd.s32 %s321, %s322
      %s324 = smul.addr %s323, 8
      %s325 = scalar_lea.vmem %s6, %s324
      %s326 = smul.u32 16, %s22
      %v327 = vld [vmem:[%s305] sm:$0xff]
      %v328 = vld [vmem:[%s305 + $0x8] sm:$0xff]
      %v329 = vld [vmem:[%s305 + $0x10] sm:$0xff]
      %v330 = vld [vmem:[%s305 + $0x18] sm:$0xff]
      %v331 = vld [vmem:[%s305 + $0x20] sm:$0xff]
      %v332 = vld [vmem:[%s305 + $0x28] sm:$0xff]
      %v333 = vld [vmem:[%s305 + $0x30] sm:$0xff]
      %v334 = vld [vmem:[%s305 + $0x38] sm:$0xff]
      %v335 = vld [vmem:[%s305 + $0x40] sm:$0xff]
      %v336 = vld [vmem:[%s305 + $0x48] sm:$0xff]
      %v337 = vld [vmem:[%s305 + $0x50] sm:$0xff]
      %v338 = vld [vmem:[%s305 + $0x58] sm:$0xff]
      %v339 = vld [vmem:[%s305 + $0x60] sm:$0xff]
      %v340 = vld [vmem:[%s305 + $0x68] sm:$0xff]
      %v341 = vld [vmem:[%s305 + $0x70] sm:$0xff]
      %v342 = vld [vmem:[%s305 + $0x78] sm:$0xff]
      %v343 = vld [vmem:[%s2] sm:$0x1]
      %v345 = vlaneseq
      %v346 = vshrl.u32 %v345, 7
      %v347 = vsub.s32 0, %v346
      %v348 = vrot.slane %v343, %v347
      %v350 = vmul.f32 %v327, %v348
      %v351 = vmul.f32 %v328, %v348
      %v352 = vmul.f32 %v329, %v348
      %v353 = vmul.f32 %v330, %v348
      %v354 = vmul.f32 %v331, %v348
      %v355 = vmul.f32 %v332, %v348
      %v356 = vmul.f32 %v333, %v348
      %v357 = vmul.f32 %v334, %v348
      %v358 = vmul.f32 %v335, %v348
      %v359 = vmul.f32 %v336, %v348
      %v360 = vmul.f32 %v337, %v348
      %v361 = vmul.f32 %v338, %v348
      %v362 = vmul.f32 %v339, %v348
      %v363 = vmul.f32 %v340, %v348
      %v364 = vmul.f32 %v341, %v348
      %v365 = vmul.f32 %v342, %v348
      %v366 = vld [vmem:[%s3] sm:$0x1]
      %v368 = vlaneseq
      %v369 = vshrl.u32 %v368, 7
      %v370 = vsub.s32 0, %v369
      %v371 = vrot.slane %v366, %v370
      %v373 = vadd.f32 %v350, %v371
      %v374 = vadd.f32 %v351, %v371
      %v375 = vadd.f32 %v352, %v371
      %v376 = vadd.f32 %v353, %v371
      %v377 = vadd.f32 %v354, %v371
      %v378 = vadd.f32 %v355, %v371
      %v379 = vadd.f32 %v356, %v371
      %v380 = vadd.f32 %v357, %v371
      %v381 = vadd.f32 %v358, %v371
      %v382 = vadd.f32 %v359, %v371
      %v383 = vadd.f32 %v360, %v371
      %v384 = vadd.f32 %v361, %v371
      %v385 = vadd.f32 %v362, %v371
      %v386 = vadd.f32 %v363, %v371
      %v387 = vadd.f32 %v364, %v371
      %v388 = vadd.f32 %v365, %v371
      %v389 = vld [vmem:[%s315] sm:$0xff]
      %v390 = vld [vmem:[%s315 + $0x8] sm:$0xff]
      %v391 = vld [vmem:[%s315 + $0x10] sm:$0xff]
      %v392 = vld [vmem:[%s315 + $0x18] sm:$0xff]
      %v393 = vld [vmem:[%s315 + $0x20] sm:$0xff]
      %v394 = vld [vmem:[%s315 + $0x28] sm:$0xff]
      %v395 = vld [vmem:[%s315 + $0x30] sm:$0xff]
      %v396 = vld [vmem:[%s315 + $0x38] sm:$0xff]
      %v397 = vld [vmem:[%s315 + $0x40] sm:$0xff]
      %v398 = vld [vmem:[%s315 + $0x48] sm:$0xff]
      %v399 = vld [vmem:[%s315 + $0x50] sm:$0xff]
      %v400 = vld [vmem:[%s315 + $0x58] sm:$0xff]
      %v401 = vld [vmem:[%s315 + $0x60] sm:$0xff]
      %v402 = vld [vmem:[%s315 + $0x68] sm:$0xff]
      %v403 = vld [vmem:[%s315 + $0x70] sm:$0xff]
      %v404 = vld [vmem:[%s315 + $0x78] sm:$0xff]
      %v405 = vld [vmem:[%s4] sm:$0x1]
      %v407 = vlaneseq
      %v408 = vshrl.u32 %v407, 7
      %v409 = vsub.s32 0, %v408
      %v410 = vrot.slane %v405, %v409
      %v412 = vmul.f32 %v389, %v410
      %v413 = vmul.f32 %v390, %v410
      %v414 = vmul.f32 %v391, %v410
      %v415 = vmul.f32 %v392, %v410
      %v416 = vmul.f32 %v393, %v410
      %v417 = vmul.f32 %v394, %v410
      %v418 = vmul.f32 %v395, %v410
      %v419 = vmul.f32 %v396, %v410
      %v420 = vmul.f32 %v397, %v410
      %v421 = vmul.f32 %v398, %v410
      %v422 = vmul.f32 %v399, %v410
      %v423 = vmul.f32 %v400, %v410
      %v424 = vmul.f32 %v401, %v410
      %v425 = vmul.f32 %v402, %v410
      %v426 = vmul.f32 %v403, %v410
      %v427 = vmul.f32 %v404, %v410
      %v428 = vld [vmem:[%s5] sm:$0x1]
      %v430 = vlaneseq
      %v431 = vshrl.u32 %v430, 7
      %v432 = vsub.s32 0, %v431
      %v433 = vrot.slane %v428, %v432
      %v435 = vadd.f32 %v412, %v433
      %v436 = vadd.f32 %v413, %v433
      %v437 = vadd.f32 %v414, %v433
      %v438 = vadd.f32 %v415, %v433
      %v439 = vadd.f32 %v416, %v433
      %v440 = vadd.f32 %v417, %v433
      %v441 = vadd.f32 %v418, %v433
      %v442 = vadd.f32 %v419, %v433
      %v443 = vadd.f32 %v420, %v433
      %v444 = vadd.f32 %v421, %v433
      %v445 = vadd.f32 %v422, %v433
      %v446 = vadd.f32 %v423, %v433
      %v447 = vadd.f32 %v424, %v433
      %v448 = vadd.f32 %v425, %v433
      %v449 = vadd.f32 %v426, %v433
      %v450 = vadd.f32 %v427, %v433
      %v451 = vadd.f32 %v373, %v435
      %v452 = vadd.f32 %v374, %v436
      %v453 = vadd.f32 %v375, %v437
      %v454 = vadd.f32 %v376, %v438
      %v455 = vadd.f32 %v377, %v439
      %v456 = vadd.f32 %v378, %v440
      %v457 = vadd.f32 %v379, %v441
      %v458 = vadd.f32 %v380, %v442
      %v459 = vadd.f32 %v381, %v443
      %v460 = vadd.f32 %v382, %v444
      %v461 = vadd.f32 %v383, %v445
      %v462 = vadd.f32 %v384, %v446
      %v463 = vadd.f32 %v385, %v447
      %v464 = vadd.f32 %v386, %v448
      %v465 = vadd.f32 %v387, %v449
      %v466 = vadd.f32 %v388, %v450
      %v467 = vmul.f32 %v451, 1.442695
      %v468 = vpow.pop %v467
      %v469 = vmul.f32 %v452, 1.442695
      %v470 = vpow.pop %v469
      %v471 = vmul.f32 %v453, 1.442695
      %v472 = vpow.pop %v471
      %v473 = vmul.f32 %v454, 1.442695
      %v474 = vpow.pop %v473
      %v475 = vmul.f32 %v455, 1.442695
      %v476 = vpow.pop %v475
      %v477 = vmul.f32 %v456, 1.442695
      %v478 = vpow.pop %v477
      %v479 = vmul.f32 %v457, 1.442695
      %v480 = vpow.pop %v479
      %v481 = vmul.f32 %v458, 1.442695
      %v482 = vpow.pop %v481
      %v483 = vmul.f32 %v459, 1.442695
      %v484 = vpow.pop %v483
      %v485 = vmul.f32 %v460, 1.442695
      %v486 = vpow.pop %v485
      %v487 = vmul.f32 %v461, 1.442695
      %v488 = vpow.pop %v487
      %v489 = vmul.f32 %v462, 1.442695
      %v490 = vpow.pop %v489
      %v491 = vmul.f32 %v463, 1.442695
      %v492 = vpow.pop %v491
      %v493 = vmul.f32 %v464, 1.442695
      %v494 = vpow.pop %v493
      %v495 = vmul.f32 %v465, 1.442695
      %v496 = vpow.pop %v495
      %v497 = vmul.f32 %v466, 1.442695
      %v498 = vpow.pop %v497
      %v499 = vadd.f32 %v468, 2.0
      %v500 = vadd.f32 %v470, 2.0
      %v501 = vadd.f32 %v472, 2.0
      %v502 = vadd.f32 %v474, 2.0
      %v503 = vadd.f32 %v476, 2.0
      %v504 = vadd.f32 %v478, 2.0
      %v505 = vadd.f32 %v480, 2.0
      %v506 = vadd.f32 %v482, 2.0
      %v507 = vadd.f32 %v484, 2.0
      %v508 = vadd.f32 %v486, 2.0
      %v509 = vadd.f32 %v488, 2.0
      %v510 = vadd.f32 %v490, 2.0
      %v511 = vadd.f32 %v492, 2.0
      %v512 = vadd.f32 %v494, 2.0
      %v513 = vadd.f32 %v496, 2.0
      %v514 = vadd.f32 %v498, 2.0
      %v515 = vmul.f32 %v468, %v499
      %v516 = vmul.f32 %v470, %v500
      %v517 = vmul.f32 %v472, %v501
      %v518 = vmul.f32 %v474, %v502
      %v519 = vmul.f32 %v476, %v503
      %v520 = vmul.f32 %v478, %v504
      %v521 = vmul.f32 %v480, %v505
      %v522 = vmul.f32 %v482, %v506
      %v523 = vmul.f32 %v484, %v507
      %v524 = vmul.f32 %v486, %v508
      %v525 = vmul.f32 %v488, %v509
      %v526 = vmul.f32 %v490, %v510
      %v527 = vmul.f32 %v492, %v511
      %v528 = vmul.f32 %v494, %v512
      %v529 = vmul.f32 %v496, %v513
      %v530 = vmul.f32 %v498, %v514
      %v531 = vadd.f32 %v515, 2.0
      %v532 = vadd.f32 %v516, 2.0
      %v533 = vadd.f32 %v517, 2.0
      %v534 = vadd.f32 %v518, 2.0
      %v535 = vadd.f32 %v519, 2.0
      %v536 = vadd.f32 %v520, 2.0
      %v537 = vadd.f32 %v521, 2.0
      %v538 = vadd.f32 %v522, 2.0
      %v539 = vadd.f32 %v523, 2.0
      %v540 = vadd.f32 %v524, 2.0
      %v541 = vadd.f32 %v525, 2.0
      %v542 = vadd.f32 %v526, 2.0
      %v543 = vadd.f32 %v527, 2.0
      %v544 = vadd.f32 %v528, 2.0
      %v545 = vadd.f32 %v529, 2.0
      %v546 = vadd.f32 %v530, 2.0
      %v547 = vrcp.pop %v531
      %v548 = vrcp.pop %v532
      %v549 = vrcp.pop %v533
      %v550 = vrcp.pop %v534
      %v551 = vrcp.pop %v535
      %v552 = vrcp.pop %v536
      %v553 = vrcp.pop %v537
      %v554 = vrcp.pop %v538
      %v555 = vrcp.pop %v539
      %v556 = vrcp.pop %v540
      %v557 = vrcp.pop %v541
      %v558 = vrcp.pop %v542
      %v559 = vrcp.pop %v543
      %v560 = vrcp.pop %v544
      %v561 = vrcp.pop %v545
      %v562 = vrcp.pop %v546
      %v563 = vmul.f32 %v547, 2.0
      %v564 = vmul.f32 %v548, 2.0
      %v565 = vmul.f32 %v549, 2.0
      %v566 = vmul.f32 %v550, 2.0
      %v567 = vmul.f32 %v551, 2.0
      %v568 = vmul.f32 %v552, 2.0
      %v569 = vmul.f32 %v553, 2.0
      %v570 = vmul.f32 %v554, 2.0
      %v571 = vmul.f32 %v555, 2.0
      %v572 = vmul.f32 %v556, 2.0
      %v573 = vmul.f32 %v557, 2.0
      %v574 = vmul.f32 %v558, 2.0
      %v575 = vmul.f32 %v559, 2.0
      %v576 = vmul.f32 %v560, 2.0
      %v577 = vmul.f32 %v561, 2.0
      %v578 = vmul.f32 %v562, 2.0
      %v579 = vsub.f32 1.0, %v563
      %v580 = vsub.f32 1.0, %v564
      %v581 = vsub.f32 1.0, %v565
      %v582 = vsub.f32 1.0, %v566
      %v583 = vsub.f32 1.0, %v567
      %v584 = vsub.f32 1.0, %v568
      %v585 = vsub.f32 1.0, %v569
      %v586 = vsub.f32 1.0, %v570
      %v587 = vsub.f32 1.0, %v571
      %v588 = vsub.f32 1.0, %v572
      %v589 = vsub.f32 1.0, %v573
      %v590 = vsub.f32 1.0, %v574
      %v591 = vsub.f32 1.0, %v575
      %v592 = vsub.f32 1.0, %v576
      %v593 = vsub.f32 1.0, %v577
      %v594 = vsub.f32 1.0, %v578
      %v595 = vmul.f32 %v451, %v579
      %v596 = vmul.f32 %v452, %v580
      %v597 = vmul.f32 %v453, %v581
      %v598 = vmul.f32 %v454, %v582
      %v599 = vmul.f32 %v455, %v583
      %v600 = vmul.f32 %v456, %v584
      %v601 = vmul.f32 %v457, %v585
      %v602 = vmul.f32 %v458, %v586
      %v603 = vmul.f32 %v459, %v587
      %v604 = vmul.f32 %v460, %v588
      %v605 = vmul.f32 %v461, %v589
      %v606 = vmul.f32 %v462, %v590
      %v607 = vmul.f32 %v463, %v591
      %v608 = vmul.f32 %v464, %v592
      %v609 = vmul.f32 %v465, %v593
      %v610 = vmul.f32 %v466, %v594
      %vm611 = vcmask 130048
      %612 = vst.msk [vmem:[%s325] sm:$0xff] %vm611, %v595
      %613 = vst.msk [vmem:[%s325 + $0x8] sm:$0xff] %vm611, %v596
      %614 = vst.msk [vmem:[%s325 + $0x10] sm:$0xff] %vm611, %v597
      %615 = vst.msk [vmem:[%s325 + $0x18] sm:$0xff] %vm611, %v598
      %616 = vst.msk [vmem:[%s325 + $0x20] sm:$0xff] %vm611, %v599
      %617 = vst.msk [vmem:[%s325 + $0x28] sm:$0xff] %vm611, %v600
      %618 = vst.msk [vmem:[%s325 + $0x30] sm:$0xff] %vm611, %v601
      %619 = vst.msk [vmem:[%s325 + $0x38] sm:$0xff] %vm611, %v602
      %620 = vst.msk [vmem:[%s325 + $0x40] sm:$0xff] %vm611, %v603
      %621 = vst.msk [vmem:[%s325 + $0x48] sm:$0xff] %vm611, %v604
      %622 = vst.msk [vmem:[%s325 + $0x50] sm:$0xff] %vm611, %v605
      %623 = vst.msk [vmem:[%s325 + $0x58] sm:$0xff] %vm611, %v606
      %624 = vst.msk [vmem:[%s325 + $0x60] sm:$0xff] %vm611, %v607
      %625 = vst.msk [vmem:[%s325 + $0x68] sm:$0xff] %vm611, %v608
      %626 = vst.msk [vmem:[%s325 + $0x70] sm:$0xff] %vm611, %v609
      %627 = vst.msk [vmem:[%s325 + $0x78] sm:$0xff] %vm611, %v610
      %s628 = smul.u32 16, %s22
      %p629 = scmp.lt.s32.totalorder %s21, 3
      %s630 = scalar_select %p629, %s21, 3
      %p631 = scmp.lt.s32.totalorder %s628, 31
      %s632 = scalar_select %p631, %s628, 31
      %s633 = smul.addr %s630, 32
      %s634 = sadd.s32 %s632, %s633
      %s635 = smul.addr %s634, 8
      %s636 = scalar_lea.vmem %s6, %s635
      // Predicated region
      $region45: #{residual_block.5} parent=43 // pred_check
        %p637 = pneg %p189
      $region46: #{residual_block.5} parent=43 // pred_check_branch
        %639 = sbr.rel (%p637) target = $region48
      $region47: #{residual_block.5} parent=43 // pred_region
        %s640 = smul.u32 16, %s22
      $region48: #{residual_block.5} parent=43 // pred_fallthru
        _
    $region44: #{residual_block.5} parent=5 // pred_fallthru
      _
    %p641 = scmp.le.s32.totalorder 2, %s12
    // Predicated region
    $region49: #{residual_block.5} parent=5 // pred_check
      %p642 = pneg %p641
    $region50: #{residual_block.5} parent=5 // pred_check_branch
      %644 = sbr.rel (%p642) target = $region52
    $region51: #{residual_block.5} parent=5 // pred_region
      %s645 = ssub.s32 %s12, 2
      // Predicated region
      $region53: #{residual_block.5} parent=51 // pred_check
        %p646 = pneg %p195
      $region54: #{residual_block.5} parent=51 // pred_check_branch
        %648 = sbr.rel (%p646) target = $region56
      $region55: #{residual_block.5} parent=51 // pred_region
        %s649 = smul.u32 16, %s24
        %p650 = scmp.lt.s32.totalorder %s23, 3
        %s651 = scalar_select %p650, %s23, 3
        %p652 = scmp.lt.s32.totalorder %s649, 31
        %s653 = scalar_select %p652, %s649, 31
        %s654 = smul.addr %s651, 32
        %s655 = sadd.s32 %s653, %s654
        %s656 = smul.addr %s655, 8
        %s657 = scalar_lea.vmem %s6, %s656
      $region56: #{residual_block.5} parent=51 // pred_fallthru
        _
    $region52: #{residual_block.5} parent=5 // pred_fallthru
      _
  $region6: #{residual_block.5} parent=0 // loop_footer
    %s16 = sadd.s32 1, %s12
  $region7: #{residual_block.5} parent=0 // loop_footer_branch
    %11 = sbr.rel target = $region3
  $region8: #{residual_block.5} parent=0 // loop_exit
    _

// kernel: residual_block.3
$region0: #{residual_block.3}
  #allocation0 [shape = 'u32[]', space=smem, size = 0x4, offset = 0x4, fixed_abs, tag = 'smem constant byte address 0x4 - core index']
  #allocation1 [shape = 'u32[144,128]{1,0:T(1,128)}', space=vmem, size = 0x12000, scoped, tag = 'internal scratch']
  %s0 = inlined_call_operand.vmem [shape: bf16[4,256,8], index: 0, kind: input, shape index: {}]
  %s1 = inlined_call_operand.vmem [shape: bf16[24,16], index: 1, kind: input, shape index: {}]
  %s2 = inlined_call_operand.vmem [shape: bf16[8,16], index: 2, kind: input, shape index: {}]
  %s3 = inlined_call_operand.vmem [shape: f32[4,256,16], index: 3, kind: output, shape index: {0}]
  %s4 = inlined_call_operand.vmem [shape: f32[4,256,16], index: 4, kind: output, shape index: {1}]
  %s5 = inlined_call_operand.vmem [shape: f32[4,2,16], index: 5, kind: output, shape index: {2}]
  %s6 = inlined_call_operand.vmem [shape: f32[4,2,16], index: 6, kind: output, shape index: {3}]
  %7 = xla_tuple %s3, %s4, %s5, %s6
  %s8 = sld [smem:[#allocation0]]
  $region69: #{residual_block.3} parent=0
    _
  %s10 = ssub.s32 1, %s8
  %s11 = scalar_select 0, %s10, %s8
  loop: start=0, step=1, limit=6
  $region2: #{residual_block.3} parent=0 // loop_pre_header
    _
  $region3: #{residual_block.3} parent=0 // loop_header
    %s13 = sphi 0, %s17
    %p14 = scmp.ge.s32.totalorder %s13, 6
    %s23 = sphi 0, %s25
    %s26 = sphi 0, %s23
    %s27 = sphi 0, %s26
    %s43 = sphi 0, %s27
    %s47 = sphi 0, %s47
    %s49 = sphi 0, %s47
    %s50 = sphi 0, %s49
    %s64 = sphi 0, %s50
    %s68 = sphi 0, %s68
    %s70 = sphi 0, %s68
    %s71 = sphi 0, %s70
    %s85 = sphi 0, %s71
    %s91 = sphi 0, %s93
    %s94 = sphi 0, %s91
    %s95 = sphi 0, %s94
    %s111 = sphi 0, %s95
    %s117 = sphi 0, %s119
    %s120 = sphi 0, %s117
    %s121 = sphi 0, %s120
    %s137 = sphi 0, %s121
    %s143 = sphi 0, %s145
    %s146 = sphi 0, %s143
    %s147 = sphi 0, %s146
    %s163 = sphi 0, %s147
    %s169 = sphi 0, %s171
    %s172 = sphi 0, %s169
    %s173 = sphi 0, %s172
    %s189 = sphi 0, %s173
  $region4: #{residual_block.3} parent=0 // loop_header_branch
    %16 = sbr.rel (%p14) target = $region8
  $region5: #{residual_block.3} parent=0 // loop_body
    %s18 = ssub.s32 %s13, 1
    %s19 = ssub.s32 %s13, 2
    %s20 = sadd.s32 %s13, 1
    %s21 = ssub.s32 %s13, %s20
    %p22 = scmp.eq.s32.totalorder %s21, 0
    %s24 = sadd.s32 %s23, 1
    %s25 = scalar_select %p22, %s23, %s24
    %p28 = pneg %p22
    %p29 = scmp.eq.s32.totalorder %s13, 3
    %p30 = por %p28, %p29
    %p31 = scmp.ne.s32.totalorder %s23, %s26
    %p32 = scmp.eq.s32.totalorder %s13, 0
    %p33 = por %p31, %p32
    %p34 = scmp.ne.s32.totalorder %s23, %s26
    %p35 = scmp.eq.s32.totalorder %s18, 3
    %p36 = por %p34, %p35
    %p37 = scmp.ne.s32.totalorder %s26, %s27
    %p38 = scmp.eq.s32.totalorder %s18, 0
    %p39 = por %p37, %p38
    %p40 = scmp.ne.s32.totalorder %s26, %s27
    %p41 = scmp.eq.s32.totalorder %s19, 3
    %p42 = por %p40, %p41
    %p44 = scmp.ne.s32.totalorder %s27, %s43
    %p45 = scmp.eq.s32.totalorder %s19, 0
    %p46 = por %p44, %p45
    %s48 = sadd.s32 %s47, 1
    %p51 = scmp.eq.s32.totalorder %s13, 3
    %p52 = scmp.ne.s32.totalorder %s47, %s49
    %p53 = scmp.eq.s32.totalorder %s13, 0
    %p54 = por %p52, %p53
    %p55 = scmp.ne.s32.totalorder %s47, %s49
    %p56 = scmp.eq.s32.totalorder %s18, 3
    %p57 = por %p55, %p56
    %p58 = scmp.ne.s32.totalorder %s49, %s50
    %p59 = scmp.eq.s32.totalorder %s18, 0
    %p60 = por %p58, %p59
    %p61 = scmp.ne.s32.totalorder %s49, %s50
    %p62 = scmp.eq.s32.totalorder %s19, 3
    %p63 = por %p61, %p62
    %p65 = scmp.ne.s32.totalorder %s50, %s64
    %p66 = scmp.eq.s32.totalorder %s19, 0
    %p67 = por %p65, %p66
    %s69 = sadd.s32 %s68, 1
    %p72 = scmp.eq.s32.totalorder %s13, 3
    %p73 = scmp.ne.s32.totalorder %s68, %s70
    %p74 = scmp.eq.s32.totalorder %s13, 0
    %p75 = por %p73, %p74
    %p76 = scmp.ne.s32.totalorder %s68, %s70
    %p77 = scmp.eq.s32.totalorder %s18, 3
    %p78 = por %p76, %p77
    %p79 = scmp.ne.s32.totalorder %s70, %s71
    %p80 = scmp.eq.s32.totalorder %s18, 0
    %p81 = por %p79, %p80
    %p82 = scmp.ne.s32.totalorder %s70, %s71
    %p83 = scmp.eq.s32.totalorder %s19, 3
    %p84 = por %p82, %p83
    %p86 = scmp.ne.s32.totalorder %s71, %s85
    %p87 = scmp.eq.s32.totalorder %s19, 0
    %p88 = por %p86, %p87
    %s89 = ssub.s32 %s13, %s20
    %p90 = scmp.eq.s32.totalorder %s89, 0
    %s92 = sadd.s32 %s91, 1
    %s93 = scalar_select %p90, %s91, %s92
    %p96 = pneg %p90
    %p97 = scmp.eq.s32.totalorder %s13, 3
    %p98 = por %p96, %p97
    %p99 = scmp.ne.s32.totalorder %s91, %s94
    %p100 = scmp.eq.s32.totalorder %s13, 0
    %p101 = por %p99, %p100
    %p102 = scmp.ne.s32.totalorder %s91, %s94
    %p103 = scmp.eq.s32.totalorder %s18, 3
    %p104 = por %p102, %p103
    %p105 = scmp.ne.s32.totalorder %s94, %s95
    %p106 = scmp.eq.s32.totalorder %s18, 0
    %p107 = por %p105, %p106
    %p108 = scmp.ne.s32.totalorder %s94, %s95
    %p109 = scmp.eq.s32.totalorder %s19, 3
    %p110 = por %p108, %p109
    %p112 = scmp.ne.s32.totalorder %s95, %s111
    %p113 = scmp.eq.s32.totalorder %s19, 0
    %p114 = por %p112, %p113
    %s115 = ssub.s32 %s13, %s20
    %p116 = scmp.eq.s32.totalorder %s115, 0
    %s118 = sadd.s32 %s117, 1
    %s119 = scalar_select %p116, %s117, %s118
    %p122 = pneg %p116
    %p123 = scmp.eq.s32.totalorder %s13, 3
    %p124 = por %p122, %p123
    %p125 = scmp.ne.s32.totalorder %s117, %s120
    %p126 = scmp.eq.s32.totalorder %s13, 0
    %p127 = por %p125, %p126
    %p128 = scmp.ne.s32.totalorder %s117, %s120
    %p129 = scmp.eq.s32.totalorder %s18, 3
    %p130 = por %p128, %p129
    %p131 = scmp.ne.s32.totalorder %s120, %s121
    %p132 = scmp.eq.s32.totalorder %s18, 0
    %p133 = por %p131, %p132
    %p134 = scmp.ne.s32.totalorder %s120, %s121
    %p135 = scmp.eq.s32.totalorder %s19, 3
    %p136 = por %p134, %p135
    %p138 = scmp.ne.s32.totalorder %s121, %s137
    %p139 = scmp.eq.s32.totalorder %s19, 0
    %p140 = por %p138, %p139
    %s141 = ssub.s32 %s13, %s20
    %p142 = scmp.eq.s32.totalorder %s141, 0
    %s144 = sadd.s32 %s143, 1
    %s145 = scalar_select %p142, %s143, %s144
    %p148 = pneg %p142
    %p149 = scmp.eq.s32.totalorder %s13, 3
    %p150 = por %p148, %p149
    %p151 = scmp.ne.s32.totalorder %s143, %s146
    %p152 = scmp.eq.s32.totalorder %s13, 0
    %p153 = por %p151, %p152
    %p154 = scmp.ne.s32.totalorder %s143, %s146
    %p155 = scmp.eq.s32.totalorder %s18, 3
    %p156 = por %p154, %p155
    %p157 = scmp.ne.s32.totalorder %s146, %s147
    %p158 = scmp.eq.s32.totalorder %s18, 0
    %p159 = por %p157, %p158
    %p160 = scmp.ne.s32.totalorder %s146, %s147
    %p161 = scmp.eq.s32.totalorder %s19, 3
    %p162 = por %p160, %p161
    %p164 = scmp.ne.s32.totalorder %s147, %s163
    %p165 = scmp.eq.s32.totalorder %s19, 0
    %p166 = por %p164, %p165
    %s167 = ssub.s32 %s13, %s20
    %p168 = scmp.eq.s32.totalorder %s167, 0
    %s170 = sadd.s32 %s169, 1
    %s171 = scalar_select %p168, %s169, %s170
    %p174 = pneg %p168
    %p175 = scmp.eq.s32.totalorder %s13, 3
    %p176 = por %p174, %p175
    %p177 = scmp.ne.s32.totalorder %s169, %s172
    %p178 = scmp.eq.s32.totalorder %s13, 0
    %p179 = por %p177, %p178
    %p180 = scmp.ne.s32.totalorder %s169, %s172
    %p181 = scmp.eq.s32.totalorder %s18, 3
    %p182 = por %p180, %p181
    %p183 = scmp.ne.s32.totalorder %s172, %s173
    %p184 = scmp.eq.s32.totalorder %s18, 0
    %p185 = por %p183, %p184
    %p186 = scmp.ne.s32.totalorder %s172, %s173
    %p187 = scmp.eq.s32.totalorder %s19, 3
    %p188 = por %p186, %p187
    %p190 = scmp.ne.s32.totalorder %s173, %s189
    %p191 = scmp.eq.s32.totalorder %s19, 0
    %p192 = por %p190, %p191
    %p193 = scmp.le.s32.totalorder 1, %s13
    %p194 = scmp.lt.s32.totalorder %s13, 5
    %p195 = pnand %p193, %p194
    %p196 = pneg %p195
    // Predicated region
    $region9: #{residual_block.3} parent=5 // pred_check
      _
    $region10: #{residual_block.3} parent=5 // pred_check_branch
      %198 = sbr.rel (%p195) target = $region12
    $region11: #{residual_block.3} parent=5 // pred_region
      %s199 = ssub.s32 %s13, 1
      // Predicated region
      $region13: #{residual_block.3} parent=11 // pred_check
        %p200 = pneg %p60
      $region14: #{residual_block.3} parent=11 // pred_check_branch
        %202 = sbr.rel (%p200) target = $region16
      $region15: #{residual_block.3} parent=11 // pred_region
        _
      $region16: #{residual_block.3} parent=11 // pred_fallthru
        _
      // Predicated region
      $region17: #{residual_block.3} parent=11 // pred_check
        %p203 = pneg %p81
      $region18: #{residual_block.3} parent=11 // pred_check_branch
        %205 = sbr.rel (%p203) target = $region20
      $region19: #{residual_block.3} parent=11 // pred_region
        _
      $region20: #{residual_block.3} parent=11 // pred_fallthru
        _
    $region12: #{residual_block.3} parent=5 // pred_fallthru
      _
    %p206 = scmp.lt.s32.totalorder %s13, 4
    // Predicated region
    $region21: #{residual_block.3} parent=5 // pred_check
      %p207 = pneg %p206
    $region22: #{residual_block.3} parent=5 // pred_check_branch
      %209 = sbr.rel (%p207) target = $region24
    $region23: #{residual_block.3} parent=5 // pred_region
      // Predicated region
      $region25: #{residual_block.3} parent=23 // pred_check
        %p210 = pneg %p33
      $region26: #{residual_block.3} parent=23 // pred_check_branch
        %212 = sbr.rel (%p210) target = $region28
      $region27: #{residual_block.3} parent=23 // pred_region
        %p213 = scmp.lt.s32.totalorder %s13, 3
        %s214 = scalar_select %p213, %s13, 3
        %s215 = smul.addr %s214, 32
        %s216 = smul.addr %s215, 4
        %s217 = scalar_lea.vmem %s0, %s216
      $region28: #{residual_block.3} parent=23 // pred_fallthru
        _
    $region24: #{residual_block.3} parent=5 // pred_fallthru
      _
    %p218 = scmp.le.s32.totalorder 1, %s13
    %p219 = scmp.lt.s32.totalorder %s13, 5
    %p220 = pnand %p218, %p219
    %p221 = pneg %p220
    // Predicated region
    $region29: #{residual_block.3} parent=5 // pred_check
      _
    $region30: #{residual_block.3} parent=5 // pred_check_branch
      %223 = sbr.rel (%p220) target = $region32
    $region31: #{residual_block.3} parent=5 // pred_region
      %s224 = ssub.s32 %s13, 1
      %p225 = scmp.lt.s32.totalorder %s18, 3
      %s226 = scalar_select %p225, %s18, 3
      %s227 = smul.addr %s226, 32
      %s228 = smul.addr %s227, 4
      %s229 = scalar_lea.vmem %s0, %s228
      %p230 = pneg %p39
      %p231 = pneg %p36
      %p232 = pneg %p60
      %p233 = pneg %p57
      %p234 = pneg %p81
      %p235 = pneg %p78
      %p236 = pneg %p107
      %p237 = pneg %p104
      %p238 = scmp.lt.s32.totalorder %s18, 3
      %s239 = scalar_select %p238, %s18, 3
      %s240 = smul.addr %s239, 32
      %s241 = smul.addr %s240, 8
      %s242 = scalar_lea.vmem %s3, %s241
      %p243 = pneg %p133
      %p244 = pneg %p130
      %p245 = scmp.lt.s32.totalorder %s18, 3
      %s246 = scalar_select %p245, %s18, 3
      %s247 = smul.addr %s246, 32
      %s248 = smul.addr %s247, 8
      %s249 = scalar_lea.vmem %s4, %s248
      %p250 = pneg %p159
      %p251 = pneg %p156
      %p252 = scmp.lt.s32.totalorder %s18, 3
      %s253 = scalar_select %p252, %s18, 3
      %s254 = smul.addr %s253, 2
      %s255 = scalar_lea.vmem %s5, %s254
      %p256 = pneg %p185
      %p257 = pneg %p182
      %p258 = scmp.lt.s32.totalorder %s18, 3
      %s259 = scalar_select %p258, %s18, 3
      %s260 = smul.addr %s259, 2
      %s261 = scalar_lea.vmem %s6, %s260
      %p262 = scmp.lt.s32.totalorder %s18, 3
      %s263 = scalar_select %p262, %s18, 3
      %s264 = smul.addr %s263, 32
      %s265 = smul.addr %s264, 4
      %s266 = scalar_lea.vmem %s0, %s265
      %p267 = scmp.lt.s32.totalorder %s18, 3
      %s268 = scalar_select %p267, %s18, 3
      %s269 = smul.addr %s268, 32
      %s270 = smul.addr %s269, 8
      %s271 = scalar_lea.vmem %s3, %s270
      %p272 = scmp.lt.s32.totalorder %s18, 3
      %s273 = scalar_select %p272, %s18, 3
      %s274 = smul.addr %s273, 32
      %s275 = smul.addr %s274, 8
      %s276 = scalar_lea.vmem %s4, %s275
      %p277 = scmp.lt.s32.totalorder %s18, 3
      %s278 = scalar_select %p277, %s18, 3
      %s279 = smul.addr %s278, 2
      %s280 = scalar_lea.vmem %s5, %s279
      %p281 = scmp.lt.s32.totalorder %s18, 3
      %s282 = scalar_select %p281, %s18, 3
      %s283 = smul.addr %s282, 2
      %s284 = scalar_lea.vmem %s6, %s283
      %v286 = vld [vmem:[%s266] sm:$0xf]
      %v287 = vld [vmem:[%s266 + $0x4] sm:$0xf]
      %v288 = vld [vmem:[%s266 + $0x8] sm:$0xf]
      %v289 = vld [vmem:[%s266 + $0xc] sm:$0xf]
      %v290 = vld [vmem:[%s266 + $0x10] sm:$0xf]
      %v291 = vld [vmem:[%s266 + $0x14] sm:$0xf]
      %v292 = vld [vmem:[%s266 + $0x18] sm:$0xf]
      %v293 = vld [vmem:[%s266 + $0x1c] sm:$0xf]
      %v294 = vld [vmem:[%s266 + $0x20] sm:$0xf]
      %v295 = vld [vmem:[%s266 + $0x24] sm:$0xf]
      %v296 = vld [vmem:[%s266 + $0x28] sm:$0xf]
      %v297 = vld [vmem:[%s266 + $0x2c] sm:$0xf]
      %v298 = vld [vmem:[%s266 + $0x30] sm:$0xf]
      %v299 = vld [vmem:[%s266 + $0x34] sm:$0xf]
      %v300 = vld [vmem:[%s266 + $0x38] sm:$0xf]
      %v301 = vld [vmem:[%s266 + $0x3c] sm:$0xf]
      %v302 = vld [vmem:[%s266 + $0x40] sm:$0xf]
      %v303 = vld [vmem:[%s266 + $0x44] sm:$0xf]
      %v304 = vld [vmem:[%s266 + $0x48] sm:$0xf]
      %v305 = vld [vmem:[%s266 + $0x4c] sm:$0xf]
      %v306 = vld [vmem:[%s266 + $0x50] sm:$0xf]
      %v307 = vld [vmem:[%s266 + $0x54] sm:$0xf]
      %v308 = vld [vmem:[%s266 + $0x58] sm:$0xf]
      %v309 = vld [vmem:[%s266 + $0x5c] sm:$0xf]
      %v310 = vld [vmem:[%s266 + $0x60] sm:$0xf]
      %v311 = vld [vmem:[%s266 + $0x64] sm:$0xf]
      %v312 = vld [vmem:[%s266 + $0x68] sm:$0xf]
      %v313 = vld [vmem:[%s266 + $0x6c] sm:$0xf]
      %v314 = vld [vmem:[%s266 + $0x70] sm:$0xf]
      %v315 = vld [vmem:[%s266 + $0x74] sm:$0xf]
      %v316 = vld [vmem:[%s266 + $0x78] sm:$0xf]
      %v317 = vld [vmem:[%s266 + $0x7c] sm:$0xf]
      %v318 = vunpack.c.l.bf16 %v286
      %v319 = vunpack.c.l.bf16 %v287
      %v320 = vunpack.c.l.bf16 %v288
      %v321 = vunpack.c.l.bf16 %v289
      %v322 = vunpack.c.l.bf16 %v290
      %v323 = vunpack.c.l.bf16 %v291
      %v324 = vunpack.c.l.bf16 %v292
      %v325 = vunpack.c.l.bf16 %v293
      %v326 = vunpack.c.l.bf16 %v294
      %v327 = vunpack.c.l.bf16 %v295
      %v328 = vunpack.c.l.bf16 %v296
      %v329 = vunpack.c.l.bf16 %v297
      %v330 = vunpack.c.l.bf16 %v298
      %v331 = vunpack.c.l.bf16 %v299
      %v332 = vunpack.c.l.bf16 %v300
      %v333 = vunpack.c.l.bf16 %v301
      %v334 = vunpack.c.l.bf16 %v302
      %v335 = vunpack.c.l.bf16 %v303
      %v336 = vunpack.c.l.bf16 %v304
      %v337 = vunpack.c.l.bf16 %v305
      %v338 = vunpack.c.l.bf16 %v306
      %v339 = vunpack.c.l.bf16 %v307
      %v340 = vunpack.c.l.bf16 %v308
      %v341 = vunpack.c.l.bf16 %v309
      %v342 = vunpack.c.l.bf16 %v310
      %v343 = vunpack.c.l.bf16 %v311
      %v344 = vunpack.c.l.bf16 %v312
      %v345 = vunpack.c.l.bf16 %v313
      %v346 = vunpack.c.l.bf16 %v314
      %v347 = vunpack.c.l.bf16 %v315
      %v348 = vunpack.c.l.bf16 %v316
      %v349 = vunpack.c.l.bf16 %v317
      %vm382 = vcmask 1040384
      %v383 = vrot.slane %v318, 7
      %v384 = vrot.slane %v319, 7
      %v385 = vsel %vm382, %v383, %v384
      %v386 = vrot.slane %v320, 7
      %v387 = vsel %vm382, %v384, %v386
      %v388 = vrot.slane %v321, 7
      %v389 = vsel %vm382, %v386, %v388
      %v390 = vrot.slane %v322, 7
      %v391 = vsel %vm382, %v388, %v390
      %v392 = vrot.slane %v323, 7
      %v393 = vsel %vm382, %v390, %v392
      %v394 = vrot.slane %v324, 7
      %v395 = vsel %vm382, %v392, %v394
      %v396 = vrot.slane %v325, 7
      %v397 = vsel %vm382, %v394, %v396
      %v398 = vrot.slane %v326, 7
      %v399 = vsel %vm382, %v396, %v398
      %v400 = vrot.slane %v327, 7
      %v401 = vsel %vm382, %v398, %v400
      %v402 = vrot.slane %v328, 7
      %v403 = vsel %vm382, %v400, %v402
      %v404 = vrot.slane %v329, 7
      %v405 = vsel %vm382, %v402, %v404
      %v406 = vrot.slane %v330, 7
      %v407 = vsel %vm382, %v404, %v406
      %v408 = vrot.slane %v331, 7
      %v409 = vsel %vm382, %v406, %v408
      %v410 = vrot.slane %v332, 7
      %v411 = vsel %vm382, %v408, %v410
      %v412 = vrot.slane %v333, 7
      %v413 = vsel %vm382, %v410, %v412
      %v414 = vrot.slane %v334, 7
      %v415 = vsel %vm382, %v412, %v414
      %v416 = vrot.slane %v335, 7
      %v417 = vsel %vm382, %v414, %v416
      %v418 = vrot.slane %v336, 7
      %v419 = vsel %vm382, %v416, %v418
      %v420 = vrot.slane %v337, 7
      %v421 = vsel %vm382, %v418, %v420
      %v422 = vrot.slane %v338, 7
      %v423 = vsel %vm382, %v420, %v422
      %v424 = vrot.slane %v339, 7
      %v425 = vsel %vm382, %v422, %v424
      %v426 = vrot.slane %v340, 7
      %v427 = vsel %vm382, %v424, %v426
      %v428 = vrot.slane %v341, 7
      %v429 = vsel %vm382, %v426, %v428
      %v430 = vrot.slane %v342, 7
      %v431 = vsel %vm382, %v428, %v430
      %v432 = vrot.slane %v343, 7
      %v433 = vsel %vm382, %v430, %v432
      %v434 = vrot.slane %v344, 7
      %v435 = vsel %vm382, %v432, %v434
      %v436 = vrot.slane %v345, 7
      %v437 = vsel %vm382, %v434, %v436
      %v438 = vrot.slane %v346, 7
      %v439 = vsel %vm382, %v436, %v438
      %v440 = vrot.slane %v347, 7
      %v441 = vsel %vm382, %v438, %v440
      %v442 = vrot.slane %v348, 7
      %v443 = vsel %vm382, %v440, %v442
      %v444 = vrot.slane %v349, 7
      %v445 = vsel %vm382, %v442, %v444
      %v478 = vsel %vm382, 0.0, %v383
      %vm479 = vcmask 1046528
      %v480 = vrot.slane %v318, 1
      %v481 = vrot.slane %v319, 1
      %v482 = vsel %vm479, %v480, %v481
      %v483 = vrot.slane %v320, 1
      %v484 = vsel %vm479, %v481, %v483
      %v485 = vrot.slane %v321, 1
      %v486 = vsel %vm479, %v483, %v485
      %v487 = vrot.slane %v322, 1
      %v488 = vsel %vm479, %v485, %v487
      %v489 = vrot.slane %v323, 1
      %v490 = vsel %vm479, %v487, %v489
      %v491 = vrot.slane %v324, 1
      %v492 = vsel %vm479, %v489, %v491
      %v493 = vrot.slane %v325, 1
      %v494 = vsel %vm479, %v491, %v493
      %v495 = vrot.slane %v326, 1
      %v496 = vsel %vm479, %v493, %v495
      %v497 = vrot.slane %v327, 1
      %v498 = vsel %vm479, %v495, %v497
      %v499 = vrot.slane %v328, 1
      %v500 = vsel %vm479, %v497, %v499
      %v501 = vrot.slane %v329, 1
      %v502 = vsel %vm479, %v499, %v501
      %v503 = vrot.slane %v330, 1
      %v504 = vsel %vm479, %v501, %v503
      %v505 = vrot.slane %v331, 1
      %v506 = vsel %vm479, %v503, %v505
      %v507 = vrot.slane %v332, 1
      %v508 = vsel %vm479, %v505, %v507
      %v509 = vrot.slane %v333, 1
      %v510 = vsel %vm479, %v507, %v509
      %v511 = vrot.slane %v334, 1
      %v512 = vsel %vm479, %v509, %v511
      %v513 = vrot.slane %v335, 1
      %v514 = vsel %vm479, %v511, %v513
      %v515 = vrot.slane %v336, 1
      %v516 = vsel %vm479, %v513, %v515
      %v517 = vrot.slane %v337, 1
      %v518 = vsel %vm479, %v515, %v517
      %v519 = vrot.slane %v338, 1
      %v520 = vsel %vm479, %v517, %v519
      %v521 = vrot.slane %v339, 1
      %v522 = vsel %vm479, %v519, %v521
      %v523 = vrot.slane %v340, 1
      %v524 = vsel %vm479, %v521, %v523
      %v525 = vrot.slane %v341, 1
      %v526 = vsel %vm479, %v523, %v525
      %v527 = vrot.slane %v342, 1
      %v528 = vsel %vm479, %v525, %v527
      %v529 = vrot.slane %v343, 1
      %v530 = vsel %vm479, %v527, %v529
      %v531 = vrot.slane %v344, 1
      %v532 = vsel %vm479, %v529, %v531
      %v533 = vrot.slane %v345, 1
      %v534 = vsel %vm479, %v531, %v533
      %v535 = vrot.slane %v346, 1
      %v536 = vsel %vm479, %v533, %v535
      %v537 = vrot.slane %v347, 1
      %v538 = vsel %vm479, %v535, %v537
      %v539 = vrot.slane %v348, 1
      %v540 = vsel %vm479, %v537, %v539
      %v541 = vrot.slane %v349, 1
      %v542 = vsel %vm479, %v539, %v541
      %v544 = vsel %vm479, %v541, 0.0
      %545 = vrot.lane.b32.xlu0 %v318, 8
      %v546 = vpop.permute.xlu0 %545
      %547 = vrot.lane.b32.xlu0 %v319, 8
      %v548 = vpop.permute.xlu0 %547
      %549 = vrot.lane.b32.xlu0 %v320, 8
      %v550 = vpop.permute.xlu0 %549
      %551 = vrot.lane.b32.xlu0 %v321, 8
      %v552 = vpop.permute.xlu0 %551
      %553 = vrot.lane.b32.xlu0 %v322, 8
      %v554 = vpop.permute.xlu0 %553
      %555 = vrot.lane.b32.xlu0 %v323, 8
      %v556 = vpop.permute.xlu0 %555
      %557 = vrot.lane.b32.xlu0 %v324, 8
      %v558 = vpop.permute.xlu0 %557
      %559 = vrot.lane.b32.xlu0 %v325, 8
      %v560 = vpop.permute.xlu0 %559
      %561 = vrot.lane.b32.xlu0 %v326, 8
      %v562 = vpop.permute.xlu0 %561
      %563 = vrot.lane.b32.xlu0 %v327, 8
      %v564 = vpop.permute.xlu0 %563
      %565 = vrot.lane.b32.xlu0 %v328, 8
      %v566 = vpop.permute.xlu0 %565
      %567 = vrot.lane.b32.xlu0 %v329, 8
      %v568 = vpop.permute.xlu0 %567
      %569 = vrot.lane.b32.xlu0 %v330, 8
      %v570 = vpop.permute.xlu0 %569
      %571 = vrot.lane.b32.xlu0 %v331, 8
      %v572 = vpop.permute.xlu0 %571
      %573 = vrot.lane.b32.xlu0 %v332, 8
      %v574 = vpop.permute.xlu0 %573
      %575 = vrot.lane.b32.xlu0 %v333, 8
      %v576 = vpop.permute.xlu0 %575
      %577 = vrot.lane.b32.xlu0 %v334, 8
      %v578 = vpop.permute.xlu0 %577
      %579 = vrot.lane.b32.xlu0 %v335, 8
      %v580 = vpop.permute.xlu0 %579
      %581 = vrot.lane.b32.xlu0 %v336, 8
      %v582 = vpop.permute.xlu0 %581
      %583 = vrot.lane.b32.xlu0 %v337, 8
      %v584 = vpop.permute.xlu0 %583
      %585 = vrot.lane.b32.xlu0 %v338, 8
      %v586 = vpop.permute.xlu0 %585
      %587 = vrot.lane.b32.xlu0 %v339, 8
      %v588 = vpop.permute.xlu0 %587
      %589 = vrot.lane.b32.xlu0 %v340, 8
      %v590 = vpop.permute.xlu0 %589
      %591 = vrot.lane.b32.xlu0 %v341, 8
      %v592 = vpop.permute.xlu0 %591
      %593 = vrot.lane.b32.xlu0 %v342, 8
      %v594 = vpop.permute.xlu0 %593
      %595 = vrot.lane.b32.xlu0 %v343, 8
      %v596 = vpop.permute.xlu0 %595
      %597 = vrot.lane.b32.xlu0 %v344, 8
      %v598 = vpop.permute.xlu0 %597
      %599 = vrot.lane.b32.xlu0 %v345, 8
      %v600 = vpop.permute.xlu0 %599
      %601 = vrot.lane.b32.xlu0 %v346, 8
      %v602 = vpop.permute.xlu0 %601
      %603 = vrot.lane.b32.xlu0 %v347, 8
      %v604 = vpop.permute.xlu0 %603
      %605 = vrot.lane.b32.xlu0 %v348, 8
      %v606 = vpop.permute.xlu0 %605
      %607 = vrot.lane.b32.xlu0 %v349, 8
      %v608 = vpop.permute.xlu0 %607
      %642 = vrot.lane.b32.xlu0 %v482, 16
      %v643 = vpop.permute.xlu0 %642
      %644 = vrot.lane.b32.xlu0 %v484, 16
      %v645 = vpop.permute.xlu0 %644
      %646 = vrot.lane.b32.xlu0 %v486, 16
      %v647 = vpop.permute.xlu0 %646
      %648 = vrot.lane.b32.xlu0 %v488, 16
      %v649 = vpop.permute.xlu0 %648
      %650 = vrot.lane.b32.xlu0 %v490, 16
      %v651 = vpop.permute.xlu0 %650
      %652 = vrot.lane.b32.xlu0 %v492, 16
      %v653 = vpop.permute.xlu0 %652
      %654 = vrot.lane.b32.xlu0 %v494, 16
      %v655 = vpop.permute.xlu0 %654
      %656 = vrot.lane.b32.xlu0 %v496, 16
      %v657 = vpop.permute.xlu0 %656
      %658 = vrot.lane.b32.xlu0 %v498, 16
      %v659 = vpop.permute.xlu0 %658
      %660 = vrot.lane.b32.xlu0 %v500, 16
      %v661 = vpop.permute.xlu0 %660
      %662 = vrot.lane.b32.xlu0 %v502, 16
      %v663 = vpop.permute.xlu0 %662
      %664 = vrot.lane.b32.xlu0 %v504, 16
      %v665 = vpop.permute.xlu0 %664
      %666 = vrot.lane.b32.xlu0 %v506, 16
      %v667 = vpop.permute.xlu0 %666
      %668 = vrot.lane.b32.xlu0 %v508, 16
      %v669 = vpop.permute.xlu0 %668
      %670 = vrot.lane.b32.xlu0 %v510, 16
      %v671 = vpop.permute.xlu0 %670
      %672 = vrot.lane.b32.xlu0 %v512, 16
      %v673 = vpop.permute.xlu0 %672
      %674 = vrot.lane.b32.xlu0 %v514, 16
      %v675 = vpop.permute.xlu0 %674
      %676 = vrot.lane.b32.xlu0 %v516, 16
      %v677 = vpop.permute.xlu0 %676
      %678 = vrot.lane.b32.xlu0 %v518, 16
      %v679 = vpop.permute.xlu0 %678
      %680 = vrot.lane.b32.xlu0 %v520, 16
      %v681 = vpop.permute.xlu0 %680
      %682 = vrot.lane.b32.xlu0 %v522, 16
      %v683 = vpop.permute.xlu0 %682
      %684 = vrot.lane.b32.xlu0 %v524, 16
      %v685 = vpop.permute.xlu0 %684
      %686 = vrot.lane.b32.xlu0 %v526, 16
      %v687 = vpop.permute.xlu0 %686
      %688 = vrot.lane.b32.xlu0 %v528, 16
      %v689 = vpop.permute.xlu0 %688
      %690 = vrot.lane.b32.xlu0 %v530, 16
      %v691 = vpop.permute.xlu0 %690
      %692 = vrot.lane.b32.xlu0 %v532, 16
      %v693 = vpop.permute.xlu0 %692
      %694 = vrot.lane.b32.xlu0 %v534, 16
      %v695 = vpop.permute.xlu0 %694
      %696 = vrot.lane.b32.xlu0 %v536, 16
      %v697 = vpop.permute.xlu0 %696
      %698 = vrot.lane.b32.xlu0 %v538, 16
      %v699 = vpop.permute.xlu0 %698
      %700 = vrot.lane.b32.xlu0 %v540, 16
      %v701 = vpop.permute.xlu0 %700
      %702 = vrot.lane.b32.xlu0 %v542, 16
      %v703 = vpop.permute.xlu0 %702
      %704 = vrot.lane.b32.xlu0 %v544, 16
      %v705 = vpop.permute.xlu0 %704
      %vm738 = vcmask 64512
      %v739 = vsel %vm738, %v478, %v546
      %v740 = vsel %vm738, %v385, %v548
      %v741 = vsel %vm738, %v387, %v550
      %v742 = vsel %vm738, %v389, %v552
      %v743 = vsel %vm738, %v391, %v554
      %v744 = vsel %vm738, %v393, %v556
      %v745 = vsel %vm738, %v395, %v558
      %v746 = vsel %vm738, %v397, %v560
      %v747 = vsel %vm738, %v399, %v562
      %v748 = vsel %vm738, %v401, %v564
      %v749 = vsel %vm738, %v403, %v566
      %v750 = vsel %vm738, %v405, %v568
      %v751 = vsel %vm738, %v407, %v570
      %v752 = vsel %vm738, %v409, %v572
      %v753 = vsel %vm738, %v411, %v574
      %v754 = vsel %vm738, %v413, %v576
      %v755 = vsel %vm738, %v415, %v578
      %v756 = vsel %vm738, %v417, %v580
      %v757 = vsel %vm738, %v419, %v582
      %v758 = vsel %vm738, %v421, %v584
      %v759 = vsel %vm738, %v423, %v586
      %v760 = vsel %vm738, %v425, %v588
      %v761 = vsel %vm738, %v427, %v590
      %v762 = vsel %vm738, %v429, %v592
      %v763 = vsel %vm738, %v431, %v594
      %v764 = vsel %vm738, %v433, %v596
      %v765 = vsel %vm738, %v435, %v598
      %v766 = vsel %vm738, %v437, %v600
      %v767 = vsel %vm738, %v439, %v602
      %v768 = vsel %vm738, %v441, %v604
      %v769 = vsel %vm738, %v443, %v606
      %v770 = vsel %vm738, %v445, %v608
      %vm771 = vcmask 130048
      %v772 = vsel %vm771, %v739, %v643
      %v773 = vsel %vm771, %v740, %v645
      %v774 = vsel %vm771, %v741, %v647
      %v775 = vsel %vm771, %v742, %v649
      %v776 = vsel %vm771, %v743, %v651
      %v777 = vsel %vm771, %v744, %v653
      %v778 = vsel %vm771, %v745, %v655
      %v779 = vsel %vm771, %v746, %v657
      %v780 = vsel %vm771, %v747, %v659
      %v781 = vsel %vm771, %v748, %v661
      %v782 = vsel %vm771, %v749, %v663
      %v783 = vsel %vm771, %v750, %v665
      %v784 = vsel %vm771, %v751, %v667
      %v785 = vsel %vm771, %v752, %v669
      %v786 = vsel %vm771, %v753, %v671
      %v787 = vsel %vm771, %v754, %v673
      %v788 = vsel %vm771, %v755, %v675
      %v789 = vsel %vm771, %v756, %v677
      %v790 = vsel %vm771, %v757, %v679
      %v791 = vsel %vm771, %v758, %v681
      %v792 = vsel %vm771, %v759, %v683
      %v793 = vsel %vm771, %v760, %v685
      %v794 = vsel %vm771, %v761, %v687
      %v795 = vsel %vm771, %v762, %v689
      %v796 = vsel %vm771, %v763, %v691
      %v797 = vsel %vm771, %v764, %v693
      %v798 = vsel %vm771, %v765, %v695
      %v799 = vsel %vm771, %v766, %v697
      %v800 = vsel %vm771, %v767, %v699
      %v801 = vsel %vm771, %v768, %v701
      %v802 = vsel %vm771, %v769, %v703
      %v803 = vsel %vm771, %v770, %v705
      %v804 = vpack.c.bf16 %v773, %v772
      %v805 = vpack.c.bf16 %v775, %v774
      %v806 = vpack.c.bf16 %v777, %v776
      %v807 = vpack.c.bf16 %v779, %v778
      %v808 = vpack.c.bf16 %v781, %v780
      %v809 = vpack.c.bf16 %v783, %v782
      %v810 = vpack.c.bf16 %v785, %v784
      %v811 = vpack.c.bf16 %v787, %v786
      %v812 = vpack.c.bf16 %v789, %v788
      %v813 = vpack.c.bf16 %v791, %v790
      %v814 = vpack.c.bf16 %v793, %v792
      %v815 = vpack.c.bf16 %v795, %v794
      %v816 = vpack.c.bf16 %v797, %v796
      %v817 = vpack.c.bf16 %v799, %v798
      %v818 = vpack.c.bf16 %v801, %v800
      %v819 = vpack.c.bf16 %v803, %v802
      %v820 = vld [vmem:[%s1] sm:$0xf]
      %v821 = vld [vmem:[%s1 + $0x4] sm:$0xf]
      %v822 = vld [vmem:[%s1 + $0x8] sm:$0xf]
      %v826 = vunpack.c.l.b16 %v820
      %v827 = vunpack.c.l.b16 %v821
      %v828 = vunpack.c.l.b16 %v822
      %v829 = vpack.c.b16 %v827, %v826
      %v830 = vpack.c.b16 %v828, %v828
      %vm832 = vcmask 195584
      %v834 = vsel %vm832, %v804, 0
      %v837 = vsel %vm832, %v805, 0
      %v840 = vsel %vm832, %v806, 0
      %v843 = vsel %vm832, %v807, 0
      %v846 = vsel %vm832, %v808, 0
      %v849 = vsel %vm832, %v809, 0
      %v852 = vsel %vm832, %v810, 0
      %v855 = vsel %vm832, %v811, 0
      %v858 = vsel %vm832, %v812, 0
      %v861 = vsel %vm832, %v813, 0
      %v864 = vsel %vm832, %v814, 0
      %v867 = vsel %vm832, %v815, 0
      %v870 = vsel %vm832, %v816, 0
      %v873 = vsel %vm832, %v817, 0
      %v876 = vsel %vm832, %v818, 0
      %v879 = vsel %vm832, %v819, 0
      %vm881 = vcmask 1043456
      %v883 = vsel %vm881, %v830, 0
      %885 = vmatprep.subr.bf16.mxu0 0
      %886 = vmatpush1.bf16.msra.mxu0 0
      %887 = vmatprep.subr.bf16.mxu0 0
      %888 = vmatpush1.bf16.msra.mxu0 0
      %889 = vmatprep.subr.bf16.mxu0 0
      %890 = vmatpush1.bf16.msra.mxu0 0
      %891 = vmatprep.subr.bf16.mxu0 0
      %892 = vmatpush1.bf16.msra.mxu0 0
      %893 = vmatprep.subr.bf16.mxu0 0
      %894 = vmatpush1.bf16.msra.mxu0 0
      %895 = vmatprep.subr.bf16.mxu0 0
      %896 = vmatpush1.bf16.msra.mxu0 0
      %897 = vmatprep.subr.bf16.mxu0 0
      %898 = vmatpush1.bf16.msra.mxu0 %v883
      %899 = vmatprep.subr.bf16.mxu0 0
      %900 = vmatpush1.bf16.msra.mxu0 %v829
      %901 = vmatprep.subr.bf16.mxu0 0
      %902 = vmatpush2.bf16.msra.mxu0 0
      %903 = vmatprep.subr.bf16.mxu0 0
      %904 = vmatpush2.bf16.msra.mxu0 0
      %905 = vmatprep.subr.bf16.mxu0 0
      %906 = vmatpush2.bf16.msra.mxu0 0
      %907 = vmatprep.subr.bf16.mxu0 0
      %908 = vmatpush2.bf16.msra.mxu0 0
      %909 = vmatprep.subr.bf16.mxu0 0
      %910 = vmatpush2.bf16.msra.mxu0 0
      %911 = vmatprep.subr.bf16.mxu0 0
      %912 = vmatpush2.bf16.msra.mxu0 0
      %913 = vmatprep.subr.bf16.mxu0 0
      %914 = vmatpush2.bf16.msra.mxu0 0
      %915 = vmatprep.subr.bf16.mxu0 0
      %916 = vmatpush2.bf16.msra.mxu0 0
      %917 = vmatprep.mubr.bf16.mxu0 0
      %918 = vmatmul.mubr.bf16.gmra.mxu0 %v834
      %v919 = vpop.f32.mrf.mxu0
      %v920 = vadd.f32 0.0, %v919
      %v921 = vpop.f32.mrf.mxu0
      %v922 = vpop.f32.mrf.mxu0
      %v923 = vadd.f32 0.0, %v922
      %v924 = vpop.f32.mrf.mxu0
      %925 = vmatprep.mubr.bf16.mxu0 0
      %926 = vmatmul.mubr.bf16.gmra.mxu0 %v837
      %v927 = vpop.f32.mrf.mxu0
      %v928 = vadd.f32 0.0, %v927
      %v929 = vpop.f32.mrf.mxu0
      %v930 = vpop.f32.mrf.mxu0
      %v931 = vadd.f32 0.0, %v930
      %v932 = vpop.f32.mrf.mxu0
      %933 = vmatprep.mubr.bf16.mxu0 0
      %934 = vmatmul.mubr.bf16.gmra.mxu0 %v840
      %v935 = vpop.f32.mrf.mxu0
      %v936 = vadd.f32 0.0, %v935
      %v937 = vpop.f32.mrf.mxu0
      %v938 = vpop.f32.mrf.mxu0
      %v939 = vadd.f32 0.0, %v938
      %v940 = vpop.f32.mrf.mxu0
      %941 = vmatprep.mubr.bf16.mxu0 0
      %942 = vmatmul.mubr.bf16.gmra.mxu0 %v843
      %v943 = vpop.f32.mrf.mxu0
      %v944 = vadd.f32 0.0, %v943
      %v945 = vpop.f32.mrf.mxu0
      %v946 = vpop.f32.mrf.mxu0
      %v947 = vadd.f32 0.0, %v946
      %v948 = vpop.f32.mrf.mxu0
      %949 = vmatprep.mubr.bf16.mxu0 0
      %950 = vmatmul.mubr.bf16.gmra.mxu0 %v846
      %v951 = vpop.f32.mrf.mxu0
      %v952 = vadd.f32 0.0, %v951
      %v953 = vpop.f32.mrf.mxu0
      %v954 = vpop.f32.mrf.mxu0
      %v955 = vadd.f32 0.0, %v954
      %v956 = vpop.f32.mrf.mxu0
      %957 = vmatprep.mubr.bf16.mxu0 0
      %958 = vmatmul.mubr.bf16.gmra.mxu0 %v849
      %v959 = vpop.f32.mrf.mxu0
      %v960 = vadd.f32 0.0, %v959
      %v961 = vpop.f32.mrf.mxu0
      %v962 = vpop.f32.mrf.mxu0
      %v963 = vadd.f32 0.0, %v962
      %v964 = vpop.f32.mrf.mxu0
      %965 = vmatprep.mubr.bf16.mxu0 0
      %966 = vmatmul.mubr.bf16.gmra.mxu0 %v852
      %v967 = vpop.f32.mrf.mxu0
      %v968 = vadd.f32 0.0, %v967
      %v969 = vpop.f32.mrf.mxu0
      %v970 = vpop.f32.mrf.mxu0
      %v971 = vadd.f32 0.0, %v970
      %v972 = vpop.f32.mrf.mxu0
      %973 = vmatprep.mubr.bf16.mxu0 0
      %974 = vmatmul.mubr.bf16.gmra.mxu0 %v855
      %v975 = vpop.f32.mrf.mxu0
      %v976 = vadd.f32 0.0, %v975
      %v977 = vpop.f32.mrf.mxu0
      %v978 = vpop.f32.mrf.mxu0
      %v979 = vadd.f32 0.0, %v978
      %v980 = vpop.f32.mrf.mxu0
      %981 = vmatprep.mubr.bf16.mxu0 0
      %982 = vmatmul.mubr.bf16.gmra.mxu0 %v858
      %v983 = vpop.f32.mrf.mxu0
      %v984 = vadd.f32 0.0, %v983
      %v985 = vpop.f32.mrf.mxu0
      %v986 = vpop.f32.mrf.mxu0
      %v987 = vadd.f32 0.0, %v986
      %v988 = vpop.f32.mrf.mxu0
      %989 = vmatprep.mubr.bf16.mxu0 0
      %990 = vmatmul.mubr.bf16.gmra.mxu0 %v861
      %v991 = vpop.f32.mrf.mxu0
      %v992 = vadd.f32 0.0, %v991
      %v993 = vpop.f32.mrf.mxu0
      %v994 = vpop.f32.mrf.mxu0
      %v995 = vadd.f32 0.0, %v994
      %v996 = vpop.f32.mrf.mxu0
      %997 = vmatprep.mubr.bf16.mxu0 0
      %998 = vmatmul.mubr.bf16.gmra.mxu0 %v864
      %v999 = vpop.f32.mrf.mxu0
      %v1000 = vadd.f32 0.0, %v999
      %v1001 = vpop.f32.mrf.mxu0
      %v1002 = vpop.f32.mrf.mxu0
      %v1003 = vadd.f32 0.0, %v1002
      %v1004 = vpop.f32.mrf.mxu0
      %1005 = vmatprep.mubr.bf16.mxu0 0
      %1006 = vmatmul.mubr.bf16.gmra.mxu0 %v867
      %v1007 = vpop.f32.mrf.mxu0
      %v1008 = vadd.f32 0.0, %v1007
      %v1009 = vpop.f32.mrf.mxu0
      %v1010 = vpop.f32.mrf.mxu0
      %v1011 = vadd.f32 0.0, %v1010
      %v1012 = vpop.f32.mrf.mxu0
      %1013 = vmatprep.mubr.bf16.mxu0 0
      %1014 = vmatmul.mubr.bf16.gmra.mxu0 %v870
      %v1015 = vpop.f32.mrf.mxu0
      %v1016 = vadd.f32 0.0, %v1015
      %v1017 = vpop.f32.mrf.mxu0
      %v1018 = vpop.f32.mrf.mxu0
      %v1019 = vadd.f32 0.0, %v1018
      %v1020 = vpop.f32.mrf.mxu0
      %1021 = vmatprep.mubr.bf16.mxu0 0
      %1022 = vmatmul.mubr.bf16.gmra.mxu0 %v873
      %v1023 = vpop.f32.mrf.mxu0
      %v1024 = vadd.f32 0.0, %v1023
      %v1025 = vpop.f32.mrf.mxu0
      %v1026 = vpop.f32.mrf.mxu0
      %v1027 = vadd.f32 0.0, %v1026
      %v1028 = vpop.f32.mrf.mxu0
      %1029 = vmatprep.mubr.bf16.mxu0 0
      %1030 = vmatmul.mubr.bf16.gmra.mxu0 %v876
      %v1031 = vpop.f32.mrf.mxu0
      %v1032 = vadd.f32 0.0, %v1031
      %v1033 = vpop.f32.mrf.mxu0
      %v1034 = vpop.f32.mrf.mxu0
      %v1035 = vadd.f32 0.0, %v1034
      %v1036 = vpop.f32.mrf.mxu0
      %1037 = vmatprep.mubr.bf16.mxu0 0
      %1038 = vmatmul.mubr.bf16.gmra.mxu0 %v879
      %v1039 = vpop.f32.mrf.mxu0
      %v1040 = vadd.f32 0.0, %v1039
      %v1041 = vpop.f32.mrf.mxu0
      %v1042 = vpop.f32.mrf.mxu0
      %v1043 = vadd.f32 0.0, %v1042
      %v1044 = vpop.f32.mrf.mxu0
      %1045 = vdwg.mxu0
      %v1046 = vld [vmem:[%s2] sm:$0xf]
      %v1079 = vunpack.c.l.b16 %v286
      %v1080 = vunpack.c.l.b16 %v287
      %v1081 = vunpack.c.l.b16 %v288
      %v1082 = vunpack.c.l.b16 %v289
      %v1083 = vunpack.c.l.b16 %v290
      %v1084 = vunpack.c.l.b16 %v291
      %v1085 = vunpack.c.l.b16 %v292
      %v1086 = vunpack.c.l.b16 %v293
      %v1087 = vunpack.c.l.b16 %v294
      %v1088 = vunpack.c.l.b16 %v295
      %v1089 = vunpack.c.l.b16 %v296
      %v1090 = vunpack.c.l.b16 %v297
      %v1091 = vunpack.c.l.b16 %v298
      %v1092 = vunpack.c.l.b16 %v299
      %v1093 = vunpack.c.l.b16 %v300
      %v1094 = vunpack.c.l.b16 %v301
      %v1095 = vunpack.c.l.b16 %v302
      %v1096 = vunpack.c.l.b16 %v303
      %v1097 = vunpack.c.l.b16 %v304
      %v1098 = vunpack.c.l.b16 %v305
      %v1099 = vunpack.c.l.b16 %v306
      %v1100 = vunpack.c.l.b16 %v307
      %v1101 = vunpack.c.l.b16 %v308
      %v1102 = vunpack.c.l.b16 %v309
      %v1103 = vunpack.c.l.b16 %v310
      %v1104 = vunpack.c.l.b16 %v311
      %v1105 = vunpack.c.l.b16 %v312
      %v1106 = vunpack.c.l.b16 %v313
      %v1107 = vunpack.c.l.b16 %v314
      %v1108 = vunpack.c.l.b16 %v315
      %v1109 = vunpack.c.l.b16 %v316
      %v1110 = vunpack.c.l.b16 %v317
      %v1111 = vpack.c.b16 %v1080, %v1079
      %v1112 = vpack.c.b16 %v1082, %v1081
      %v1113 = vpack.c.b16 %v1084, %v1083
      %v1114 = vpack.c.b16 %v1086, %v1085
      %v1115 = vpack.c.b16 %v1088, %v1087
      %v1116 = vpack.c.b16 %v1090, %v1089
      %v1117 = vpack.c.b16 %v1092, %v1091
      %v1118 = vpack.c.b16 %v1094, %v1093
      %v1119 = vpack.c.b16 %v1096, %v1095
      %v1120 = vpack.c.b16 %v1098, %v1097
      %v1121 = vpack.c.b16 %v1100, %v1099
      %v1122 = vpack.c.b16 %v1102, %v1101
      %v1123 = vpack.c.b16 %v1104, %v1103
      %v1124 = vpack.c.b16 %v1106, %v1105
      %v1125 = vpack.c.b16 %v1108, %v1107
      %v1126 = vpack.c.b16 %v1110, %v1109
      %v1128 = vsel %vm738, %v1111, 0
      %v1131 = vsel %vm738, %v1112, 0
      %v1134 = vsel %vm738, %v1113, 0
      %v1137 = vsel %vm738, %v1114, 0
      %v1140 = vsel %vm738, %v1115, 0
      %v1143 = vsel %vm738, %v1116, 0
      %v1146 = vsel %vm738, %v1117, 0
      %v1149 = vsel %vm738, %v1118, 0
      %v1152 = vsel %vm738, %v1119, 0
      %v1155 = vsel %vm738, %v1120, 0
      %v1158 = vsel %vm738, %v1121, 0
      %v1161 = vsel %vm738, %v1122, 0
      %v1164 = vsel %vm738, %v1123, 0
      %v1167 = vsel %vm738, %v1124, 0
      %v1170 = vsel %vm738, %v1125, 0
      %v1173 = vsel %vm738, %v1126, 0
      %v1176 = vsel %vm881, %v1046, 0
      %1178 = vmatprep.subr.bf16.mxu0 0
      %1179 = vmatpush1.bf16.msra.mxu0 0
      %1180 = vmatprep.subr.bf16.mxu0 0
      %1181 = vmatpush1.bf16.msra.mxu0 0
      %1182 = vmatprep.subr.bf16.mxu0 0
      %1183 = vmatpush1.bf16.msra.mxu0 0
      %1184 = vmatprep.subr.bf16.mxu0 0
      %1185 = vmatpush1.bf16.msra.mxu0 0
      %1186 = vmatprep.subr.bf16.mxu0 0
      %1187 = vmatpush1.bf16.msra.mxu0 0
      %1188 = vmatprep.subr.bf16.mxu0 0
      %1189 = vmatpush1.bf16.msra.mxu0 0
      %1190 = vmatprep.subr.bf16.mxu0 0
      %1191 = vmatpush1.bf16.msra.mxu0 0
      %1192 = vmatprep.subr.bf16.mxu0 0
      %1193 = vmatpush1.bf16.msra.mxu0 %v1176
      %1194 = vmatprep.subr.bf16.mxu0 0
      %1195 = vmatpush2.bf16.msra.mxu0 0
      %1196 = vmatprep.subr.bf16.mxu0 0
      %1197 = vmatpush2.bf16.msra.mxu0 0
      %1198 = vmatprep.subr.bf16.mxu0 0
      %1199 = vmatpush2.bf16.msra.mxu0 0
      %1200 = vmatprep.subr.bf16.mxu0 0
      %1201 = vmatpush2.bf16.msra.mxu0 0
      %1202 = vmatprep.subr.bf16.mxu0 0
      %1203 = vmatpush2.bf16.msra.mxu0 0
      %1204 = vmatprep.subr.bf16.mxu0 0
      %1205 = vmatpush2.bf16.msra.mxu0 0
      %1206 = vmatprep.subr.bf16.mxu0 0
      %1207 = vmatpush2.bf16.msra.mxu0 0
      %1208 = vmatprep.subr.bf16.mxu0 0
      %1209 = vmatpush2.bf16.msra.mxu0 0
      %1210 = vmatprep.mubr.bf16.mxu0 0
      %1211 = vmatmul.mubr.bf16.gmra.mxu0 %v1128
      %v1212 = vpop.f32.mrf.mxu0
      %v1213 = vadd.f32 0.0, %v1212
      %v1214 = vpop.f32.mrf.mxu0
      %v1215 = vpop.f32.mrf.mxu0
      %v1216 = vadd.f32 0.0, %v1215
      %v1217 = vpop.f32.mrf.mxu0
      %1218 = vmatprep.mubr.bf16.mxu0 0
      %1219 = vmatmul.mubr.bf16.gmra.mxu0 %v1131
      %v1220 = vpop.f32.mrf.mxu0
      %v1221 = vadd.f32 0.0, %v1220
      %v1222 = vpop.f32.mrf.mxu0
      %v1223 = vpop.f32.mrf.mxu0
      %v1224 = vadd.f32 0.0, %v1223
      %v1225 = vpop.f32.mrf.mxu0
      %1226 = vmatprep.mubr.bf16.mxu0 0
      %1227 = vmatmul.mubr.bf16.gmra.mxu0 %v1134
      %v1228 = vpop.f32.mrf.mxu0
      %v1229 = vadd.f32 0.0, %v1228
      %v1230 = vpop.f32.mrf.mxu0
      %v1231 = vpop.f32.mrf.mxu0
      %v1232 = vadd.f32 0.0, %v1231
      %v1233 = vpop.f32.mrf.mxu0
      %1234 = vmatprep.mubr.bf16.mxu0 0
      %1235 = vmatmul.mubr.bf16.gmra.mxu0 %v1137
      %v1236 = vpop.f32.mrf.mxu0
      %v1237 = vadd.f32 0.0, %v1236
      %v1238 = vpop.f32.mrf.mxu0
      %v1239 = vpop.f32.mrf.mxu0
      %v1240 = vadd.f32 0.0, %v1239
      %v1241 = vpop.f32.mrf.mxu0
      %1242 = vmatprep.mubr.bf16.mxu0 0
      %1243 = vmatmul.mubr.bf16.gmra.mxu0 %v1140
      %v1244 = vpop.f32.mrf.mxu0
      %v1245 = vadd.f32 0.0, %v1244
      %v1246 = vpop.f32.mrf.mxu0
      %v1247 = vpop.f32.mrf.mxu0
      %v1248 = vadd.f32 0.0, %v1247
      %v1249 = vpop.f32.mrf.mxu0
      %1250 = vmatprep.mubr.bf16.mxu0 0
      %1251 = vmatmul.mubr.bf16.gmra.mxu0 %v1143
      %v1252 = vpop.f32.mrf.mxu0
      %v1253 = vadd.f32 0.0, %v1252
      %v1254 = vpop.f32.mrf.mxu0
      %v1255 = vpop.f32.mrf.mxu0
      %v1256 = vadd.f32 0.0, %v1255
      %v1257 = vpop.f32.mrf.mxu0
      %1258 = vmatprep.mubr.bf16.mxu0 0
      %1259 = vmatmul.mubr.bf16.gmra.mxu0 %v1146
      %v1260 = vpop.f32.mrf.mxu0
      %v1261 = vadd.f32 0.0, %v1260
      %v1262 = vpop.f32.mrf.mxu0
      %v1263 = vpop.f32.mrf.mxu0
      %v1264 = vadd.f32 0.0, %v1263
      %v1265 = vpop.f32.mrf.mxu0
      %1266 = vmatprep.mubr.bf16.mxu0 0
      %1267 = vmatmul.mubr.bf16.gmra.mxu0 %v1149
      %v1268 = vpop.f32.mrf.mxu0
      %v1269 = vadd.f32 0.0, %v1268
      %v1270 = vpop.f32.mrf.mxu0
      %v1271 = vpop.f32.mrf.mxu0
      %v1272 = vadd.f32 0.0, %v1271
      %v1273 = vpop.f32.mrf.mxu0
      %1274 = vmatprep.mubr.bf16.mxu0 0
      %1275 = vmatmul.mubr.bf16.gmra.mxu0 %v1152
      %v1276 = vpop.f32.mrf.mxu0
      %v1277 = vadd.f32 0.0, %v1276
      %v1278 = vpop.f32.mrf.mxu0
      %v1279 = vpop.f32.mrf.mxu0
      %v1280 = vadd.f32 0.0, %v1279
      %v1281 = vpop.f32.mrf.mxu0
      %1282 = vmatprep.mubr.bf16.mxu0 0
      %1283 = vmatmul.mubr.bf16.gmra.mxu0 %v1155
      %v1284 = vpop.f32.mrf.mxu0
      %v1285 = vadd.f32 0.0, %v1284
      %v1286 = vpop.f32.mrf.mxu0
      %v1287 = vpop.f32.mrf.mxu0
      %v1288 = vadd.f32 0.0, %v1287
      %v1289 = vpop.f32.mrf.mxu0
      %1290 = vmatprep.mubr.bf16.mxu0 0
      %1291 = vmatmul.mubr.bf16.gmra.mxu0 %v1158
      %v1292 = vpop.f32.mrf.mxu0
      %v1293 = vadd.f32 0.0, %v1292
      %v1294 = vpop.f32.mrf.mxu0
      %v1295 = vpop.f32.mrf.mxu0
      %v1296 = vadd.f32 0.0, %v1295
      %v1297 = vpop.f32.mrf.mxu0
      %1298 = vmatprep.mubr.bf16.mxu0 0
      %1299 = vmatmul.mubr.bf16.gmra.mxu0 %v1161
      %v1300 = vpop.f32.mrf.mxu0
      %v1301 = vadd.f32 0.0, %v1300
      %v1302 = vpop.f32.mrf.mxu0
      %v1303 = vpop.f32.mrf.mxu0
      %v1304 = vadd.f32 0.0, %v1303
      %v1305 = vpop.f32.mrf.mxu0
      %1306 = vmatprep.mubr.bf16.mxu0 0
      %1307 = vmatmul.mubr.bf16.gmra.mxu0 %v1164
      %v1308 = vpop.f32.mrf.mxu0
      %v1309 = vadd.f32 0.0, %v1308
      %v1310 = vpop.f32.mrf.mxu0
      %v1311 = vpop.f32.mrf.mxu0
      %v1312 = vadd.f32 0.0, %v1311
      %v1313 = vpop.f32.mrf.mxu0
      %1314 = vmatprep.mubr.bf16.mxu0 0
      %1315 = vmatmul.mubr.bf16.gmra.mxu0 %v1167
      %v1316 = vpop.f32.mrf.mxu0
      %v1317 = vadd.f32 0.0, %v1316
      %v1318 = vpop.f32.mrf.mxu0
      %v1319 = vpop.f32.mrf.mxu0
      %v1320 = vadd.f32 0.0, %v1319
      %v1321 = vpop.f32.mrf.mxu0
      %1322 = vmatprep.mubr.bf16.mxu0 0
      %1323 = vmatmul.mubr.bf16.gmra.mxu0 %v1170
      %v1324 = vpop.f32.mrf.mxu0
      %v1325 = vadd.f32 0.0, %v1324
      %v1326 = vpop.f32.mrf.mxu0
      %v1327 = vpop.f32.mrf.mxu0
      %v1328 = vadd.f32 0.0, %v1327
      %v1329 = vpop.f32.mrf.mxu0
      %1330 = vmatprep.mubr.bf16.mxu0 0
      %1331 = vmatmul.mubr.bf16.gmra.mxu0 %v1173
      %v1332 = vpop.f32.mrf.mxu0
      %v1333 = vadd.f32 0.0, %v1332
      %v1334 = vpop.f32.mrf.mxu0
      %v1335 = vpop.f32.mrf.mxu0
      %v1336 = vadd.f32 0.0, %v1335
      %v1337 = vpop.f32.mrf.mxu0
      %1338 = vdwg.mxu0
      %1339 = vst.msk [vmem:[%s271] sm:$0xff] %vm771, %v920
      %1340 = vst.msk [vmem:[%s271 + $0x8] sm:$0xff] %vm771, %v923
      %1341 = vst.msk [vmem:[%s271 + $0x10] sm:$0xff] %vm771, %v928
      %1342 = vst.msk [vmem:[%s271 + $0x18] sm:$0xff] %vm771, %v931
      %1343 = vst.msk [vmem:[%s271 + $0x20] sm:$0xff] %vm771, %v936
      %1344 = vst.msk [vmem:[%s271 + $0x28] sm:$0xff] %vm771, %v939
      %1345 = vst.msk [vmem:[%s271 + $0x30] sm:$0xff] %vm771, %v944
      %1346 = vst.msk [vmem:[%s271 + $0x38] sm:$0xff] %vm771, %v947
      %1347 = vst.msk [vmem:[%s271 + $0x40] sm:$0xff] %vm771, %v952
      %1348 = vst.msk [vmem:[%s271 + $0x48] sm:$0xff] %vm771, %v955
      %1349 = vst.msk [vmem:[%s271 + $0x50] sm:$0xff] %vm771, %v960
      %1350 = vst.msk [vmem:[%s271 + $0x58] sm:$0xff] %vm771, %v963
      %1351 = vst.msk [vmem:[%s271 + $0x60] sm:$0xff] %vm771, %v968
      %1352 = vst.msk [vmem:[%s271 + $0x68] sm:$0xff] %vm771, %v971
      %1353 = vst.msk [vmem:[%s271 + $0x70] sm:$0xff] %vm771, %v976
      %1354 = vst.msk [vmem:[%s271 + $0x78] sm:$0xff] %vm771, %v979
      %1355 = vst.msk [vmem:[%s271 + $0x80] sm:$0xff] %vm771, %v984
      %1356 = vst.msk [vmem:[%s271 + $0x88] sm:$0xff] %vm771, %v987
      %1357 = vst.msk [vmem:[%s271 + $0x90] sm:$0xff] %vm771, %v992
      %1358 = vst.msk [vmem:[%s271 + $0x98] sm:$0xff] %vm771, %v995
      %1359 = vst.msk [vmem:[%s271 + $0xa0] sm:$0xff] %vm771, %v1000
      %1360 = vst.msk [vmem:[%s271 + $0xa8] sm:$0xff] %vm771, %v1003
      %1361 = vst.msk [vmem:[%s271 + $0xb0] sm:$0xff] %vm771, %v1008
      %1362 = vst.msk [vmem:[%s271 + $0xb8] sm:$0xff] %vm771, %v1011
      %1363 = vst.msk [vmem:[%s271 + $0xc0] sm:$0xff] %vm771, %v1016
      %1364 = vst.msk [vmem:[%s271 + $0xc8] sm:$0xff] %vm771, %v1019
      %1365 = vst.msk [vmem:[%s271 + $0xd0] sm:$0xff] %vm771, %v1024
      %1366 = vst.msk [vmem:[%s271 + $0xd8] sm:$0xff] %vm771, %v1027
      %1367 = vst.msk [vmem:[%s271 + $0xe0] sm:$0xff] %vm771, %v1032
      %1368 = vst.msk [vmem:[%s271 + $0xe8] sm:$0xff] %vm771, %v1035
      %1369 = vst.msk [vmem:[%s271 + $0xf0] sm:$0xff] %vm771, %v1040
      %1370 = vst.msk [vmem:[%s271 + $0xf8] sm:$0xff] %vm771, %v1043
      %1371 = vst.msk [vmem:[%s276] sm:$0xff] %vm771, %v1213
      %1372 = vst.msk [vmem:[%s276 + $0x8] sm:$0xff] %vm771, %v1216
      %1373 = vst.msk [vmem:[%s276 + $0x10] sm:$0xff] %vm771, %v1221
      %1374 = vst.msk [vmem:[%s276 + $0x18] sm:$0xff] %vm771, %v1224
      %1375 = vst.msk [vmem:[%s276 + $0x20] sm:$0xff] %vm771, %v1229
      %1376 = vst.msk [vmem:[%s276 + $0x28] sm:$0xff] %vm771, %v1232
      %1377 = vst.msk [vmem:[%s276 + $0x30] sm:$0xff] %vm771, %v1237
      %1378 = vst.msk [vmem:[%s276 + $0x38] sm:$0xff] %vm771, %v1240
      %1379 = vst.msk [vmem:[%s276 + $0x40] sm:$0xff] %vm771, %v1245
      %1380 = vst.msk [vmem:[%s276 + $0x48] sm:$0xff] %vm771, %v1248
      %1381 = vst.msk [vmem:[%s276 + $0x50] sm:$0xff] %vm771, %v1253
      %1382 = vst.msk [vmem:[%s276 + $0x58] sm:$0xff] %vm771, %v1256
      %1383 = vst.msk [vmem:[%s276 + $0x60] sm:$0xff] %vm771, %v1261
      %1384 = vst.msk [vmem:[%s276 + $0x68] sm:$0xff] %vm771, %v1264
      %1385 = vst.msk [vmem:[%s276 + $0x70] sm:$0xff] %vm771, %v1269
      %1386 = vst.msk [vmem:[%s276 + $0x78] sm:$0xff] %vm771, %v1272
      %1387 = vst.msk [vmem:[%s276 + $0x80] sm:$0xff] %vm771, %v1277
      %1388 = vst.msk [vmem:[%s276 + $0x88] sm:$0xff] %vm771, %v1280
      %1389 = vst.msk [vmem:[%s276 + $0x90] sm:$0xff] %vm771, %v1285
      %1390 = vst.msk [vmem:[%s276 + $0x98] sm:$0xff] %vm771, %v1288
      %1391 = vst.msk [vmem:[%s276 + $0xa0] sm:$0xff] %vm771, %v1293
      %1392 = vst.msk [vmem:[%s276 + $0xa8] sm:$0xff] %vm771, %v1296
      %1393 = vst.msk [vmem:[%s276 + $0xb0] sm:$0xff] %vm771, %v1301
      %1394 = vst.msk [vmem:[%s276 + $0xb8] sm:$0xff] %vm771, %v1304
      %1395 = vst.msk [vmem:[%s276 + $0xc0] sm:$0xff] %vm771, %v1309
      %1396 = vst.msk [vmem:[%s276 + $0xc8] sm:$0xff] %vm771, %v1312
      %1397 = vst.msk [vmem:[%s276 + $0xd0] sm:$0xff] %vm771, %v1317
      %1398 = vst.msk [vmem:[%s276 + $0xd8] sm:$0xff] %vm771, %v1320
      %1399 = vst.msk [vmem:[%s276 + $0xe0] sm:$0xff] %vm771, %v1325
      %1400 = vst.msk [vmem:[%s276 + $0xe8] sm:$0xff] %vm771, %v1328
      %1401 = vst.msk [vmem:[%s276 + $0xf0] sm:$0xff] %vm771, %v1333
      %1402 = vst.msk [vmem:[%s276 + $0xf8] sm:$0xff] %vm771, %v1336
      %v1403 = vsel %vm771, %v920, 0.0
      %v1404 = vsel %vm771, %v923, 0.0
      %v1405 = vadd.f32 %v1403, %v1404
      %v1406 = vsel %vm771, %v928, 0.0
      %v1407 = vadd.f32 %v1405, %v1406
      %v1408 = vsel %vm771, %v931, 0.0
      %v1409 = vadd.f32 %v1407, %v1408
      %v1410 = vsel %vm771, %v936, 0.0
      %v1411 = vadd.f32 %v1409, %v1410
      %v1412 = vsel %vm771, %v939, 0.0
      %v1413 = vadd.f32 %v1411, %v1412
      %v1414 = vsel %vm771, %v944, 0.0
      %v1415 = vadd.f32 %v1413, %v1414
      %v1416 = vsel %vm771, %v947, 0.0
      %v1417 = vadd.f32 %v1415, %v1416
      %v1418 = vsel %vm771, %v952, 0.0
      %v1419 = vadd.f32 %v1417, %v1418
      %v1420 = vsel %vm771, %v955, 0.0
      %v1421 = vadd.f32 %v1419, %v1420
      %v1422 = vsel %vm771, %v960, 0.0
      %v1423 = vadd.f32 %v1421, %v1422
      %v1424 = vsel %vm771, %v963, 0.0
      %v1425 = vadd.f32 %v1423, %v1424
      %v1426 = vsel %vm771, %v968, 0.0
      %v1427 = vadd.f32 %v1425, %v1426
      %v1428 = vsel %vm771, %v971, 0.0
      %v1429 = vadd.f32 %v1427, %v1428
      %v1430 = vsel %vm771, %v976, 0.0
      %v1431 = vadd.f32 %v1429, %v1430
      %v1432 = vsel %vm771, %v979, 0.0
      %v1433 = vadd.f32 %v1431, %v1432
      %v1434 = vsel %vm771, %v984, 0.0
      %v1435 = vadd.f32 %v1433, %v1434
      %v1436 = vsel %vm771, %v987, 0.0
      %v1437 = vadd.f32 %v1435, %v1436
      %v1438 = vsel %vm771, %v992, 0.0
      %v1439 = vadd.f32 %v1437, %v1438
      %v1440 = vsel %vm771, %v995, 0.0
      %v1441 = vadd.f32 %v1439, %v1440
      %v1442 = vsel %vm771, %v1000, 0.0
      %v1443 = vadd.f32 %v1441, %v1442
      %v1444 = vsel %vm771, %v1003, 0.0
      %v1445 = vadd.f32 %v1443, %v1444
      %v1446 = vsel %vm771, %v1008, 0.0
      %v1447 = vadd.f32 %v1445, %v1446
      %v1448 = vsel %vm771, %v1011, 0.0
      %v1449 = vadd.f32 %v1447, %v1448
      %v1450 = vsel %vm771, %v1016, 0.0
      %v1451 = vadd.f32 %v1449, %v1450
      %v1452 = vsel %vm771, %v1019, 0.0
      %v1453 = vadd.f32 %v1451, %v1452
      %v1454 = vsel %vm771, %v1024, 0.0
      %v1455 = vadd.f32 %v1453, %v1454
      %v1456 = vsel %vm771, %v1027, 0.0
      %v1457 = vadd.f32 %v1455, %v1456
      %v1458 = vsel %vm771, %v1032, 0.0
      %v1459 = vadd.f32 %v1457, %v1458
      %v1460 = vsel %vm771, %v1035, 0.0
      %v1461 = vadd.f32 %v1459, %v1460
      %v1462 = vsel %vm771, %v1040, 0.0
      %v1463 = vadd.f32 %v1461, %v1462
      %v1464 = vsel %vm771, %v1043, 0.0
      %v1465 = vadd.f32 %v1463, %v1464
      %v1466 = vrot.slane %v1465, 4
      %v1467 = vadd.f32 %v1465, %v1466
      %v1468 = vrot.slane %v1467, 2
      %v1469 = vadd.f32 %v1467, %v1468
      %v1470 = vrot.slane %v1469, 1
      %v1471 = vadd.f32 %v1469, %v1470
      %v1472 = vmul.f32 %v920, %v920
      %v1473 = vmul.f32 %v923, %v923
      %v1474 = vmul.f32 %v928, %v928
      %v1475 = vmul.f32 %v931, %v931
      %v1476 = vmul.f32 %v936, %v936
      %v1477 = vmul.f32 %v939, %v939
      %v1478 = vmul.f32 %v944, %v944
      %v1479 = vmul.f32 %v947, %v947
      %v1480 = vmul.f32 %v952, %v952
      %v1481 = vmul.f32 %v955, %v955
      %v1482 = vmul.f32 %v960, %v960
      %v1483 = vmul.f32 %v963, %v963
      %v1484 = vmul.f32 %v968, %v968
      %v1485 = vmul.f32 %v971, %v971
      %v1486 = vmul.f32 %v976, %v976
      %v1487 = vmul.f32 %v979, %v979
      %v1488 = vmul.f32 %v984, %v984
      %v1489 = vmul.f32 %v987, %v987
      %v1490 = vmul.f32 %v992, %v992
      %v1491 = vmul.f32 %v995, %v995
      %v1492 = vmul.f32 %v1000, %v1000
      %v1493 = vmul.f32 %v1003, %v1003
      %v1494 = vmul.f32 %v1008, %v1008
      %v1495 = vmul.f32 %v1011, %v1011
      %v1496 = vmul.f32 %v1016, %v1016
      %v1497 = vmul.f32 %v1019, %v1019
      %v1498 = vmul.f32 %v1024, %v1024
      %v1499 = vmul.f32 %v1027, %v1027
      %v1500 = vmul.f32 %v1032, %v1032
      %v1501 = vmul.f32 %v1035, %v1035
      %v1502 = vmul.f32 %v1040, %v1040
      %v1503 = vmul.f32 %v1043, %v1043
      %v1504 = vsel %vm771, %v1472, 0.0
      %v1505 = vsel %vm771, %v1473, 0.0
      %v1506 = vadd.f32 %v1504, %v1505
      %v1507 = vsel %vm771, %v1474, 0.0
      %v1508 = vadd.f32 %v1506, %v1507
      %v1509 = vsel %vm771, %v1475, 0.0
      %v1510 = vadd.f32 %v1508, %v1509
      %v1511 = vsel %vm771, %v1476, 0.0
      %v1512 = vadd.f32 %v1510, %v1511
      %v1513 = vsel %vm771, %v1477, 0.0
      %v1514 = vadd.f32 %v1512, %v1513
      %v1515 = vsel %vm771, %v1478, 0.0
      %v1516 = vadd.f32 %v1514, %v1515
      %v1517 = vsel %vm771, %v1479, 0.0
      %v1518 = vadd.f32 %v1516, %v1517
      %v1519 = vsel %vm771, %v1480, 0.0
      %v1520 = vadd.f32 %v1518, %v1519
      %v1521 = vsel %vm771, %v1481, 0.0
      %v1522 = vadd.f32 %v1520, %v1521
      %v1523 = vsel %vm771, %v1482, 0.0
      %v1524 = vadd.f32 %v1522, %v1523
      %v1525 = vsel %vm771, %v1483, 0.0
      %v1526 = vadd.f32 %v1524, %v1525
      %v1527 = vsel %vm771, %v1484, 0.0
      %v1528 = vadd.f32 %v1526, %v1527
      %v1529 = vsel %vm771, %v1485, 0.0
      %v1530 = vadd.f32 %v1528, %v1529
      %v1531 = vsel %vm771, %v1486, 0.0
      %v1532 = vadd.f32 %v1530, %v1531
      %v1533 = vsel %vm771, %v1487, 0.0
      %v1534 = vadd.f32 %v1532, %v1533
      %v1535 = vsel %vm771, %v1488, 0.0
      %v1536 = vadd.f32 %v1534, %v1535
      %v1537 = vsel %vm771, %v1489, 0.0
      %v1538 = vadd.f32 %v1536, %v1537
      %v1539 = vsel %vm771, %v1490, 0.0
      %v1540 = vadd.f32 %v1538, %v1539
      %v1541 = vsel %vm771, %v1491, 0.0
      %v1542 = vadd.f32 %v1540, %v1541
      %v1543 = vsel %vm771, %v1492, 0.0
      %v1544 = vadd.f32 %v1542, %v1543
      %v1545 = vsel %vm771, %v1493, 0.0
      %v1546 = vadd.f32 %v1544, %v1545
      %v1547 = vsel %vm771, %v1494, 0.0
      %v1548 = vadd.f32 %v1546, %v1547
      %v1549 = vsel %vm771, %v1495, 0.0
      %v1550 = vadd.f32 %v1548, %v1549
      %v1551 = vsel %vm771, %v1496, 0.0
      %v1552 = vadd.f32 %v1550, %v1551
      %v1553 = vsel %vm771, %v1497, 0.0
      %v1554 = vadd.f32 %v1552, %v1553
      %v1555 = vsel %vm771, %v1498, 0.0
      %v1556 = vadd.f32 %v1554, %v1555
      %v1557 = vsel %vm771, %v1499, 0.0
      %v1558 = vadd.f32 %v1556, %v1557
      %v1559 = vsel %vm771, %v1500, 0.0
      %v1560 = vadd.f32 %v1558, %v1559
      %v1561 = vsel %vm771, %v1501, 0.0
      %v1562 = vadd.f32 %v1560, %v1561
      %v1563 = vsel %vm771, %v1502, 0.0
      %v1564 = vadd.f32 %v1562, %v1563
      %v1565 = vsel %vm771, %v1503, 0.0
      %v1566 = vadd.f32 %v1564, %v1565
      %v1567 = vrot.slane %v1566, 4
      %v1568 = vadd.f32 %v1566, %v1567
      %v1569 = vrot.slane %v1568, 2
      %v1570 = vadd.f32 %v1568, %v1569
      %v1571 = vrot.slane %v1570, 1
      %v1572 = vadd.f32 %v1570, %v1571
      %v1573 = vsel %vm382, %v1471, %v1572
      %vm1574 = vcmask 123904
      %1575 = vst.msk [vmem:[%s280] sm:$0x3] %vm1574, %v1573
      %v1576 = vsel %vm771, %v1213, 0.0
      %v1577 = vsel %vm771, %v1216, 0.0
      %v1578 = vadd.f32 %v1576, %v1577
      %v1579 = vsel %vm771, %v1221, 0.0
      %v1580 = vadd.f32 %v1578, %v1579
      %v1581 = vsel %vm771, %v1224, 0.0
      %v1582 = vadd.f32 %v1580, %v1581
      %v1583 = vsel %vm771, %v1229, 0.0
      %v1584 = vadd.f32 %v1582, %v1583
      %v1585 = vsel %vm771, %v1232, 0.0
      %v1586 = vadd.f32 %v1584, %v1585
      %v1587 = vsel %vm771, %v1237, 0.0
      %v1588 = vadd.f32 %v1586, %v1587
      %v1589 = vsel %vm771, %v1240, 0.0
      %v1590 = vadd.f32 %v1588, %v1589
      %v1591 = vsel %vm771, %v1245, 0.0
      %v1592 = vadd.f32 %v1590, %v1591
      %v1593 = vsel %vm771, %v1248, 0.0
      %v1594 = vadd.f32 %v1592, %v1593
      %v1595 = vsel %vm771, %v1253, 0.0
      %v1596 = vadd.f32 %v1594, %v1595
      %v1597 = vsel %vm771, %v1256, 0.0
      %v1598 = vadd.f32 %v1596, %v1597
      %v1599 = vsel %vm771, %v1261, 0.0
      %v1600 = vadd.f32 %v1598, %v1599
      %v1601 = vsel %vm771, %v1264, 0.0
      %v1602 = vadd.f32 %v1600, %v1601
      %v1603 = vsel %vm771, %v1269, 0.0
      %v1604 = vadd.f32 %v1602, %v1603
      %v1605 = vsel %vm771, %v1272, 0.0
      %v1606 = vadd.f32 %v1604, %v1605
      %v1607 = vsel %vm771, %v1277, 0.0
      %v1608 = vadd.f32 %v1606, %v1607
      %v1609 = vsel %vm771, %v1280, 0.0
      %v1610 = vadd.f32 %v1608, %v1609
      %v1611 = vsel %vm771, %v1285, 0.0
      %v1612 = vadd.f32 %v1610, %v1611
      %v1613 = vsel %vm771, %v1288, 0.0
      %v1614 = vadd.f32 %v1612, %v1613
      %v1615 = vsel %vm771, %v1293, 0.0
      %v1616 = vadd.f32 %v1614, %v1615
      %v1617 = vsel %vm771, %v1296, 0.0
      %v1618 = vadd.f32 %v1616, %v1617
      %v1619 = vsel %vm771, %v1301, 0.0
      %v1620 = vadd.f32 %v1618, %v1619
      %v1621 = vsel %vm771, %v1304, 0.0
      %v1622 = vadd.f32 %v1620, %v1621
      %v1623 = vsel %vm771, %v1309, 0.0
      %v1624 = vadd.f32 %v1622, %v1623
      %v1625 = vsel %vm771, %v1312, 0.0
      %v1626 = vadd.f32 %v1624, %v1625
      %v1627 = vsel %vm771, %v1317, 0.0
      %v1628 = vadd.f32 %v1626, %v1627
      %v1629 = vsel %vm771, %v1320, 0.0
      %v1630 = vadd.f32 %v1628, %v1629
      %v1631 = vsel %vm771, %v1325, 0.0
      %v1632 = vadd.f32 %v1630, %v1631
      %v1633 = vsel %vm771, %v1328, 0.0
      %v1634 = vadd.f32 %v1632, %v1633
      %v1635 = vsel %vm771, %v1333, 0.0
      %v1636 = vadd.f32 %v1634, %v1635
      %v1637 = vsel %vm771, %v1336, 0.0
      %v1638 = vadd.f32 %v1636, %v1637
      %v1639 = vrot.slane %v1638, 4
      %v1640 = vadd.f32 %v1638, %v1639
      %v1641 = vrot.slane %v1640, 2
      %v1642 = vadd.f32 %v1640, %v1641
      %v1643 = vrot.slane %v1642, 1
      %v1644 = vadd.f32 %v1642, %v1643
      %v1645 = vmul.f32 %v1213, %v1213
      %v1646 = vmul.f32 %v1216, %v1216
      %v1647 = vmul.f32 %v1221, %v1221
      %v1648 = vmul.f32 %v1224, %v1224
      %v1649 = vmul.f32 %v1229, %v1229
      %v1650 = vmul.f32 %v1232, %v1232
      %v1651 = vmul.f32 %v1237, %v1237
      %v1652 = vmul.f32 %v1240, %v1240
      %v1653 = vmul.f32 %v1245, %v1245
      %v1654 = vmul.f32 %v1248, %v1248
      %v1655 = vmul.f32 %v1253, %v1253
      %v1656 = vmul.f32 %v1256, %v1256
      %v1657 = vmul.f32 %v1261, %v1261
      %v1658 = vmul.f32 %v1264, %v1264
      %v1659 = vmul.f32 %v1269, %v1269
      %v1660 = vmul.f32 %v1272, %v1272
      %v1661 = vmul.f32 %v1277, %v1277
      %v1662 = vmul.f32 %v1280, %v1280
      %v1663 = vmul.f32 %v1285, %v1285
      %v1664 = vmul.f32 %v1288, %v1288
      %v1665 = vmul.f32 %v1293, %v1293
      %v1666 = vmul.f32 %v1296, %v1296
      %v1667 = vmul.f32 %v1301, %v1301
      %v1668 = vmul.f32 %v1304, %v1304
      %v1669 = vmul.f32 %v1309, %v1309
      %v1670 = vmul.f32 %v1312, %v1312
      %v1671 = vmul.f32 %v1317, %v1317
      %v1672 = vmul.f32 %v1320, %v1320
      %v1673 = vmul.f32 %v1325, %v1325
      %v1674 = vmul.f32 %v1328, %v1328
      %v1675 = vmul.f32 %v1333, %v1333
      %v1676 = vmul.f32 %v1336, %v1336
      %v1677 = vsel %vm771, %v1645, 0.0
      %v1678 = vsel %vm771, %v1646, 0.0
      %v1679 = vadd.f32 %v1677, %v1678
      %v1680 = vsel %vm771, %v1647, 0.0
      %v1681 = vadd.f32 %v1679, %v1680
      %v1682 = vsel %vm771, %v1648, 0.0
      %v1683 = vadd.f32 %v1681, %v1682
      %v1684 = vsel %vm771, %v1649, 0.0
      %v1685 = vadd.f32 %v1683, %v1684
      %v1686 = vsel %vm771, %v1650, 0.0
      %v1687 = vadd.f32 %v1685, %v1686
      %v1688 = vsel %vm771, %v1651, 0.0
      %v1689 = vadd.f32 %v1687, %v1688
      %v1690 = vsel %vm771, %v1652, 0.0
      %v1691 = vadd.f32 %v1689, %v1690
      %v1692 = vsel %vm771, %v1653, 0.0
      %v1693 = vadd.f32 %v1691, %v1692
      %v1694 = vsel %vm771, %v1654, 0.0
      %v1695 = vadd.f32 %v1693, %v1694
      %v1696 = vsel %vm771, %v1655, 0.0
      %v1697 = vadd.f32 %v1695, %v1696
      %v1698 = vsel %vm771, %v1656, 0.0
      %v1699 = vadd.f32 %v1697, %v1698
      %v1700 = vsel %vm771, %v1657, 0.0
      %v1701 = vadd.f32 %v1699, %v1700
      %v1702 = vsel %vm771, %v1658, 0.0
      %v1703 = vadd.f32 %v1701, %v1702
      %v1704 = vsel %vm771, %v1659, 0.0
      %v1705 = vadd.f32 %v1703, %v1704
      %v1706 = vsel %vm771, %v1660, 0.0
      %v1707 = vadd.f32 %v1705, %v1706
      %v1708 = vsel %vm771, %v1661, 0.0
      %v1709 = vadd.f32 %v1707, %v1708
      %v1710 = vsel %vm771, %v1662, 0.0
      %v1711 = vadd.f32 %v1709, %v1710
      %v1712 = vsel %vm771, %v1663, 0.0
      %v1713 = vadd.f32 %v1711, %v1712
      %v1714 = vsel %vm771, %v1664, 0.0
      %v1715 = vadd.f32 %v1713, %v1714
      %v1716 = vsel %vm771, %v1665, 0.0
      %v1717 = vadd.f32 %v1715, %v1716
      %v1718 = vsel %vm771, %v1666, 0.0
      %v1719 = vadd.f32 %v1717, %v1718
      %v1720 = vsel %vm771, %v1667, 0.0
      %v1721 = vadd.f32 %v1719, %v1720
      %v1722 = vsel %vm771, %v1668, 0.0
      %v1723 = vadd.f32 %v1721, %v1722
      %v1724 = vsel %vm771, %v1669, 0.0
      %v1725 = vadd.f32 %v1723, %v1724
      %v1726 = vsel %vm771, %v1670, 0.0
      %v1727 = vadd.f32 %v1725, %v1726
      %v1728 = vsel %vm771, %v1671, 0.0
      %v1729 = vadd.f32 %v1727, %v1728
      %v1730 = vsel %vm771, %v1672, 0.0
      %v1731 = vadd.f32 %v1729, %v1730
      %v1732 = vsel %vm771, %v1673, 0.0
      %v1733 = vadd.f32 %v1731, %v1732
      %v1734 = vsel %vm771, %v1674, 0.0
      %v1735 = vadd.f32 %v1733, %v1734
      %v1736 = vsel %vm771, %v1675, 0.0
      %v1737 = vadd.f32 %v1735, %v1736
      %v1738 = vsel %vm771, %v1676, 0.0
      %v1739 = vadd.f32 %v1737, %v1738
      %v1740 = vrot.slane %v1739, 4
      %v1741 = vadd.f32 %v1739, %v1740
      %v1742 = vrot.slane %v1741, 2
      %v1743 = vadd.f32 %v1741, %v1742
      %v1744 = vrot.slane %v1743, 1
      %v1745 = vadd.f32 %v1743, %v1744
      %v1746 = vsel %vm382, %v1644, %v1745
      %1747 = vst.msk [vmem:[%s284] sm:$0x3] %vm1574, %v1746
      %p1748 = scmp.lt.s32.totalorder %s18, 3
      %s1749 = scalar_select %p1748, %s18, 3
      %s1750 = smul.addr %s1749, 32
      %s1751 = smul.addr %s1750, 8
      %s1752 = scalar_lea.vmem %s3, %s1751
      %p1753 = scmp.lt.s32.totalorder %s18, 3
      %s1754 = scalar_select %p1753, %s18, 3
      %s1755 = smul.addr %s1754, 32
      %s1756 = smul.addr %s1755, 8
      %s1757 = scalar_lea.vmem %s4, %s1756
      %p1758 = scmp.lt.s32.totalorder %s18, 3
      %s1759 = scalar_select %p1758, %s18, 3
      %s1760 = smul.addr %s1759, 2
      %s1761 = scalar_lea.vmem %s5, %s1760
      %p1762 = scmp.lt.s32.totalorder %s18, 3
      %s1763 = scalar_select %p1762, %s18, 3
      %s1764 = smul.addr %s1763, 2
      %s1765 = scalar_lea.vmem %s6, %s1764
      // Predicated region
      $region33: #{residual_block.3} parent=31 // pred_check
        %p1766 = pneg %p104
      $region34: #{residual_block.3} parent=31 // pred_check_branch
        %1768 = sbr.rel (%p1766) target = $region36
      $region35: #{residual_block.3} parent=31 // pred_region
        _
      $region36: #{residual_block.3} parent=31 // pred_fallthru
        _
      // Predicated region
      $region37: #{residual_block.3} parent=31 // pred_check
        %p1769 = pneg %p130
      $region38: #{residual_block.3} parent=31 // pred_check_branch
        %1771 = sbr.rel (%p1769) target = $region40
      $region39: #{residual_block.3} parent=31 // pred_region
        _
      $region40: #{residual_block.3} parent=31 // pred_fallthru
        _
      // Predicated region
      $region41: #{residual_block.3} parent=31 // pred_check
        %p1772 = pneg %p156
      $region42: #{residual_block.3} parent=31 // pred_check_branch
        %1774 = sbr.rel (%p1772) target = $region44
      $region43: #{residual_block.3} parent=31 // pred_region
        _
      $region44: #{residual_block.3} parent=31 // pred_fallthru
        _
      // Predicated region
      $region45: #{residual_block.3} parent=31 // pred_check
        %p1775 = pneg %p182
      $region46: #{residual_block.3} parent=31 // pred_check_branch
        %1777 = sbr.rel (%p1775) target = $region48
      $region47: #{residual_block.3} parent=31 // pred_region
        _
      $region48: #{residual_block.3} parent=31 // pred_fallthru
        _
    $region32: #{residual_block.3} parent=5 // pred_fallthru
      _
    %p1778 = scmp.le.s32.totalorder 2, %s13
    // Predicated region
    $region49: #{residual_block.3} parent=5 // pred_check
      %p1779 = pneg %p1778
    $region50: #{residual_block.3} parent=5 // pred_check_branch
      %1781 = sbr.rel (%p1779) target = $region52
    $region51: #{residual_block.3} parent=5 // pred_region
      %s1782 = ssub.s32 %s13, 2
      // Predicated region
      $region53: #{residual_block.3} parent=51 // pred_check
        %p1783 = pneg %p110
      $region54: #{residual_block.3} parent=51 // pred_check_branch
        %1785 = sbr.rel (%p1783) target = $region56
      $region55: #{residual_block.3} parent=51 // pred_region
        %p1786 = scmp.lt.s32.totalorder %s19, 3
        %s1787 = scalar_select %p1786, %s19, 3
        %s1788 = smul.addr %s1787, 32
        %s1789 = smul.addr %s1788, 8
        %s1790 = scalar_lea.vmem %s3, %s1789
      $region56: #{residual_block.3} parent=51 // pred_fallthru
        _
      // Predicated region
      $region57: #{residual_block.3} parent=51 // pred_check
        %p1791 = pneg %p136
      $region58: #{residual_block.3} parent=51 // pred_check_branch
        %1793 = sbr.rel (%p1791) target = $region60
      $region59: #{residual_block.3} parent=51 // pred_region
        %p1794 = scmp.lt.s32.totalorder %s19, 3
        %s1795 = scalar_select %p1794, %s19, 3
        %s1796 = smul.addr %s1795, 32
        %s1797 = smul.addr %s1796, 8
        %s1798 = scalar_lea.vmem %s4, %s1797
      $region60: #{residual_block.3} parent=51 // pred_fallthru
        _
      // Predicated region
      $region61: #{residual_block.3} parent=51 // pred_check
        %p1799 = pneg %p162
      $region62: #{residual_block.3} parent=51 // pred_check_branch
        %1801 = sbr.rel (%p1799) target = $region64
      $region63: #{residual_block.3} parent=51 // pred_region
        %p1802 = scmp.lt.s32.totalorder %s19, 3
        %s1803 = scalar_select %p1802, %s19, 3
        %s1804 = smul.addr %s1803, 2
        %s1805 = scalar_lea.vmem %s5, %s1804
      $region64: #{residual_block.3} parent=51 // pred_fallthru
        _
      // Predicated region
      $region65: #{residual_block.3} parent=51 // pred_check
        %p1806 = pneg %p188
      $region66: #{residual_block.3} parent=51 // pred_check_branch
        %1808 = sbr.rel (%p1806) target = $region68
      $region67: #{residual_block.3} parent=51 // pred_region
        %p1809 = scmp.lt.s32.totalorder %s19, 3
        %s1810 = scalar_select %p1809, %s19, 3
        %s1811 = smul.addr %s1810, 2
        %s1812 = scalar_lea.vmem %s6, %s1811
      $region68: #{residual_block.3} parent=51 // pred_fallthru
        _
    $region52: #{residual_block.3} parent=5 // pred_fallthru
      _
  $region6: #{residual_block.3} parent=0 // loop_footer
    %s17 = sadd.s32 1, %s13
  $region7: #{residual_block.3} parent=0 // loop_footer_branch
    %12 = sbr.rel target = $region3
  $region8: #{residual_block.3} parent=0 // loop_exit
    _

// kernel: residual_block.4
$region0: #{residual_block.4}
  #allocation0 [shape = 'u32[]', space=smem, size = 0x4, offset = 0x4, fixed_abs, tag = 'smem constant byte address 0x4 - core index']
  #allocation1 [shape = 'u32[144,128]{1,0:T(1,128)}', space=vmem, size = 0x12000, scoped, tag = 'internal scratch']
  %s0 = inlined_call_operand.vmem [shape: f32[4,256,16], index: 0, kind: input, shape index: {}]
  %s1 = inlined_call_operand.vmem [shape: f32[1,16], index: 1, kind: input, shape index: {}]
  %s2 = inlined_call_operand.vmem [shape: f32[1,16], index: 2, kind: input, shape index: {}]
  %s3 = inlined_call_operand.vmem [shape: bf16[48,16], index: 3, kind: input, shape index: {}]
  %s4 = inlined_call_operand.vmem [shape: f32[4,256,16], index: 4, kind: output, shape index: {0}]
  %s5 = inlined_call_operand.vmem [shape: f32[4,2,16], index: 5, kind: output, shape index: {1}]
  %6 = xla_tuple %s4, %s5
  %s7 = sld [smem:[#allocation0]]
  $region57: #{residual_block.4} parent=0
    _
  %s9 = ssub.s32 1, %s7
  %s10 = scalar_select 0, %s9, %s7
  loop: start=0, step=1, limit=6
  $region2: #{residual_block.4} parent=0 // loop_pre_header
    _
  $region3: #{residual_block.4} parent=0 // loop_header
    %s12 = sphi 0, %s16
    %p13 = scmp.ge.s32.totalorder %s12, 6
    %s22 = sphi 0, %s24
    %s25 = sphi 0, %s22
    %s26 = sphi 0, %s25
    %s42 = sphi 0, %s26
    %s46 = sphi 0, %s46
    %s48 = sphi 0, %s46
    %s49 = sphi 0, %s48
    %s63 = sphi 0, %s49
    %s67 = sphi 0, %s67
    %s69 = sphi 0, %s67
    %s70 = sphi 0, %s69
    %s84 = sphi 0, %s70
    %s88 = sphi 0, %s88
    %s90 = sphi 0, %s88
    %s91 = sphi 0, %s90
    %s105 = sphi 0, %s91
    %s111 = sphi 0, %s113
    %s114 = sphi 0, %s111
    %s115 = sphi 0, %s114
    %s131 = sphi 0, %s115
    %s137 = sphi 0, %s139
    %s140 = sphi 0, %s137
    %s141 = sphi 0, %s140
    %s157 = sphi 0, %s141
  $region4: #{residual_block.4} parent=0 // loop_header_branch
    %15 = sbr.rel (%p13) target = $region8
  $region5: #{residual_block.4} parent=0 // loop_body
    %s17 = ssub.s32 %s12, 1
    %s18 = ssub.s32 %s12, 2
    %s19 = sadd.s32 %s12, 1
    %s20 = ssub.s32 %s12, %s19
    %p21 = scmp.eq.s32.totalorder %s20, 0
    %s23 = sadd.s32 %s22, 1
    %s24 = scalar_select %p21, %s22, %s23
    %p27 = pneg %p21
    %p28 = scmp.eq.s32.totalorder %s12, 3
    %p29 = por %p27, %p28
    %p30 = scmp.ne.s32.totalorder %s22, %s25
    %p31 = scmp.eq.s32.totalorder %s12, 0
    %p32 = por %p30, %p31
    %p33 = scmp.ne.s32.totalorder %s22, %s25
    %p34 = scmp.eq.s32.totalorder %s17, 3
    %p35 = por %p33, %p34
    %p36 = scmp.ne.s32.totalorder %s25, %s26
    %p37 = scmp.eq.s32.totalorder %s17, 0
    %p38 = por %p36, %p37
    %p39 = scmp.ne.s32.totalorder %s25, %s26
    %p40 = scmp.eq.s32.totalorder %s18, 3
    %p41 = por %p39, %p40
    %p43 = scmp.ne.s32.totalorder %s26, %s42
    %p44 = scmp.eq.s32.totalorder %s18, 0
    %p45 = por %p43, %p44
    %s47 = sadd.s32 %s46, 1
    %p50 = scmp.eq.s32.totalorder %s12, 3
    %p51 = scmp.ne.s32.totalorder %s46, %s48
    %p52 = scmp.eq.s32.totalorder %s12, 0
    %p53 = por %p51, %p52
    %p54 = scmp.ne.s32.totalorder %s46, %s48
    %p55 = scmp.eq.s32.totalorder %s17, 3
    %p56 = por %p54, %p55
    %p57 = scmp.ne.s32.totalorder %s48, %s49
    %p58 = scmp.eq.s32.totalorder %s17, 0
    %p59 = por %p57, %p58
    %p60 = scmp.ne.s32.totalorder %s48, %s49
    %p61 = scmp.eq.s32.totalorder %s18, 3
    %p62 = por %p60, %p61
    %p64 = scmp.ne.s32.totalorder %s49, %s63
    %p65 = scmp.eq.s32.totalorder %s18, 0
    %p66 = por %p64, %p65
    %s68 = sadd.s32 %s67, 1
    %p71 = scmp.eq.s32.totalorder %s12, 3
    %p72 = scmp.ne.s32.totalorder %s67, %s69
    %p73 = scmp.eq.s32.totalorder %s12, 0
    %p74 = por %p72, %p73
    %p75 = scmp.ne.s32.totalorder %s67, %s69
    %p76 = scmp.eq.s32.totalorder %s17, 3
    %p77 = por %p75, %p76
    %p78 = scmp.ne.s32.totalorder %s69, %s70
    %p79 = scmp.eq.s32.totalorder %s17, 0
    %p80 = por %p78, %p79
    %p81 = scmp.ne.s32.totalorder %s69, %s70
    %p82 = scmp.eq.s32.totalorder %s18, 3
    %p83 = por %p81, %p82
    %p85 = scmp.ne.s32.totalorder %s70, %s84
    %p86 = scmp.eq.s32.totalorder %s18, 0
    %p87 = por %p85, %p86
    %s89 = sadd.s32 %s88, 1
    %p92 = scmp.eq.s32.totalorder %s12, 3
    %p93 = scmp.ne.s32.totalorder %s88, %s90
    %p94 = scmp.eq.s32.totalorder %s12, 0
    %p95 = por %p93, %p94
    %p96 = scmp.ne.s32.totalorder %s88, %s90
    %p97 = scmp.eq.s32.totalorder %s17, 3
    %p98 = por %p96, %p97
    %p99 = scmp.ne.s32.totalorder %s90, %s91
    %p100 = scmp.eq.s32.totalorder %s17, 0
    %p101 = por %p99, %p100
    %p102 = scmp.ne.s32.totalorder %s90, %s91
    %p103 = scmp.eq.s32.totalorder %s18, 3
    %p104 = por %p102, %p103
    %p106 = scmp.ne.s32.totalorder %s91, %s105
    %p107 = scmp.eq.s32.totalorder %s18, 0
    %p108 = por %p106, %p107
    %s109 = ssub.s32 %s12, %s19
    %p110 = scmp.eq.s32.totalorder %s109, 0
    %s112 = sadd.s32 %s111, 1
    %s113 = scalar_select %p110, %s111, %s112
    %p116 = pneg %p110
    %p117 = scmp.eq.s32.totalorder %s12, 3
    %p118 = por %p116, %p117
    %p119 = scmp.ne.s32.totalorder %s111, %s114
    %p120 = scmp.eq.s32.totalorder %s12, 0
    %p121 = por %p119, %p120
    %p122 = scmp.ne.s32.totalorder %s111, %s114
    %p123 = scmp.eq.s32.totalorder %s17, 3
    %p124 = por %p122, %p123
    %p125 = scmp.ne.s32.totalorder %s114, %s115
    %p126 = scmp.eq.s32.totalorder %s17, 0
    %p127 = por %p125, %p126
    %p128 = scmp.ne.s32.totalorder %s114, %s115
    %p129 = scmp.eq.s32.totalorder %s18, 3
    %p130 = por %p128, %p129
    %p132 = scmp.ne.s32.totalorder %s115, %s131
    %p133 = scmp.eq.s32.totalorder %s18, 0
    %p134 = por %p132, %p133
    %s135 = ssub.s32 %s12, %s19
    %p136 = scmp.eq.s32.totalorder %s135, 0
    %s138 = sadd.s32 %s137, 1
    %s139 = scalar_select %p136, %s137, %s138
    %p142 = pneg %p136
    %p143 = scmp.eq.s32.totalorder %s12, 3
    %p144 = por %p142, %p143
    %p145 = scmp.ne.s32.totalorder %s137, %s140
    %p146 = scmp.eq.s32.totalorder %s12, 0
    %p147 = por %p145, %p146
    %p148 = scmp.ne.s32.totalorder %s137, %s140
    %p149 = scmp.eq.s32.totalorder %s17, 3
    %p150 = por %p148, %p149
    %p151 = scmp.ne.s32.totalorder %s140, %s141
    %p152 = scmp.eq.s32.totalorder %s17, 0
    %p153 = por %p151, %p152
    %p154 = scmp.ne.s32.totalorder %s140, %s141
    %p155 = scmp.eq.s32.totalorder %s18, 3
    %p156 = por %p154, %p155
    %p158 = scmp.ne.s32.totalorder %s141, %s157
    %p159 = scmp.eq.s32.totalorder %s18, 0
    %p160 = por %p158, %p159
    %p161 = scmp.le.s32.totalorder 1, %s12
    %p162 = scmp.lt.s32.totalorder %s12, 5
    %p163 = pnand %p161, %p162
    %p164 = pneg %p163
    // Predicated region
    $region9: #{residual_block.4} parent=5 // pred_check
      _
    $region10: #{residual_block.4} parent=5 // pred_check_branch
      %166 = sbr.rel (%p163) target = $region12
    $region11: #{residual_block.4} parent=5 // pred_region
      %s167 = ssub.s32 %s12, 1
      // Predicated region
      $region13: #{residual_block.4} parent=11 // pred_check
        %p168 = pneg %p59
      $region14: #{residual_block.4} parent=11 // pred_check_branch
        %170 = sbr.rel (%p168) target = $region16
      $region15: #{residual_block.4} parent=11 // pred_region
        _
      $region16: #{residual_block.4} parent=11 // pred_fallthru
        _
      // Predicated region
      $region17: #{residual_block.4} parent=11 // pred_check
        %p171 = pneg %p80
      $region18: #{residual_block.4} parent=11 // pred_check_branch
        %173 = sbr.rel (%p171) target = $region20
      $region19: #{residual_block.4} parent=11 // pred_region
        _
      $region20: #{residual_block.4} parent=11 // pred_fallthru
        _
      // Predicated region
      $region21: #{residual_block.4} parent=11 // pred_check
        %p174 = pneg %p101
      $region22: #{residual_block.4} parent=11 // pred_check_branch
        %176 = sbr.rel (%p174) target = $region24
      $region23: #{residual_block.4} parent=11 // pred_region
        _
      $region24: #{residual_block.4} parent=11 // pred_fallthru
        _
    $region12: #{residual_block.4} parent=5 // pred_fallthru
      _
    %p177 = scmp.lt.s32.totalorder %s12, 4
    // Predicated region
    $region25: #{residual_block.4} parent=5 // pred_check
      %p178 = pneg %p177
    $region26: #{residual_block.4} parent=5 // pred_check_branch
      %180 = sbr.rel (%p178) target = $region28
    $region27: #{residual_block.4} parent=5 // pred_region
      // Predicated region
      $region29: #{residual_block.4} parent=27 // pred_check
        %p181 = pneg %p32
      $region30: #{residual_block.4} parent=27 // pred_check_branch
        %183 = sbr.rel (%p181) target = $region32
      $region31: #{residual_block.4} parent=27 // pred_region
        %p184 = scmp.lt.s32.totalorder %s12, 3
        %s185 = scalar_select %p184, %s12, 3
        %s186 = smul.addr %s185, 32
        %s187 = smul.addr %s186, 8
        %s188 = scalar_lea.vmem %s0, %s187
      $region32: #{residual_block.4} parent=27 // pred_fallthru
        _
    $region28: #{residual_block.4} parent=5 // pred_fallthru
      _
    %p189 = scmp.le.s32.totalorder 1, %s12
    %p190 = scmp.lt.s32.totalorder %s12, 5
    %p191 = pnand %p189, %p190
    %p192 = pneg %p191
    // Predicated region
    $region33: #{residual_block.4} parent=5 // pred_check
      _
    $region34: #{residual_block.4} parent=5 // pred_check_branch
      %194 = sbr.rel (%p191) target = $region36
    $region35: #{residual_block.4} parent=5 // pred_region
      %s195 = ssub.s32 %s12, 1
      %p196 = scmp.lt.s32.totalorder %s17, 3
      %s197 = scalar_select %p196, %s17, 3
      %s198 = smul.addr %s197, 32
      %s199 = smul.addr %s198, 8
      %s200 = scalar_lea.vmem %s0, %s199
      %p201 = pneg %p38
      %p202 = pneg %p35
      %p203 = pneg %p59
      %p204 = pneg %p56
      %p205 = pneg %p80
      %p206 = pneg %p77
      %p207 = pneg %p101
      %p208 = pneg %p98
      %p209 = pneg %p127
      %p210 = pneg %p124
      %p211 = scmp.lt.s32.totalorder %s17, 3
      %s212 = scalar_select %p211, %s17, 3
      %s213 = smul.addr %s212, 32
      %s214 = smul.addr %s213, 8
      %s215 = scalar_lea.vmem %s4, %s214
      %p216 = pneg %p153
      %p217 = pneg %p150
      %p218 = scmp.lt.s32.totalorder %s17, 3
      %s219 = scalar_select %p218, %s17, 3
      %s220 = smul.addr %s219, 2
      %s221 = scalar_lea.vmem %s5, %s220
      %p222 = scmp.lt.s32.totalorder %s17, 3
      %s223 = scalar_select %p222, %s17, 3
      %s224 = smul.addr %s223, 32
      %s225 = smul.addr %s224, 8
      %s226 = scalar_lea.vmem %s0, %s225
      %p227 = scmp.lt.s32.totalorder %s17, 3
      %s228 = scalar_select %p227, %s17, 3
      %s229 = smul.addr %s228, 32
      %s230 = smul.addr %s229, 8
      %s231 = scalar_lea.vmem %s4, %s230
      %p232 = scmp.lt.s32.totalorder %s17, 3
      %s233 = scalar_select %p232, %s17, 3
      %s234 = smul.addr %s233, 2
      %s235 = scalar_lea.vmem %s5, %s234
      %v237 = vld [vmem:[%s226] sm:$0xff]
      %v238 = vld [vmem:[%s226 + $0x8] sm:$0xff]
      %v239 = vld [vmem:[%s226 + $0x10] sm:$0xff]
      %v240 = vld [vmem:[%s226 + $0x18] sm:$0xff]
      %v241 = vld [vmem:[%s226 + $0x20] sm:$0xff]
      %v242 = vld [vmem:[%s226 + $0x28] sm:$0xff]
      %v243 = vld [vmem:[%s226 + $0x30] sm:$0xff]
      %v244 = vld [vmem:[%s226 + $0x38] sm:$0xff]
      %v245 = vld [vmem:[%s226 + $0x40] sm:$0xff]
      %v246 = vld [vmem:[%s226 + $0x48] sm:$0xff]
      %v247 = vld [vmem:[%s226 + $0x50] sm:$0xff]
      %v248 = vld [vmem:[%s226 + $0x58] sm:$0xff]
      %v249 = vld [vmem:[%s226 + $0x60] sm:$0xff]
      %v250 = vld [vmem:[%s226 + $0x68] sm:$0xff]
      %v251 = vld [vmem:[%s226 + $0x70] sm:$0xff]
      %v252 = vld [vmem:[%s226 + $0x78] sm:$0xff]
      %v253 = vld [vmem:[%s226 + $0x80] sm:$0xff]
      %v254 = vld [vmem:[%s226 + $0x88] sm:$0xff]
      %v255 = vld [vmem:[%s226 + $0x90] sm:$0xff]
      %v256 = vld [vmem:[%s226 + $0x98] sm:$0xff]
      %v257 = vld [vmem:[%s226 + $0xa0] sm:$0xff]
      %v258 = vld [vmem:[%s226 + $0xa8] sm:$0xff]
      %v259 = vld [vmem:[%s226 + $0xb0] sm:$0xff]
      %v260 = vld [vmem:[%s226 + $0xb8] sm:$0xff]
      %v261 = vld [vmem:[%s226 + $0xc0] sm:$0xff]
      %v262 = vld [vmem:[%s226 + $0xc8] sm:$0xff]
      %v263 = vld [vmem:[%s226 + $0xd0] sm:$0xff]
      %v264 = vld [vmem:[%s226 + $0xd8] sm:$0xff]
      %v265 = vld [vmem:[%s226 + $0xe0] sm:$0xff]
      %v266 = vld [vmem:[%s226 + $0xe8] sm:$0xff]
      %v267 = vld [vmem:[%s226 + $0xf0] sm:$0xff]
      %v268 = vld [vmem:[%s226 + $0xf8] sm:$0xff]
      %v269 = vld [vmem:[%s1] sm:$0x1]
      %v271 = vlaneseq
      %v272 = vshrl.u32 %v271, 7
      %v273 = vsub.s32 0, %v272
      %v274 = vrot.slane %v269, %v273
      %v276 = vmul.f32 %v237, %v274
      %v277 = vmul.f32 %v238, %v274
      %v278 = vmul.f32 %v239, %v274
      %v279 = vmul.f32 %v240, %v274
      %v280 = vmul.f32 %v241, %v274
      %v281 = vmul.f32 %v242, %v274
      %v282 = vmul.f32 %v243, %v274
      %v283 = vmul.f32 %v244, %v274
      %v284 = vmul.f32 %v245, %v274
      %v285 = vmul.f32 %v246, %v274
      %v286 = vmul.f32 %v247, %v274
      %v287 = vmul.f32 %v248, %v274
      %v288 = vmul.f32 %v249, %v274
      %v289 = vmul.f32 %v250, %v274
      %v290 = vmul.f32 %v251, %v274
      %v291 = vmul.f32 %v252, %v274
      %v292 = vmul.f32 %v253, %v274
      %v293 = vmul.f32 %v254, %v274
      %v294 = vmul.f32 %v255, %v274
      %v295 = vmul.f32 %v256, %v274
      %v296 = vmul.f32 %v257, %v274
      %v297 = vmul.f32 %v258, %v274
      %v298 = vmul.f32 %v259, %v274
      %v299 = vmul.f32 %v260, %v274
      %v300 = vmul.f32 %v261, %v274
      %v301 = vmul.f32 %v262, %v274
      %v302 = vmul.f32 %v263, %v274
      %v303 = vmul.f32 %v264, %v274
      %v304 = vmul.f32 %v265, %v274
      %v305 = vmul.f32 %v266, %v274
      %v306 = vmul.f32 %v267, %v274
      %v307 = vmul.f32 %v268, %v274
      %v308 = vld [vmem:[%s2] sm:$0x1]
      %v310 = vlaneseq
      %v311 = vshrl.u32 %v310, 7
      %v312 = vsub.s32 0, %v311
      %v313 = vrot.slane %v308, %v312
      %v315 = vadd.f32 %v276, %v313
      %v316 = vadd.f32 %v277, %v313
      %v317 = vadd.f32 %v278, %v313
      %v318 = vadd.f32 %v279, %v313
      %v319 = vadd.f32 %v280, %v313
      %v320 = vadd.f32 %v281, %v313
      %v321 = vadd.f32 %v282, %v313
      %v322 = vadd.f32 %v283, %v313
      %v323 = vadd.f32 %v284, %v313
      %v324 = vadd.f32 %v285, %v313
      %v325 = vadd.f32 %v286, %v313
      %v326 = vadd.f32 %v287, %v313
      %v327 = vadd.f32 %v288, %v313
      %v328 = vadd.f32 %v289, %v313
      %v329 = vadd.f32 %v290, %v313
      %v330 = vadd.f32 %v291, %v313
      %v331 = vadd.f32 %v292, %v313
      %v332 = vadd.f32 %v293, %v313
      %v333 = vadd.f32 %v294, %v313
      %v334 = vadd.f32 %v295, %v313
      %v335 = vadd.f32 %v296, %v313
      %v336 = vadd.f32 %v297, %v313
      %v337 = vadd.f32 %v298, %v313
      %v338 = vadd.f32 %v299, %v313
      %v339 = vadd.f32 %v300, %v313
      %v340 = vadd.f32 %v301, %v313
      %v341 = vadd.f32 %v302, %v313
      %v342 = vadd.f32 %v303, %v313
      %v343 = vadd.f32 %v304, %v313
      %v344 = vadd.f32 %v305, %v313
      %v345 = vadd.f32 %v306, %v313
      %v346 = vadd.f32 %v307, %v313
      %v347 = vmul.f32 %v315, 1.442695
      %v348 = vpow.pop %v347
      %v349 = vmul.f32 %v316, 1.442695
      %v350 = vpow.pop %v349
      %v351 = vmul.f32 %v317, 1.442695
      %v352 = vpow.pop %v351
      %v353 = vmul.f32 %v318, 1.442695
      %v354 = vpow.pop %v353
      %v355 = vmul.f32 %v319, 1.442695
      %v356 = vpow.pop %v355
      %v357 = vmul.f32 %v320, 1.442695
      %v358 = vpow.pop %v357
      %v359 = vmul.f32 %v321, 1.442695
      %v360 = vpow.pop %v359
      %v361 = vmul.f32 %v322, 1.442695
      %v362 = vpow.pop %v361
      %v363 = vmul.f32 %v323, 1.442695
      %v364 = vpow.pop %v363
      %v365 = vmul.f32 %v324, 1.442695
      %v366 = vpow.pop %v365
      %v367 = vmul.f32 %v325, 1.442695
      %v368 = vpow.pop %v367
      %v369 = vmul.f32 %v326, 1.442695
      %v370 = vpow.pop %v369
      %v371 = vmul.f32 %v327, 1.442695
      %v372 = vpow.pop %v371
      %v373 = vmul.f32 %v328, 1.442695
      %v374 = vpow.pop %v373
      %v375 = vmul.f32 %v329, 1.442695
      %v376 = vpow.pop %v375
      %v377 = vmul.f32 %v330, 1.442695
      %v378 = vpow.pop %v377
      %v379 = vmul.f32 %v331, 1.442695
      %v380 = vpow.pop %v379
      %v381 = vmul.f32 %v332, 1.442695
      %v382 = vpow.pop %v381
      %v383 = vmul.f32 %v333, 1.442695
      %v384 = vpow.pop %v383
      %v385 = vmul.f32 %v334, 1.442695
      %v386 = vpow.pop %v385
      %v387 = vmul.f32 %v335, 1.442695
      %v388 = vpow.pop %v387
      %v389 = vmul.f32 %v336, 1.442695
      %v390 = vpow.pop %v389
      %v391 = vmul.f32 %v337, 1.442695
      %v392 = vpow.pop %v391
      %v393 = vmul.f32 %v338, 1.442695
      %v394 = vpow.pop %v393
      %v395 = vmul.f32 %v339, 1.442695
      %v396 = vpow.pop %v395
      %v397 = vmul.f32 %v340, 1.442695
      %v398 = vpow.pop %v397
      %v399 = vmul.f32 %v341, 1.442695
      %v400 = vpow.pop %v399
      %v401 = vmul.f32 %v342, 1.442695
      %v402 = vpow.pop %v401
      %v403 = vmul.f32 %v343, 1.442695
      %v404 = vpow.pop %v403
      %v405 = vmul.f32 %v344, 1.442695
      %v406 = vpow.pop %v405
      %v407 = vmul.f32 %v345, 1.442695
      %v408 = vpow.pop %v407
      %v409 = vmul.f32 %v346, 1.442695
      %v410 = vpow.pop %v409
      %v411 = vadd.f32 %v348, 2.0
      %v412 = vadd.f32 %v350, 2.0
      %v413 = vadd.f32 %v352, 2.0
      %v414 = vadd.f32 %v354, 2.0
      %v415 = vadd.f32 %v356, 2.0
      %v416 = vadd.f32 %v358, 2.0
      %v417 = vadd.f32 %v360, 2.0
      %v418 = vadd.f32 %v362, 2.0
      %v419 = vadd.f32 %v364, 2.0
      %v420 = vadd.f32 %v366, 2.0
      %v421 = vadd.f32 %v368, 2.0
      %v422 = vadd.f32 %v370, 2.0
      %v423 = vadd.f32 %v372, 2.0
      %v424 = vadd.f32 %v374, 2.0
      %v425 = vadd.f32 %v376, 2.0
      %v426 = vadd.f32 %v378, 2.0
      %v427 = vadd.f32 %v380, 2.0
      %v428 = vadd.f32 %v382, 2.0
      %v429 = vadd.f32 %v384, 2.0
      %v430 = vadd.f32 %v386, 2.0
      %v431 = vadd.f32 %v388, 2.0
      %v432 = vadd.f32 %v390, 2.0
      %v433 = vadd.f32 %v392, 2.0
      %v434 = vadd.f32 %v394, 2.0
      %v435 = vadd.f32 %v396, 2.0
      %v436 = vadd.f32 %v398, 2.0
      %v437 = vadd.f32 %v400, 2.0
      %v438 = vadd.f32 %v402, 2.0
      %v439 = vadd.f32 %v404, 2.0
      %v440 = vadd.f32 %v406, 2.0
      %v441 = vadd.f32 %v408, 2.0
      %v442 = vadd.f32 %v410, 2.0
      %v443 = vmul.f32 %v348, %v411
      %v444 = vmul.f32 %v350, %v412
      %v445 = vmul.f32 %v352, %v413
      %v446 = vmul.f32 %v354, %v414
      %v447 = vmul.f32 %v356, %v415
      %v448 = vmul.f32 %v358, %v416
      %v449 = vmul.f32 %v360, %v417
      %v450 = vmul.f32 %v362, %v418
      %v451 = vmul.f32 %v364, %v419
      %v452 = vmul.f32 %v366, %v420
      %v453 = vmul.f32 %v368, %v421
      %v454 = vmul.f32 %v370, %v422
      %v455 = vmul.f32 %v372, %v423
      %v456 = vmul.f32 %v374, %v424
      %v457 = vmul.f32 %v376, %v425
      %v458 = vmul.f32 %v378, %v426
      %v459 = vmul.f32 %v380, %v427
      %v460 = vmul.f32 %v382, %v428
      %v461 = vmul.f32 %v384, %v429
      %v462 = vmul.f32 %v386, %v430
      %v463 = vmul.f32 %v388, %v431
      %v464 = vmul.f32 %v390, %v432
      %v465 = vmul.f32 %v392, %v433
      %v466 = vmul.f32 %v394, %v434
      %v467 = vmul.f32 %v396, %v435
      %v468 = vmul.f32 %v398, %v436
      %v469 = vmul.f32 %v400, %v437
      %v470 = vmul.f32 %v402, %v438
      %v471 = vmul.f32 %v404, %v439
      %v472 = vmul.f32 %v406, %v440
      %v473 = vmul.f32 %v408, %v441
      %v474 = vmul.f32 %v410, %v442
      %v475 = vadd.f32 %v443, 2.0
      %v476 = vadd.f32 %v444, 2.0
      %v477 = vadd.f32 %v445, 2.0
      %v478 = vadd.f32 %v446, 2.0
      %v479 = vadd.f32 %v447, 2.0
      %v480 = vadd.f32 %v448, 2.0
      %v481 = vadd.f32 %v449, 2.0
      %v482 = vadd.f32 %v450, 2.0
      %v483 = vadd.f32 %v451, 2.0
      %v484 = vadd.f32 %v452, 2.0
      %v485 = vadd.f32 %v453, 2.0
      %v486 = vadd.f32 %v454, 2.0
      %v487 = vadd.f32 %v455, 2.0
      %v488 = vadd.f32 %v456, 2.0
      %v489 = vadd.f32 %v457, 2.0
      %v490 = vadd.f32 %v458, 2.0
      %v491 = vadd.f32 %v459, 2.0
      %v492 = vadd.f32 %v460, 2.0
      %v493 = vadd.f32 %v461, 2.0
      %v494 = vadd.f32 %v462, 2.0
      %v495 = vadd.f32 %v463, 2.0
      %v496 = vadd.f32 %v464, 2.0
      %v497 = vadd.f32 %v465, 2.0
      %v498 = vadd.f32 %v466, 2.0
      %v499 = vadd.f32 %v467, 2.0
      %v500 = vadd.f32 %v468, 2.0
      %v501 = vadd.f32 %v469, 2.0
      %v502 = vadd.f32 %v470, 2.0
      %v503 = vadd.f32 %v471, 2.0
      %v504 = vadd.f32 %v472, 2.0
      %v505 = vadd.f32 %v473, 2.0
      %v506 = vadd.f32 %v474, 2.0
      %v507 = vrcp.pop %v475
      %v508 = vrcp.pop %v476
      %v509 = vrcp.pop %v477
      %v510 = vrcp.pop %v478
      %v511 = vrcp.pop %v479
      %v512 = vrcp.pop %v480
      %v513 = vrcp.pop %v481
      %v514 = vrcp.pop %v482
      %v515 = vrcp.pop %v483
      %v516 = vrcp.pop %v484
      %v517 = vrcp.pop %v485
      %v518 = vrcp.pop %v486
      %v519 = vrcp.pop %v487
      %v520 = vrcp.pop %v488
      %v521 = vrcp.pop %v489
      %v522 = vrcp.pop %v490
      %v523 = vrcp.pop %v491
      %v524 = vrcp.pop %v492
      %v525 = vrcp.pop %v493
      %v526 = vrcp.pop %v494
      %v527 = vrcp.pop %v495
      %v528 = vrcp.pop %v496
      %v529 = vrcp.pop %v497
      %v530 = vrcp.pop %v498
      %v531 = vrcp.pop %v499
      %v532 = vrcp.pop %v500
      %v533 = vrcp.pop %v501
      %v534 = vrcp.pop %v502
      %v535 = vrcp.pop %v503
      %v536 = vrcp.pop %v504
      %v537 = vrcp.pop %v505
      %v538 = vrcp.pop %v506
      %v539 = vmul.f32 %v507, 2.0
      %v540 = vmul.f32 %v508, 2.0
      %v541 = vmul.f32 %v509, 2.0
      %v542 = vmul.f32 %v510, 2.0
      %v543 = vmul.f32 %v511, 2.0
      %v544 = vmul.f32 %v512, 2.0
      %v545 = vmul.f32 %v513, 2.0
      %v546 = vmul.f32 %v514, 2.0
      %v547 = vmul.f32 %v515, 2.0
      %v548 = vmul.f32 %v516, 2.0
      %v549 = vmul.f32 %v517, 2.0
      %v550 = vmul.f32 %v518, 2.0
      %v551 = vmul.f32 %v519, 2.0
      %v552 = vmul.f32 %v520, 2.0
      %v553 = vmul.f32 %v521, 2.0
      %v554 = vmul.f32 %v522, 2.0
      %v555 = vmul.f32 %v523, 2.0
      %v556 = vmul.f32 %v524, 2.0
      %v557 = vmul.f32 %v525, 2.0
      %v558 = vmul.f32 %v526, 2.0
      %v559 = vmul.f32 %v527, 2.0
      %v560 = vmul.f32 %v528, 2.0
      %v561 = vmul.f32 %v529, 2.0
      %v562 = vmul.f32 %v530, 2.0
      %v563 = vmul.f32 %v531, 2.0
      %v564 = vmul.f32 %v532, 2.0
      %v565 = vmul.f32 %v533, 2.0
      %v566 = vmul.f32 %v534, 2.0
      %v567 = vmul.f32 %v535, 2.0
      %v568 = vmul.f32 %v536, 2.0
      %v569 = vmul.f32 %v537, 2.0
      %v570 = vmul.f32 %v538, 2.0
      %v571 = vsub.f32 1.0, %v539
      %v572 = vsub.f32 1.0, %v540
      %v573 = vsub.f32 1.0, %v541
      %v574 = vsub.f32 1.0, %v542
      %v575 = vsub.f32 1.0, %v543
      %v576 = vsub.f32 1.0, %v544
      %v577 = vsub.f32 1.0, %v545
      %v578 = vsub.f32 1.0, %v546
      %v579 = vsub.f32 1.0, %v547
      %v580 = vsub.f32 1.0, %v548
      %v581 = vsub.f32 1.0, %v549
      %v582 = vsub.f32 1.0, %v550
      %v583 = vsub.f32 1.0, %v551
      %v584 = vsub.f32 1.0, %v552
      %v585 = vsub.f32 1.0, %v553
      %v586 = vsub.f32 1.0, %v554
      %v587 = vsub.f32 1.0, %v555
      %v588 = vsub.f32 1.0, %v556
      %v589 = vsub.f32 1.0, %v557
      %v590 = vsub.f32 1.0, %v558
      %v591 = vsub.f32 1.0, %v559
      %v592 = vsub.f32 1.0, %v560
      %v593 = vsub.f32 1.0, %v561
      %v594 = vsub.f32 1.0, %v562
      %v595 = vsub.f32 1.0, %v563
      %v596 = vsub.f32 1.0, %v564
      %v597 = vsub.f32 1.0, %v565
      %v598 = vsub.f32 1.0, %v566
      %v599 = vsub.f32 1.0, %v567
      %v600 = vsub.f32 1.0, %v568
      %v601 = vsub.f32 1.0, %v569
      %v602 = vsub.f32 1.0, %v570
      %v603 = vmul.f32 %v315, %v571
      %v604 = vmul.f32 %v316, %v572
      %v605 = vmul.f32 %v317, %v573
      %v606 = vmul.f32 %v318, %v574
      %v607 = vmul.f32 %v319, %v575
      %v608 = vmul.f32 %v320, %v576
      %v609 = vmul.f32 %v321, %v577
      %v610 = vmul.f32 %v322, %v578
      %v611 = vmul.f32 %v323, %v579
      %v612 = vmul.f32 %v324, %v580
      %v613 = vmul.f32 %v325, %v581
      %v614 = vmul.f32 %v326, %v582
      %v615 = vmul.f32 %v327, %v583
      %v616 = vmul.f32 %v328, %v584
      %v617 = vmul.f32 %v329, %v585
      %v618 = vmul.f32 %v330, %v586
      %v619 = vmul.f32 %v331, %v587
      %v620 = vmul.f32 %v332, %v588
      %v621 = vmul.f32 %v333, %v589
      %v622 = vmul.f32 %v334, %v590
      %v623 = vmul.f32 %v335, %v591
      %v624 = vmul.f32 %v336, %v592
      %v625 = vmul.f32 %v337, %v593
      %v626 = vmul.f32 %v338, %v594
      %v627 = vmul.f32 %v339, %v595
      %v628 = vmul.f32 %v340, %v596
      %v629 = vmul.f32 %v341, %v597
      %v630 = vmul.f32 %v342, %v598
      %v631 = vmul.f32 %v343, %v599
      %v632 = vmul.f32 %v344, %v600
      %v633 = vmul.f32 %v345, %v601
      %v634 = vmul.f32 %v346, %v602
      %vm667 = vcmask 1040384
      %v668 = vrot.slane %v603, 7
      %v669 = vrot.slane %v604, 7
      %v670 = vsel %vm667, %v668, %v669
      %v671 = vrot.slane %v605, 7
      %v672 = vsel %vm667, %v669, %v671
      %v673 = vrot.slane %v606, 7
      %v674 = vsel %vm667, %v671, %v673
      %v675 = vrot.slane %v607, 7
      %v676 = vsel %vm667, %v673, %v675
      %v677 = vrot.slane %v608, 7
      %v678 = vsel %vm667, %v675, %v677
      %v679 = vrot.slane %v609, 7
      %v680 = vsel %vm667, %v677, %v679
      %v681 = vrot.slane %v610, 7
      %v682 = vsel %vm667, %v679, %v681
      %v683 = vrot.slane %v611, 7
      %v684 = vsel %vm667, %v681, %v683
      %v685 = vrot.slane %v612, 7
      %v686 = vsel %vm667, %v683, %v685
      %v687 = vrot.slane %v613, 7
      %v688 = vsel %vm667, %v685, %v687
      %v689 = vrot.slane %v614, 7
      %v690 = vsel %vm667, %v687, %v689
      %v691 = vrot.slane %v615, 7
      %v692 = vsel %vm667, %v689, %v691
      %v693 = vrot.slane %v616, 7
      %v694 = vsel %vm667, %v691, %v693
      %v695 = vrot.slane %v617, 7
      %v696 = vsel %vm667, %v693, %v695
      %v697 = vrot.slane %v618, 7
      %v698 = vsel %vm667, %v695, %v697
      %v699 = vrot.slane %v619, 7
      %v700 = vsel %vm667, %v697, %v699
      %v701 = vrot.slane %v620, 7
      %v702 = vsel %vm667, %v699, %v701
      %v703 = vrot.slane %v621, 7
      %v704 = vsel %vm667, %v701, %v703
      %v705 = vrot.slane %v622, 7
      %v706 = vsel %vm667, %v703, %v705
      %v707 = vrot.slane %v623, 7
      %v708 = vsel %vm667, %v705, %v707
      %v709 = vrot.slane %v624, 7
      %v710 = vsel %vm667, %v707, %v709
      %v711 = vrot.slane %v625, 7
      %v712 = vsel %vm667, %v709, %v711
      %v713 = vrot.slane %v626, 7
      %v714 = vsel %vm667, %v711, %v713
      %v715 = vrot.slane %v627, 7
      %v716 = vsel %vm667, %v713, %v715
      %v717 = vrot.slane %v628, 7
      %v718 = vsel %vm667, %v715, %v717
      %v719 = vrot.slane %v629, 7
      %v720 = vsel %vm667, %v717, %v719
      %v721 = vrot.slane %v630, 7
      %v722 = vsel %vm667, %v719, %v721
      %v723 = vrot.slane %v631, 7
      %v724 = vsel %vm667, %v721, %v723
      %v725 = vrot.slane %v632, 7
      %v726 = vsel %vm667, %v723, %v725
      %v727 = vrot.slane %v633, 7
      %v728 = vsel %vm667, %v725, %v727
      %v729 = vrot.slane %v634, 7
      %v730 = vsel %vm667, %v727, %v729
      %v763 = vsel %vm667, 0.0, %v668
      %vm764 = vcmask 1046528
      %v765 = vrot.slane %v603, 1
      %v766 = vrot.slane %v604, 1
      %v767 = vsel %vm764, %v765, %v766
      %v768 = vrot.slane %v605, 1
      %v769 = vsel %vm764, %v766, %v768
      %v770 = vrot.slane %v606, 1
      %v771 = vsel %vm764, %v768, %v770
      %v772 = vrot.slane %v607, 1
      %v773 = vsel %vm764, %v770, %v772
      %v774 = vrot.slane %v608, 1
      %v775 = vsel %vm764, %v772, %v774
      %v776 = vrot.slane %v609, 1
      %v777 = vsel %vm764, %v774, %v776
      %v778 = vrot.slane %v610, 1
      %v779 = vsel %vm764, %v776, %v778
      %v780 = vrot.slane %v611, 1
      %v781 = vsel %vm764, %v778, %v780
      %v782 = vrot.slane %v612, 1
      %v783 = vsel %vm764, %v780, %v782
      %v784 = vrot.slane %v613, 1
      %v785 = vsel %vm764, %v782, %v784
      %v786 = vrot.slane %v614, 1
      %v787 = vsel %vm764, %v784, %v786
      %v788 = vrot.slane %v615, 1
      %v789 = vsel %vm764, %v786, %v788
      %v790 = vrot.slane %v616, 1
      %v791 = vsel %vm764, %v788, %v790
      %v792 = vrot.slane %v617, 1
      %v793 = vsel %vm764, %v790, %v792
      %v794 = vrot.slane %v618, 1
      %v795 = vsel %vm764, %v792, %v794
      %v796 = vrot.slane %v619, 1
      %v797 = vsel %vm764, %v794, %v796
      %v798 = vrot.slane %v620, 1
      %v799 = vsel %vm764, %v796, %v798
      %v800 = vrot.slane %v621, 1
      %v801 = vsel %vm764, %v798, %v800
      %v802 = vrot.slane %v622, 1
      %v803 = vsel %vm764, %v800, %v802
      %v804 = vrot.slane %v623, 1
      %v805 = vsel %vm764, %v802, %v804
      %v806 = vrot.slane %v624, 1
      %v807 = vsel %vm764, %v804, %v806
      %v808 = vrot.slane %v625, 1
      %v809 = vsel %vm764, %v806, %v808
      %v810 = vrot.slane %v626, 1
      %v811 = vsel %vm764, %v808, %v810
      %v812 = vrot.slane %v627, 1
      %v813 = vsel %vm764, %v810, %v812
      %v814 = vrot.slane %v628, 1
      %v815 = vsel %vm764, %v812, %v814
      %v816 = vrot.slane %v629, 1
      %v817 = vsel %vm764, %v814, %v816
      %v818 = vrot.slane %v630, 1
      %v819 = vsel %vm764, %v816, %v818
      %v820 = vrot.slane %v631, 1
      %v821 = vsel %vm764, %v818, %v820
      %v822 = vrot.slane %v632, 1
      %v823 = vsel %vm764, %v820, %v822
      %v824 = vrot.slane %v633, 1
      %v825 = vsel %vm764, %v822, %v824
      %v826 = vrot.slane %v634, 1
      %v827 = vsel %vm764, %v824, %v826
      %v829 = vsel %vm764, %v826, 0.0
      %830 = vrot.lane.b32.xlu0 %v603, 16
      %v831 = vpop.permute.xlu0 %830
      %832 = vrot.lane.b32.xlu0 %v604, 16
      %v833 = vpop.permute.xlu0 %832
      %834 = vrot.lane.b32.xlu0 %v605, 16
      %v835 = vpop.permute.xlu0 %834
      %836 = vrot.lane.b32.xlu0 %v606, 16
      %v837 = vpop.permute.xlu0 %836
      %838 = vrot.lane.b32.xlu0 %v607, 16
      %v839 = vpop.permute.xlu0 %838
      %840 = vrot.lane.b32.xlu0 %v608, 16
      %v841 = vpop.permute.xlu0 %840
      %842 = vrot.lane.b32.xlu0 %v609, 16
      %v843 = vpop.permute.xlu0 %842
      %844 = vrot.lane.b32.xlu0 %v610, 16
      %v845 = vpop.permute.xlu0 %844
      %846 = vrot.lane.b32.xlu0 %v611, 16
      %v847 = vpop.permute.xlu0 %846
      %848 = vrot.lane.b32.xlu0 %v612, 16
      %v849 = vpop.permute.xlu0 %848
      %850 = vrot.lane.b32.xlu0 %v613, 16
      %v851 = vpop.permute.xlu0 %850
      %852 = vrot.lane.b32.xlu0 %v614, 16
      %v853 = vpop.permute.xlu0 %852
      %854 = vrot.lane.b32.xlu0 %v615, 16
      %v855 = vpop.permute.xlu0 %854
      %856 = vrot.lane.b32.xlu0 %v616, 16
      %v857 = vpop.permute.xlu0 %856
      %858 = vrot.lane.b32.xlu0 %v617, 16
      %v859 = vpop.permute.xlu0 %858
      %860 = vrot.lane.b32.xlu0 %v618, 16
      %v861 = vpop.permute.xlu0 %860
      %862 = vrot.lane.b32.xlu0 %v619, 16
      %v863 = vpop.permute.xlu0 %862
      %864 = vrot.lane.b32.xlu0 %v620, 16
      %v865 = vpop.permute.xlu0 %864
      %866 = vrot.lane.b32.xlu0 %v621, 16
      %v867 = vpop.permute.xlu0 %866
      %868 = vrot.lane.b32.xlu0 %v622, 16
      %v869 = vpop.permute.xlu0 %868
      %870 = vrot.lane.b32.xlu0 %v623, 16
      %v871 = vpop.permute.xlu0 %870
      %872 = vrot.lane.b32.xlu0 %v624, 16
      %v873 = vpop.permute.xlu0 %872
      %874 = vrot.lane.b32.xlu0 %v625, 16
      %v875 = vpop.permute.xlu0 %874
      %876 = vrot.lane.b32.xlu0 %v626, 16
      %v877 = vpop.permute.xlu0 %876
      %878 = vrot.lane.b32.xlu0 %v627, 16
      %v879 = vpop.permute.xlu0 %878
      %880 = vrot.lane.b32.xlu0 %v628, 16
      %v881 = vpop.permute.xlu0 %880
      %882 = vrot.lane.b32.xlu0 %v629, 16
      %v883 = vpop.permute.xlu0 %882
      %884 = vrot.lane.b32.xlu0 %v630, 16
      %v885 = vpop.permute.xlu0 %884
      %886 = vrot.lane.b32.xlu0 %v631, 16
      %v887 = vpop.permute.xlu0 %886
      %888 = vrot.lane.b32.xlu0 %v632, 16
      %v889 = vpop.permute.xlu0 %888
      %890 = vrot.lane.b32.xlu0 %v633, 16
      %v891 = vpop.permute.xlu0 %890
      %892 = vrot.lane.b32.xlu0 %v634, 16
      %v893 = vpop.permute.xlu0 %892
      %927 = vrot.lane.b32.xlu0 %v767, 32
      %v928 = vpop.permute.xlu0 %927
      %929 = vrot.lane.b32.xlu0 %v769, 32
      %v930 = vpop.permute.xlu0 %929
      %931 = vrot.lane.b32.xlu0 %v771, 32
      %v932 = vpop.permute.xlu0 %931
      %933 = vrot.lane.b32.xlu0 %v773, 32
      %v934 = vpop.permute.xlu0 %933
      %935 = vrot.lane.b32.xlu0 %v775, 32
      %v936 = vpop.permute.xlu0 %935
      %937 = vrot.lane.b32.xlu0 %v777, 32
      %v938 = vpop.permute.xlu0 %937
      %939 = vrot.lane.b32.xlu0 %v779, 32
      %v940 = vpop.permute.xlu0 %939
      %941 = vrot.lane.b32.xlu0 %v781, 32
      %v942 = vpop.permute.xlu0 %941
      %943 = vrot.lane.b32.xlu0 %v783, 32
      %v944 = vpop.permute.xlu0 %943
      %945 = vrot.lane.b32.xlu0 %v785, 32
      %v946 = vpop.permute.xlu0 %945
      %947 = vrot.lane.b32.xlu0 %v787, 32
      %v948 = vpop.permute.xlu0 %947
      %949 = vrot.lane.b32.xlu0 %v789, 32
      %v950 = vpop.permute.xlu0 %949
      %951 = vrot.lane.b32.xlu0 %v791, 32
      %v952 = vpop.permute.xlu0 %951
      %953 = vrot.lane.b32.xlu0 %v793, 32
      %v954 = vpop.permute.xlu0 %953
      %955 = vrot.lane.b32.xlu0 %v795, 32
      %v956 = vpop.permute.xlu0 %955
      %957 = vrot.lane.b32.xlu0 %v797, 32
      %v958 = vpop.permute.xlu0 %957
      %959 = vrot.lane.b32.xlu0 %v799, 32
      %v960 = vpop.permute.xlu0 %959
      %961 = vrot.lane.b32.xlu0 %v801, 32
      %v962 = vpop.permute.xlu0 %961
      %963 = vrot.lane.b32.xlu0 %v803, 32
      %v964 = vpop.permute.xlu0 %963
      %965 = vrot.lane.b32.xlu0 %v805, 32
      %v966 = vpop.permute.xlu0 %965
      %967 = vrot.lane.b32.xlu0 %v807, 32
      %v968 = vpop.permute.xlu0 %967
      %969 = vrot.lane.b32.xlu0 %v809, 32
      %v970 = vpop.permute.xlu0 %969
      %971 = vrot.lane.b32.xlu0 %v811, 32
      %v972 = vpop.permute.xlu0 %971
      %973 = vrot.lane.b32.xlu0 %v813, 32
      %v974 = vpop.permute.xlu0 %973
      %975 = vrot.lane.b32.xlu0 %v815, 32
      %v976 = vpop.permute.xlu0 %975
      %977 = vrot.lane.b32.xlu0 %v817, 32
      %v978 = vpop.permute.xlu0 %977
      %979 = vrot.lane.b32.xlu0 %v819, 32
      %v980 = vpop.permute.xlu0 %979
      %981 = vrot.lane.b32.xlu0 %v821, 32
      %v982 = vpop.permute.xlu0 %981
      %983 = vrot.lane.b32.xlu0 %v823, 32
      %v984 = vpop.permute.xlu0 %983
      %985 = vrot.lane.b32.xlu0 %v825, 32
      %v986 = vpop.permute.xlu0 %985
      %987 = vrot.lane.b32.xlu0 %v827, 32
      %v988 = vpop.permute.xlu0 %987
      %989 = vrot.lane.b32.xlu0 %v829, 32
      %v990 = vpop.permute.xlu0 %989
      %vm1023 = vcmask 130048
      %v1024 = vsel %vm1023, %v763, %v831
      %v1025 = vsel %vm1023, %v670, %v833
      %v1026 = vsel %vm1023, %v672, %v835
      %v1027 = vsel %vm1023, %v674, %v837
      %v1028 = vsel %vm1023, %v676, %v839
      %v1029 = vsel %vm1023, %v678, %v841
      %v1030 = vsel %vm1023, %v680, %v843
      %v1031 = vsel %vm1023, %v682, %v845
      %v1032 = vsel %vm1023, %v684, %v847
      %v1033 = vsel %vm1023, %v686, %v849
      %v1034 = vsel %vm1023, %v688, %v851
      %v1035 = vsel %vm1023, %v690, %v853
      %v1036 = vsel %vm1023, %v692, %v855
      %v1037 = vsel %vm1023, %v694, %v857
      %v1038 = vsel %vm1023, %v696, %v859
      %v1039 = vsel %vm1023, %v698, %v861
      %v1040 = vsel %vm1023, %v700, %v863
      %v1041 = vsel %vm1023, %v702, %v865
      %v1042 = vsel %vm1023, %v704, %v867
      %v1043 = vsel %vm1023, %v706, %v869
      %v1044 = vsel %vm1023, %v708, %v871
      %v1045 = vsel %vm1023, %v710, %v873
      %v1046 = vsel %vm1023, %v712, %v875
      %v1047 = vsel %vm1023, %v714, %v877
      %v1048 = vsel %vm1023, %v716, %v879
      %v1049 = vsel %vm1023, %v718, %v881
      %v1050 = vsel %vm1023, %v720, %v883
      %v1051 = vsel %vm1023, %v722, %v885
      %v1052 = vsel %vm1023, %v724, %v887
      %v1053 = vsel %vm1023, %v726, %v889
      %v1054 = vsel %vm1023, %v728, %v891
      %v1055 = vsel %vm1023, %v730, %v893
      %vm1056 = vcmask 261120
      %v1057 = vsel %vm1056, %v1024, %v928
      %v1058 = vsel %vm1056, %v1025, %v930
      %v1059 = vsel %vm1056, %v1026, %v932
      %v1060 = vsel %vm1056, %v1027, %v934
      %v1061 = vsel %vm1056, %v1028, %v936
      %v1062 = vsel %vm1056, %v1029, %v938
      %v1063 = vsel %vm1056, %v1030, %v940
      %v1064 = vsel %vm1056, %v1031, %v942
      %v1065 = vsel %vm1056, %v1032, %v944
      %v1066 = vsel %vm1056, %v1033, %v946
      %v1067 = vsel %vm1056, %v1034, %v948
      %v1068 = vsel %vm1056, %v1035, %v950
      %v1069 = vsel %vm1056, %v1036, %v952
      %v1070 = vsel %vm1056, %v1037, %v954
      %v1071 = vsel %vm1056, %v1038, %v956
      %v1072 = vsel %vm1056, %v1039, %v958
      %v1073 = vsel %vm1056, %v1040, %v960
      %v1074 = vsel %vm1056, %v1041, %v962
      %v1075 = vsel %vm1056, %v1042, %v964
      %v1076 = vsel %vm1056, %v1043, %v966
      %v1077 = vsel %vm1056, %v1044, %v968
      %v1078 = vsel %vm1056, %v1045, %v970
      %v1079 = vsel %vm1056, %v1046, %v972
      %v1080 = vsel %vm1056, %v1047, %v974
      %v1081 = vsel %vm1056, %v1048, %v976
      %v1082 = vsel %vm1056, %v1049, %v978
      %v1083 = vsel %vm1056, %v1050, %v980
      %v1084 = vsel %vm1056, %v1051, %v982
      %v1085 = vsel %vm1056, %v1052, %v984
      %v1086 = vsel %vm1056, %v1053, %v986
      %v1087 = vsel %vm1056, %v1054, %v988
      %v1088 = vsel %vm1056, %v1055, %v990
      %v1089 = vpack.c.bf16 %v1058, %v1057
      %v1090 = vpack.c.bf16 %v1060, %v1059
      %v1091 = vpack.c.bf16 %v1062, %v1061
      %v1092 = vpack.c.bf16 %v1064, %v1063
      %v1093 = vpack.c.bf16 %v1066, %v1065
      %v1094 = vpack.c.bf16 %v1068, %v1067
      %v1095 = vpack.c.bf16 %v1070, %v1069
      %v1096 = vpack.c.bf16 %v1072, %v1071
      %v1097 = vpack.c.bf16 %v1074, %v1073
      %v1098 = vpack.c.bf16 %v1076, %v1075
      %v1099 = vpack.c.bf16 %v1078, %v1077
      %v1100 = vpack.c.bf16 %v1080, %v1079
      %v1101 = vpack.c.bf16 %v1082, %v1081
      %v1102 = vpack.c.bf16 %v1084, %v1083
      %v1103 = vpack.c.bf16 %v1086, %v1085
      %v1104 = vpack.c.bf16 %v1088, %v1087
      %v1105 = vld [vmem:[%s3] sm:$0xf]
      %v1106 = vld [vmem:[%s3 + $0x4] sm:$0xf]
      %v1107 = vld [vmem:[%s3 + $0x8] sm:$0xf]
      %v1108 = vld [vmem:[%s3 + $0xc] sm:$0xf]
      %v1109 = vld [vmem:[%s3 + $0x10] sm:$0xf]
      %v1110 = vld [vmem:[%s3 + $0x14] sm:$0xf]
      %v1117 = vunpack.c.l.b16 %v1105
      %v1118 = vunpack.c.l.b16 %v1106
      %v1119 = vunpack.c.l.b16 %v1107
      %v1120 = vunpack.c.l.b16 %v1108
      %v1121 = vunpack.c.l.b16 %v1109
      %v1122 = vunpack.c.l.b16 %v1110
      %v1123 = vpack.c.b16 %v1118, %v1117
      %v1124 = vpack.c.b16 %v1120, %v1119
      %v1125 = vpack.c.b16 %v1122, %v1121
      %vm1129 = vcmask 392192
      %v1131 = vsel %vm1129, %v1089, 0
      %v1134 = vsel %vm1129, %v1090, 0
      %v1137 = vsel %vm1129, %v1091, 0
      %v1140 = vsel %vm1129, %v1092, 0
      %v1143 = vsel %vm1129, %v1093, 0
      %v1146 = vsel %vm1129, %v1094, 0
      %v1149 = vsel %vm1129, %v1095, 0
      %v1152 = vsel %vm1129, %v1096, 0
      %v1155 = vsel %vm1129, %v1097, 0
      %v1158 = vsel %vm1129, %v1098, 0
      %v1161 = vsel %vm1129, %v1099, 0
      %v1164 = vsel %vm1129, %v1100, 0
      %v1167 = vsel %vm1129, %v1101, 0
      %v1170 = vsel %vm1129, %v1102, 0
      %v1173 = vsel %vm1129, %v1103, 0
      %v1176 = vsel %vm1129, %v1104, 0
      %1178 = vmatprep.subr.bf16.mxu0 0
      %1179 = vmatpush1.bf16.msra.mxu0 0
      %1180 = vmatprep.subr.bf16.mxu0 0
      %1181 = vmatpush1.bf16.msra.mxu0 0
      %1182 = vmatprep.subr.bf16.mxu0 0
      %1183 = vmatpush1.bf16.msra.mxu0 0
      %1184 = vmatprep.subr.bf16.mxu0 0
      %1185 = vmatpush1.bf16.msra.mxu0 0
      %1186 = vmatprep.subr.bf16.mxu0 0
      %1187 = vmatpush1.bf16.msra.mxu0 0
      %1188 = vmatprep.subr.bf16.mxu0 0
      %1189 = vmatpush1.bf16.msra.mxu0 %v1125
      %1190 = vmatprep.subr.bf16.mxu0 0
      %1191 = vmatpush1.bf16.msra.mxu0 %v1124
      %1192 = vmatprep.subr.bf16.mxu0 0
      %1193 = vmatpush1.bf16.msra.mxu0 %v1123
      %1194 = vmatprep.subr.bf16.mxu0 0
      %1195 = vmatpush2.bf16.msra.mxu0 0
      %1196 = vmatprep.subr.bf16.mxu0 0
      %1197 = vmatpush2.bf16.msra.mxu0 0
      %1198 = vmatprep.subr.bf16.mxu0 0
      %1199 = vmatpush2.bf16.msra.mxu0 0
      %1200 = vmatprep.subr.bf16.mxu0 0
      %1201 = vmatpush2.bf16.msra.mxu0 0
      %1202 = vmatprep.subr.bf16.mxu0 0
      %1203 = vmatpush2.bf16.msra.mxu0 0
      %1204 = vmatprep.subr.bf16.mxu0 0
      %1205 = vmatpush2.bf16.msra.mxu0 0
      %1206 = vmatprep.subr.bf16.mxu0 0
      %1207 = vmatpush2.bf16.msra.mxu0 0
      %1208 = vmatprep.subr.bf16.mxu0 0
      %1209 = vmatpush2.bf16.msra.mxu0 0
      %1210 = vmatprep.mubr.bf16.mxu0 0
      %1211 = vmatmul.mubr.bf16.gmra.mxu0 %v1131
      %v1212 = vpop.f32.mrf.mxu0
      %v1213 = vadd.f32 0.0, %v1212
      %v1214 = vpop.f32.mrf.mxu0
      %v1215 = vpop.f32.mrf.mxu0
      %v1216 = vadd.f32 0.0, %v1215
      %v1217 = vpop.f32.mrf.mxu0
      %1218 = vmatprep.mubr.bf16.mxu0 0
      %1219 = vmatmul.mubr.bf16.gmra.mxu0 %v1134
      %v1220 = vpop.f32.mrf.mxu0
      %v1221 = vadd.f32 0.0, %v1220
      %v1222 = vpop.f32.mrf.mxu0
      %v1223 = vpop.f32.mrf.mxu0
      %v1224 = vadd.f32 0.0, %v1223
      %v1225 = vpop.f32.mrf.mxu0
      %1226 = vmatprep.mubr.bf16.mxu0 0
      %1227 = vmatmul.mubr.bf16.gmra.mxu0 %v1137
      %v1228 = vpop.f32.mrf.mxu0
      %v1229 = vadd.f32 0.0, %v1228
      %v1230 = vpop.f32.mrf.mxu0
      %v1231 = vpop.f32.mrf.mxu0
      %v1232 = vadd.f32 0.0, %v1231
      %v1233 = vpop.f32.mrf.mxu0
      %1234 = vmatprep.mubr.bf16.mxu0 0
      %1235 = vmatmul.mubr.bf16.gmra.mxu0 %v1140
      %v1236 = vpop.f32.mrf.mxu0
      %v1237 = vadd.f32 0.0, %v1236
      %v1238 = vpop.f32.mrf.mxu0
      %v1239 = vpop.f32.mrf.mxu0
      %v1240 = vadd.f32 0.0, %v1239
      %v1241 = vpop.f32.mrf.mxu0
      %1242 = vmatprep.mubr.bf16.mxu0 0
      %1243 = vmatmul.mubr.bf16.gmra.mxu0 %v1143
      %v1244 = vpop.f32.mrf.mxu0
      %v1245 = vadd.f32 0.0, %v1244
      %v1246 = vpop.f32.mrf.mxu0
      %v1247 = vpop.f32.mrf.mxu0
      %v1248 = vadd.f32 0.0, %v1247
      %v1249 = vpop.f32.mrf.mxu0
      %1250 = vmatprep.mubr.bf16.mxu0 0
      %1251 = vmatmul.mubr.bf16.gmra.mxu0 %v1146
      %v1252 = vpop.f32.mrf.mxu0
      %v1253 = vadd.f32 0.0, %v1252
      %v1254 = vpop.f32.mrf.mxu0
      %v1255 = vpop.f32.mrf.mxu0
      %v1256 = vadd.f32 0.0, %v1255
      %v1257 = vpop.f32.mrf.mxu0
      %1258 = vmatprep.mubr.bf16.mxu0 0
      %1259 = vmatmul.mubr.bf16.gmra.mxu0 %v1149
      %v1260 = vpop.f32.mrf.mxu0
      %v1261 = vadd.f32 0.0, %v1260
      %v1262 = vpop.f32.mrf.mxu0
      %v1263 = vpop.f32.mrf.mxu0
      %v1264 = vadd.f32 0.0, %v1263
      %v1265 = vpop.f32.mrf.mxu0
      %1266 = vmatprep.mubr.bf16.mxu0 0
      %1267 = vmatmul.mubr.bf16.gmra.mxu0 %v1152
      %v1268 = vpop.f32.mrf.mxu0
      %v1269 = vadd.f32 0.0, %v1268
      %v1270 = vpop.f32.mrf.mxu0
      %v1271 = vpop.f32.mrf.mxu0
      %v1272 = vadd.f32 0.0, %v1271
      %v1273 = vpop.f32.mrf.mxu0
      %1274 = vmatprep.mubr.bf16.mxu0 0
      %1275 = vmatmul.mubr.bf16.gmra.mxu0 %v1155
      %v1276 = vpop.f32.mrf.mxu0
      %v1277 = vadd.f32 0.0, %v1276
      %v1278 = vpop.f32.mrf.mxu0
      %v1279 = vpop.f32.mrf.mxu0
      %v1280 = vadd.f32 0.0, %v1279
      %v1281 = vpop.f32.mrf.mxu0
      %1282 = vmatprep.mubr.bf16.mxu0 0
      %1283 = vmatmul.mubr.bf16.gmra.mxu0 %v1158
      %v1284 = vpop.f32.mrf.mxu0
      %v1285 = vadd.f32 0.0, %v1284
      %v1286 = vpop.f32.mrf.mxu0
      %v1287 = vpop.f32.mrf.mxu0
      %v1288 = vadd.f32 0.0, %v1287
      %v1289 = vpop.f32.mrf.mxu0
      %1290 = vmatprep.mubr.bf16.mxu0 0
      %1291 = vmatmul.mubr.bf16.gmra.mxu0 %v1161
      %v1292 = vpop.f32.mrf.mxu0
      %v1293 = vadd.f32 0.0, %v1292
      %v1294 = vpop.f32.mrf.mxu0
      %v1295 = vpop.f32.mrf.mxu0
      %v1296 = vadd.f32 0.0, %v1295
      %v1297 = vpop.f32.mrf.mxu0
      %1298 = vmatprep.mubr.bf16.mxu0 0
      %1299 = vmatmul.mubr.bf16.gmra.mxu0 %v1164
      %v1300 = vpop.f32.mrf.mxu0
      %v1301 = vadd.f32 0.0, %v1300
      %v1302 = vpop.f32.mrf.mxu0
      %v1303 = vpop.f32.mrf.mxu0
      %v1304 = vadd.f32 0.0, %v1303
      %v1305 = vpop.f32.mrf.mxu0
      %1306 = vmatprep.mubr.bf16.mxu0 0
      %1307 = vmatmul.mubr.bf16.gmra.mxu0 %v1167
      %v1308 = vpop.f32.mrf.mxu0
      %v1309 = vadd.f32 0.0, %v1308
      %v1310 = vpop.f32.mrf.mxu0
      %v1311 = vpop.f32.mrf.mxu0
      %v1312 = vadd.f32 0.0, %v1311
      %v1313 = vpop.f32.mrf.mxu0
      %1314 = vmatprep.mubr.bf16.mxu0 0
      %1315 = vmatmul.mubr.bf16.gmra.mxu0 %v1170
      %v1316 = vpop.f32.mrf.mxu0
      %v1317 = vadd.f32 0.0, %v1316
      %v1318 = vpop.f32.mrf.mxu0
      %v1319 = vpop.f32.mrf.mxu0
      %v1320 = vadd.f32 0.0, %v1319
      %v1321 = vpop.f32.mrf.mxu0
      %1322 = vmatprep.mubr.bf16.mxu0 0
      %1323 = vmatmul.mubr.bf16.gmra.mxu0 %v1173
      %v1324 = vpop.f32.mrf.mxu0
      %v1325 = vadd.f32 0.0, %v1324
      %v1326 = vpop.f32.mrf.mxu0
      %v1327 = vpop.f32.mrf.mxu0
      %v1328 = vadd.f32 0.0, %v1327
      %v1329 = vpop.f32.mrf.mxu0
      %1330 = vmatprep.mubr.bf16.mxu0 0
      %1331 = vmatmul.mubr.bf16.gmra.mxu0 %v1176
      %v1332 = vpop.f32.mrf.mxu0
      %v1333 = vadd.f32 0.0, %v1332
      %v1334 = vpop.f32.mrf.mxu0
      %v1335 = vpop.f32.mrf.mxu0
      %v1336 = vadd.f32 0.0, %v1335
      %v1337 = vpop.f32.mrf.mxu0
      %1338 = vdwg.mxu0
      %1339 = vst.msk [vmem:[%s231] sm:$0xff] %vm1023, %v1213
      %1340 = vst.msk [vmem:[%s231 + $0x8] sm:$0xff] %vm1023, %v1216
      %1341 = vst.msk [vmem:[%s231 + $0x10] sm:$0xff] %vm1023, %v1221
      %1342 = vst.msk [vmem:[%s231 + $0x18] sm:$0xff] %vm1023, %v1224
      %1343 = vst.msk [vmem:[%s231 + $0x20] sm:$0xff] %vm1023, %v1229
      %1344 = vst.msk [vmem:[%s231 + $0x28] sm:$0xff] %vm1023, %v1232
      %1345 = vst.msk [vmem:[%s231 + $0x30] sm:$0xff] %vm1023, %v1237
      %1346 = vst.msk [vmem:[%s231 + $0x38] sm:$0xff] %vm1023, %v1240
      %1347 = vst.msk [vmem:[%s231 + $0x40] sm:$0xff] %vm1023, %v1245
      %1348 = vst.msk [vmem:[%s231 + $0x48] sm:$0xff] %vm1023, %v1248
      %1349 = vst.msk [vmem:[%s231 + $0x50] sm:$0xff] %vm1023, %v1253
      %1350 = vst.msk [vmem:[%s231 + $0x58] sm:$0xff] %vm1023, %v1256
      %1351 = vst.msk [vmem:[%s231 + $0x60] sm:$0xff] %vm1023, %v1261
      %1352 = vst.msk [vmem:[%s231 + $0x68] sm:$0xff] %vm1023, %v1264
      %1353 = vst.msk [vmem:[%s231 + $0x70] sm:$0xff] %vm1023, %v1269
      %1354 = vst.msk [vmem:[%s231 + $0x78] sm:$0xff] %vm1023, %v1272
      %1355 = vst.msk [vmem:[%s231 + $0x80] sm:$0xff] %vm1023, %v1277
      %1356 = vst.msk [vmem:[%s231 + $0x88] sm:$0xff] %vm1023, %v1280
      %1357 = vst.msk [vmem:[%s231 + $0x90] sm:$0xff] %vm1023, %v1285
      %1358 = vst.msk [vmem:[%s231 + $0x98] sm:$0xff] %vm1023, %v1288
      %1359 = vst.msk [vmem:[%s231 + $0xa0] sm:$0xff] %vm1023, %v1293
      %1360 = vst.msk [vmem:[%s231 + $0xa8] sm:$0xff] %vm1023, %v1296
      %1361 = vst.msk [vmem:[%s231 + $0xb0] sm:$0xff] %vm1023, %v1301
      %1362 = vst.msk [vmem:[%s231 + $0xb8] sm:$0xff] %vm1023, %v1304
      %1363 = vst.msk [vmem:[%s231 + $0xc0] sm:$0xff] %vm1023, %v1309
      %1364 = vst.msk [vmem:[%s231 + $0xc8] sm:$0xff] %vm1023, %v1312
      %1365 = vst.msk [vmem:[%s231 + $0xd0] sm:$0xff] %vm1023, %v1317
      %1366 = vst.msk [vmem:[%s231 + $0xd8] sm:$0xff] %vm1023, %v1320
      %1367 = vst.msk [vmem:[%s231 + $0xe0] sm:$0xff] %vm1023, %v1325
      %1368 = vst.msk [vmem:[%s231 + $0xe8] sm:$0xff] %vm1023, %v1328
      %1369 = vst.msk [vmem:[%s231 + $0xf0] sm:$0xff] %vm1023, %v1333
      %1370 = vst.msk [vmem:[%s231 + $0xf8] sm:$0xff] %vm1023, %v1336
      %v1371 = vsel %vm1023, %v1213, 0.0
      %v1372 = vsel %vm1023, %v1216, 0.0
      %v1373 = vadd.f32 %v1371, %v1372
      %v1374 = vsel %vm1023, %v1221, 0.0
      %v1375 = vadd.f32 %v1373, %v1374
      %v1376 = vsel %vm1023, %v1224, 0.0
      %v1377 = vadd.f32 %v1375, %v1376
      %v1378 = vsel %vm1023, %v1229, 0.0
      %v1379 = vadd.f32 %v1377, %v1378
      %v1380 = vsel %vm1023, %v1232, 0.0
      %v1381 = vadd.f32 %v1379, %v1380
      %v1382 = vsel %vm1023, %v1237, 0.0
      %v1383 = vadd.f32 %v1381, %v1382
      %v1384 = vsel %vm1023, %v1240, 0.0
      %v1385 = vadd.f32 %v1383, %v1384
      %v1386 = vsel %vm1023, %v1245, 0.0
      %v1387 = vadd.f32 %v1385, %v1386
      %v1388 = vsel %vm1023, %v1248, 0.0
      %v1389 = vadd.f32 %v1387, %v1388
      %v1390 = vsel %vm1023, %v1253, 0.0
      %v1391 = vadd.f32 %v1389, %v1390
      %v1392 = vsel %vm1023, %v1256, 0.0
      %v1393 = vadd.f32 %v1391, %v1392
      %v1394 = vsel %vm1023, %v1261, 0.0
      %v1395 = vadd.f32 %v1393, %v1394
      %v1396 = vsel %vm1023, %v1264, 0.0
      %v1397 = vadd.f32 %v1395, %v1396
      %v1398 = vsel %vm1023, %v1269, 0.0
      %v1399 = vadd.f32 %v1397, %v1398
      %v1400 = vsel %vm1023, %v1272, 0.0
      %v1401 = vadd.f32 %v1399, %v1400
      %v1402 = vsel %vm1023, %v1277, 0.0
      %v1403 = vadd.f32 %v1401, %v1402
      %v1404 = vsel %vm1023, %v1280, 0.0
      %v1405 = vadd.f32 %v1403, %v1404
      %v1406 = vsel %vm1023, %v1285, 0.0
      %v1407 = vadd.f32 %v1405, %v1406
      %v1408 = vsel %vm1023, %v1288, 0.0
      %v1409 = vadd.f32 %v1407, %v1408
      %v1410 = vsel %vm1023, %v1293, 0.0
      %v1411 = vadd.f32 %v1409, %v1410
      %v1412 = vsel %vm1023, %v1296, 0.0
      %v1413 = vadd.f32 %v1411, %v1412
      %v1414 = vsel %vm1023, %v1301, 0.0
      %v1415 = vadd.f32 %v1413, %v1414
      %v1416 = vsel %vm1023, %v1304, 0.0
      %v1417 = vadd.f32 %v1415, %v1416
      %v1418 = vsel %vm1023, %v1309, 0.0
      %v1419 = vadd.f32 %v1417, %v1418
      %v1420 = vsel %vm1023, %v1312, 0.0
      %v1421 = vadd.f32 %v1419, %v1420
      %v1422 = vsel %vm1023, %v1317, 0.0
      %v1423 = vadd.f32 %v1421, %v1422
      %v1424 = vsel %vm1023, %v1320, 0.0
      %v1425 = vadd.f32 %v1423, %v1424
      %v1426 = vsel %vm1023, %v1325, 0.0
      %v1427 = vadd.f32 %v1425, %v1426
      %v1428 = vsel %vm1023, %v1328, 0.0
      %v1429 = vadd.f32 %v1427, %v1428
      %v1430 = vsel %vm1023, %v1333, 0.0
      %v1431 = vadd.f32 %v1429, %v1430
      %v1432 = vsel %vm1023, %v1336, 0.0
      %v1433 = vadd.f32 %v1431, %v1432
      %v1434 = vrot.slane %v1433, 4
      %v1435 = vadd.f32 %v1433, %v1434
      %v1436 = vrot.slane %v1435, 2
      %v1437 = vadd.f32 %v1435, %v1436
      %v1438 = vrot.slane %v1437, 1
      %v1439 = vadd.f32 %v1437, %v1438
      %v1440 = vmul.f32 %v1213, %v1213
      %v1441 = vmul.f32 %v1216, %v1216
      %v1442 = vmul.f32 %v1221, %v1221
      %v1443 = vmul.f32 %v1224, %v1224
      %v1444 = vmul.f32 %v1229, %v1229
      %v1445 = vmul.f32 %v1232, %v1232
      %v1446 = vmul.f32 %v1237, %v1237
      %v1447 = vmul.f32 %v1240, %v1240
      %v1448 = vmul.f32 %v1245, %v1245
      %v1449 = vmul.f32 %v1248, %v1248
      %v1450 = vmul.f32 %v1253, %v1253
      %v1451 = vmul.f32 %v1256, %v1256
      %v1452 = vmul.f32 %v1261, %v1261
      %v1453 = vmul.f32 %v1264, %v1264
      %v1454 = vmul.f32 %v1269, %v1269
      %v1455 = vmul.f32 %v1272, %v1272
      %v1456 = vmul.f32 %v1277, %v1277
      %v1457 = vmul.f32 %v1280, %v1280
      %v1458 = vmul.f32 %v1285, %v1285
      %v1459 = vmul.f32 %v1288, %v1288
      %v1460 = vmul.f32 %v1293, %v1293
      %v1461 = vmul.f32 %v1296, %v1296
      %v1462 = vmul.f32 %v1301, %v1301
      %v1463 = vmul.f32 %v1304, %v1304
      %v1464 = vmul.f32 %v1309, %v1309
      %v1465 = vmul.f32 %v1312, %v1312
      %v1466 = vmul.f32 %v1317, %v1317
      %v1467 = vmul.f32 %v1320, %v1320
      %v1468 = vmul.f32 %v1325, %v1325
      %v1469 = vmul.f32 %v1328, %v1328
      %v1470 = vmul.f32 %v1333, %v1333
      %v1471 = vmul.f32 %v1336, %v1336
      %v1472 = vsel %vm1023, %v1440, 0.0
      %v1473 = vsel %vm1023, %v1441, 0.0
      %v1474 = vadd.f32 %v1472, %v1473
      %v1475 = vsel %vm1023, %v1442, 0.0
      %v1476 = vadd.f32 %v1474, %v1475
      %v1477 = vsel %vm1023, %v1443, 0.0
      %v1478 = vadd.f32 %v1476, %v1477
      %v1479 = vsel %vm1023, %v1444, 0.0
      %v1480 = vadd.f32 %v1478, %v1479
      %v1481 = vsel %vm1023, %v1445, 0.0
      %v1482 = vadd.f32 %v1480, %v1481
      %v1483 = vsel %vm1023, %v1446, 0.0
      %v1484 = vadd.f32 %v1482, %v1483
      %v1485 = vsel %vm1023, %v1447, 0.0
      %v1486 = vadd.f32 %v1484, %v1485
      %v1487 = vsel %vm1023, %v1448, 0.0
      %v1488 = vadd.f32 %v1486, %v1487
      %v1489 = vsel %vm1023, %v1449, 0.0
      %v1490 = vadd.f32 %v1488, %v1489
      %v1491 = vsel %vm1023, %v1450, 0.0
      %v1492 = vadd.f32 %v1490, %v1491
      %v1493 = vsel %vm1023, %v1451, 0.0
      %v1494 = vadd.f32 %v1492, %v1493
      %v1495 = vsel %vm1023, %v1452, 0.0
      %v1496 = vadd.f32 %v1494, %v1495
      %v1497 = vsel %vm1023, %v1453, 0.0
      %v1498 = vadd.f32 %v1496, %v1497
      %v1499 = vsel %vm1023, %v1454, 0.0
      %v1500 = vadd.f32 %v1498, %v1499
      %v1501 = vsel %vm1023, %v1455, 0.0
      %v1502 = vadd.f32 %v1500, %v1501
      %v1503 = vsel %vm1023, %v1456, 0.0
      %v1504 = vadd.f32 %v1502, %v1503
      %v1505 = vsel %vm1023, %v1457, 0.0
      %v1506 = vadd.f32 %v1504, %v1505
      %v1507 = vsel %vm1023, %v1458, 0.0
      %v1508 = vadd.f32 %v1506, %v1507
      %v1509 = vsel %vm1023, %v1459, 0.0
      %v1510 = vadd.f32 %v1508, %v1509
      %v1511 = vsel %vm1023, %v1460, 0.0
      %v1512 = vadd.f32 %v1510, %v1511
      %v1513 = vsel %vm1023, %v1461, 0.0
      %v1514 = vadd.f32 %v1512, %v1513
      %v1515 = vsel %vm1023, %v1462, 0.0
      %v1516 = vadd.f32 %v1514, %v1515
      %v1517 = vsel %vm1023, %v1463, 0.0
      %v1518 = vadd.f32 %v1516, %v1517
      %v1519 = vsel %vm1023, %v1464, 0.0
      %v1520 = vadd.f32 %v1518, %v1519
      %v1521 = vsel %vm1023, %v1465, 0.0
      %v1522 = vadd.f32 %v1520, %v1521
      %v1523 = vsel %vm1023, %v1466, 0.0
      %v1524 = vadd.f32 %v1522, %v1523
      %v1525 = vsel %vm1023, %v1467, 0.0
      %v1526 = vadd.f32 %v1524, %v1525
      %v1527 = vsel %vm1023, %v1468, 0.0
      %v1528 = vadd.f32 %v1526, %v1527
      %v1529 = vsel %vm1023, %v1469, 0.0
      %v1530 = vadd.f32 %v1528, %v1529
      %v1531 = vsel %vm1023, %v1470, 0.0
      %v1532 = vadd.f32 %v1530, %v1531
      %v1533 = vsel %vm1023, %v1471, 0.0
      %v1534 = vadd.f32 %v1532, %v1533
      %v1535 = vrot.slane %v1534, 4
      %v1536 = vadd.f32 %v1534, %v1535
      %v1537 = vrot.slane %v1536, 2
      %v1538 = vadd.f32 %v1536, %v1537
      %v1539 = vrot.slane %v1538, 1
      %v1540 = vadd.f32 %v1538, %v1539
      %v1541 = vsel %vm667, %v1439, %v1540
      %vm1542 = vcmask 123904
      %1543 = vst.msk [vmem:[%s235] sm:$0x3] %vm1542, %v1541
      %p1544 = scmp.lt.s32.totalorder %s17, 3
      %s1545 = scalar_select %p1544, %s17, 3
      %s1546 = smul.addr %s1545, 32
      %s1547 = smul.addr %s1546, 8
      %s1548 = scalar_lea.vmem %s4, %s1547
      %p1549 = scmp.lt.s32.totalorder %s17, 3
      %s1550 = scalar_select %p1549, %s17, 3
      %s1551 = smul.addr %s1550, 2
      %s1552 = scalar_lea.vmem %s5, %s1551
      // Predicated region
      $region37: #{residual_block.4} parent=35 // pred_check
        %p1553 = pneg %p124
      $region38: #{residual_block.4} parent=35 // pred_check_branch
        %1555 = sbr.rel (%p1553) target = $region40
      $region39: #{residual_block.4} parent=35 // pred_region
        _
      $region40: #{residual_block.4} parent=35 // pred_fallthru
        _
      // Predicated region
      $region41: #{residual_block.4} parent=35 // pred_check
        %p1556 = pneg %p150
      $region42: #{residual_block.4} parent=35 // pred_check_branch
        %1558 = sbr.rel (%p1556) target = $region44
      $region43: #{residual_block.4} parent=35 // pred_region
        _
      $region44: #{residual_block.4} parent=35 // pred_fallthru
        _
    $region36: #{residual_block.4} parent=5 // pred_fallthru
      _
    %p1559 = scmp.le.s32.totalorder 2, %s12
    // Predicated region
    $region45: #{residual_block.4} parent=5 // pred_check
      %p1560 = pneg %p1559
    $region46: #{residual_block.4} parent=5 // pred_check_branch
      %1562 = sbr.rel (%p1560) target = $region48
    $region47: #{residual_block.4} parent=5 // pred_region
      %s1563 = ssub.s32 %s12, 2
      // Predicated region
      $region49: #{residual_block.4} parent=47 // pred_check
        %p1564 = pneg %p130
      $region50: #{residual_block.4} parent=47 // pred_check_branch
        %1566 = sbr.rel (%p1564) target = $region52
      $region51: #{residual_block.4} parent=47 // pred_region
        %p1567 = scmp.lt.s32.totalorder %s18, 3
        %s1568 = scalar_select %p1567, %s18, 3
        %s1569 = smul.addr %s1568, 32
        %s1570 = smul.addr %s1569, 8
        %s1571 = scalar_lea.vmem %s4, %s1570
      $region52: #{residual_block.4} parent=47 // pred_fallthru
        _
      // Predicated region
      $region53: #{residual_block.4} parent=47 // pred_check
        %p1572 = pneg %p156
      $region54: #{residual_block.4} parent=47 // pred_check_branch
        %1574 = sbr.rel (%p1572) target = $region56
      $region55: #{residual_block.4} parent=47 // pred_region
        %p1575 = scmp.lt.s32.totalorder %s18, 3
        %s1576 = scalar_select %p1575, %s18, 3
        %s1577 = smul.addr %s1576, 2
        %s1578 = scalar_lea.vmem %s5, %s1577
      $region56: #{residual_block.4} parent=47 // pred_fallthru
        _
    $region48: #{residual_block.4} parent=5 // pred_fallthru
      _
  $region6: #{residual_block.4} parent=0 // loop_footer
    %s16 = sadd.s32 1, %s12
  $region7: #{residual_block.4} parent=0 // loop_footer_branch
    %11 = sbr.rel target = $region3
  $region8: #{residual_block.4} parent=0 // loop_exit
    _

</llo_original>
